<compile_context>
chip_gen: v6e
topology: v6e:2x2x1
jax: 0.10.0
libtpu: 0.0.40
codegen_flags: <defaults>
</compile_context>

<pallas_src>
import functools

import jax
import jax.numpy as jnp
from jax.experimental import pallas as pl
from jax.experimental.pallas import tpu as pltpu


def _bilstm_chunk_kernel(*refs, hidden_dim, chunk, batch, n_in):
    """One chunk of T timesteps of BOTH directions of one LSTM layer.

    refs layout (positional):
      inputs : n_in forward-chunk pieces  [T*Bp, DI]  (bf16)
               n_in backward-chunk pieces [T*Bp, DI]  (bf16)
               W_ih [2*n_in, DI, 4H] bf16, W_hh [2, H, 4H] bf16, bias [2, 4H] f32
      outputs: out_f [T*Bp, H], out_b [T*Bp, H], h_n [2, Bp, H] f32, c_n [2, Bp, H] f32
      scratch: gx_f [T*Bp, 4H] f32, gx_b [T*Bp, 4H] f32
    """
    H, T, Bp = hidden_dim, chunk, batch
    xf_refs = refs[0:n_in]
    xb_refs = refs[n_in:2 * n_in]
    wih_ref, whh_ref, b_ref = refs[2 * n_in:2 * n_in + 3]
    outf_ref, outb_ref, hn_ref, cn_ref = refs[2 * n_in + 3:2 * n_in + 7]
    gxf_ref, gxb_ref = refs[2 * n_in + 7:2 * n_in + 9]

    c = pl.program_id(0)

    # Initialize carried state at the first processed chunk.
    @pl.when(c == 0)
    def _():
        hn_ref[...] = jnp.zeros_like(hn_ref)
        cn_ref[...] = jnp.zeros_like(cn_ref)

    # ---- fused input projection for the whole chunk (one MXU matmul per input
    #      piece per direction), bias folded in; result stays in VMEM scratch.
    def project(x_refs, d, gx_ref):
        acc = jnp.dot(x_refs[0][...].astype(jnp.bfloat16),
                      wih_ref[d * n_in + 0],
                      preferred_element_type=jnp.float32)
        for ni in range(1, n_in):
            acc = acc + jnp.dot(x_refs[ni][...].astype(jnp.bfloat16),
                                wih_ref[d * n_in + ni],
                                preferred_element_type=jnp.float32)
        gx_ref[...] = acc + b_ref[pl.ds(d, 1), :]

    project(xf_refs, 0, gxf_ref)
    project(xb_refs, 1, gxb_ref)

    w_hh_f = whh_ref[0]                     # [H, 4H] bf16, pre-transposed
    w_hh_b = whh_ref[1]

    def cell(gx, h, c_state, w_hh):
        gates = gx + jnp.dot(h.astype(jnp.bfloat16), w_hh,
                             preferred_element_type=jnp.float32)
        i_g = jax.nn.sigmoid(gates[:, 0 * H:1 * H])
        f_g = jax.nn.sigmoid(gates[:, 1 * H:2 * H])
        g_g = jnp.tanh(gates[:, 2 * H:3 * H])
        o_g = jax.nn.sigmoid(gates[:, 3 * H:4 * H])
        c_new = f_g * c_state + i_g * g_g                 # cell state kept in f32
        h_new = o_g * jnp.tanh(c_new)
        return h_new, c_new

    h_f = hn_ref[0]
    c_f = cn_ref[0]
    h_b = hn_ref[1]
    c_b = cn_ref[1]

    # Fully static, fully unrolled interleave of the two independent recurrences.
    # Forward walks local steps 0..T-1, backward walks T-1..0 within its
    # (reversed-index_map) chunk, so outputs land in time order.
    # TODO(synk): at production H, sweep partial unroll (2-4) to bound vreg
    #             pressure; full static unroll chosen here for latency hiding.
    for t in range(T):
        rf = t * Bp
        rb = (T - 1 - t) * Bp
        h_f, c_f = cell(gxf_ref[pl.ds(rf, Bp), :], h_f, c_f, w_hh_f)
        h_b, c_b = cell(gxb_ref[pl.ds(rb, Bp), :], h_b, c_b, w_hh_b)
        outf_ref[pl.ds(rf, Bp), :] = h_f.astype(outf_ref.dtype)
        outb_ref[pl.ds(rb, Bp), :] = h_b.astype(outb_ref.dtype)

    # Single state store per chunk (resident carry / final h_n, c_n).
    hn_ref[0] = h_f
    hn_ref[1] = h_b
    cn_ref[0] = c_f
    cn_ref[1] = c_b


def _pick_time_chunk(S, Bp, H, DI, n_in, out_bytes,
                     budget=40 * 1024 * 1024, cap=32):
    """Largest divisor T of S (<= cap) whose streamed VMEM footprint fits budget."""
    best = 1
    for T in range(1, min(S, cap) + 1):
        if S % T:
            continue
        R = T * Bp
        streamed = (2 * n_in * R * DI * 2 * 2        # input blocks, bf16, 2 buffers
                    + 2 * R * H * out_bytes * 2      # output blocks, 2 buffers
                    + 2 * R * 4 * H * 4)             # gates scratch, f32
        if streamed <= budget:
            best = T
    return best


def bilstm_layer(inputs, w_ih, w_hh, b, *, hidden_dim, batch_pad, seq_len,
                 out_dtype, chunk=None):
    """Run one bidirectional LSTM layer (fused input projection + recurrence).

    inputs : tuple of n_in arrays, each [S*Bp, DI] (bf16)
    w_ih   : [2*n_in, DI, 4H] bf16   (pre-transposed, direction-major)
    w_hh   : [2, H, 4H]       bf16   (pre-transposed)
    b      : [2, 4H]          f32    (b_ih + b_hh)
    Returns (out_f [S*Bp,H], out_b [S*Bp,H], h_n [2,Bp,H], c_n [2,Bp,H]).
    """
    n_in = len(inputs)
    DI = inputs[0].shape[-1]
    H = hidden_dim
    Bp = batch_pad
    S = seq_len
    out_bytes = jnp.dtype(out_dtype).itemsize
    T = chunk if chunk is not None else _pick_time_chunk(S, Bp, H, DI, n_in,
                                                         out_bytes)
    assert S % T == 0, (S, T)
    nc = S // T
    R = T * Bp

    fwd_map = lambda c: (c, 0)                 # forward chunks left->right
    bwd_map = lambda c: (nc - 1 - c, 0)        # backward chunks right->left
    c2 = lambda c: (0, 0)
    c3 = lambda c: (0, 0, 0)

    in_specs = (
        [pl.BlockSpec((R, DI), fwd_map) for _ in range(n_in)]
        + [pl.BlockSpec((R, DI), bwd_map) for _ in range(n_in)]
        + [
            pl.BlockSpec((2 * n_in, DI, 4 * H), c3),   # W_ih (grid-invariant)
            pl.BlockSpec((2, H, 4 * H), c3),           # W_hh (grid-invariant)
            pl.BlockSpec((2, 4 * H), c2),              # bias
        ]
    )
    out_specs = (
        pl.BlockSpec((R, H), fwd_map),                 # forward hidden states
        pl.BlockSpec((R, H), bwd_map),                 # backward hidden states
        pl.BlockSpec((2, Bp, H), c3),                  # h_n (resident carry)
        pl.BlockSpec((2, Bp, H), c3),                  # c_n (resident carry)
    )
    out_shape = (
        jax.ShapeDtypeStruct((S * Bp, H), out_dtype),
        jax.ShapeDtypeStruct((S * Bp, H), out_dtype),
        jax.ShapeDtypeStruct((2, Bp, H), jnp.float32),
        jax.ShapeDtypeStruct((2, Bp, H), jnp.float32),
    )
    scratch_shapes = [pltpu.VMEM((R, 4 * H), jnp.float32),
                      pltpu.VMEM((R, 4 * H), jnp.float32)]

    kernel = functools.partial(_bilstm_chunk_kernel, hidden_dim=H, chunk=T,
                               batch=Bp, n_in=n_in)
    return pl.pallas_call(
        kernel,
        out_shape=out_shape,
        grid_spec=pltpu.PrefetchScalarGridSpec(
            num_scalar_prefetch=0,
            grid=(nc,),
            in_specs=in_specs,
            out_specs=out_specs,
            scratch_shapes=scratch_shapes),
        compiler_params=pltpu.CompilerParams(
            dimension_semantics=("arbitrary",),        # sequential recurrence
            vmem_limit_bytes=48 * 1024 * 1024),
    )(*inputs, *inputs, w_ih, w_hh, b)


def init_encoder_params(key, input_dim, hidden_dim, num_layers):
    """PyTorch-style uniform(-1/sqrt(H), 1/sqrt(H)) init.

    Weights stored pre-transposed and direction-stacked: W_ih [2*n_in, DI, 4H]
    (n_in = 1 for layer 0, 2 for later layers; piece 0 = fwd half, 1 = bwd half
    of the previous layer's output), W_hh [2, H, 4H], combined bias b_ih + b_hh.
    Matmul weights in bf16 for the MXU, bias in f32.
    """
    params = []
    H = hidden_dim
    bound = 1.0 / float(H) ** 0.5
    for l in range(num_layers):
        n_in = 1 if l == 0 else 2
        DI = input_dim if l == 0 else H
        key, k1, k2, k3, k4 = jax.random.split(key, 5)
        w_ih = jax.random.uniform(k1, (2 * n_in, DI, 4 * H),
                                  jnp.float32, -bound, bound)
        w_hh = jax.random.uniform(k2, (2, H, 4 * H),
                                  jnp.float32, -bound, bound)
        b_ih = jax.random.uniform(k3, (2, 4 * H), jnp.float32, -bound, bound)
        b_hh = jax.random.uniform(k4, (2, 4 * H), jnp.float32, -bound, bound)
        params.append((w_ih.astype(jnp.bfloat16),
                       w_hh.astype(jnp.bfloat16),
                       b_ih + b_hh))
    return params


def encoder_forward(x_bsd, params, hidden_dim, num_layers,
                    result_padding=True, chunk=None):
    """Mirrors Encoder.forward semantics (padded path)."""
    B, S, D_in = x_bsd.shape
    Bp = max(16, ((B + 15) // 16) * 16)       # pad batch to bf16 sublane multiple
    x_tm = jnp.transpose(x_bsd, (1, 0, 2))    # [S, B, D] time-major
    if Bp != B:
        x_tm = jnp.pad(x_tm, ((0, 0), (0, Bp - B), (0, 0)))
    inputs = (x_tm.reshape(S * Bp, D_in).astype(jnp.bfloat16),)

    h_list, c_list = [], []
    out_f = out_b = None
    for l in range(num_layers):
        w_ih, w_hh, b = params[l]
        last = (l == num_layers - 1)
        out_dtype = jnp.float32 if last else jnp.bfloat16   # bf16 activation stream
        out_f, out_b, h_n, c_n = bilstm_layer(
            inputs, w_ih, w_hh, b, hidden_dim=hidden_dim, batch_pad=Bp,
            seq_len=S, out_dtype=out_dtype, chunk=chunk)
        h_list.append(h_n)                                   # [2, Bp, H]
        c_list.append(c_n)
        inputs = (out_f, out_b)       # next layer consumes fwd/bwd slabs directly

    # __concatOutputTwoDirectionLSTM: cat((x[:,:,0], x[:,:,1]), dim=2),
    # done once on the final layer only.
    out_f = out_f.reshape(S, Bp, hidden_dim)
    out_b = out_b.reshape(S, Bp, hidden_dim)
    output = jnp.transpose(jnp.concatenate([out_f, out_b], axis=-1),
                           (1, 0, 2))[:B]                    # [B, S, 2H]

    seq_lengths = jnp.full((B,), S, dtype=jnp.int32)
    h_n_all = jnp.concatenate(h_list, axis=0)[:, :B]         # [2*num_layers, B, H]
    c_n_all = jnp.concatenate(c_list, axis=0)[:, :B]
    hidden_state = (h_n_all, c_n_all)

    if result_padding:
        return output, seq_lengths, hidden_state
    # unpadded path: list of per-sentence tensors (all full length here)
    return [output[i, :int(seq_lengths[i])] for i in range(B)], None, hidden_state


if __name__ == "__main__":
    BATCH, SEQ = 2, 8
    INPUT_DIM, HIDDEN_DIM, RNN_LAYERS = 16, 32, 3

    key = jax.random.PRNGKey(0)
    k_x, k_p = jax.random.split(key)
    x = jax.random.normal(k_x, (BATCH, SEQ, INPUT_DIM), jnp.float32)
    params = init_encoder_params(k_p, INPUT_DIM, HIDDEN_DIM, RNN_LAYERS)

    output, seq_lens, (h_n, c_n) = encoder_forward(x, params, HIDDEN_DIM, RNN_LAYERS)
    jax.block_until_ready((output, seq_lens, h_n, c_n))

    assert output.shape == (BATCH, SEQ, 2 * HIDDEN_DIM), output.shape
    assert seq_lens.shape == (BATCH,)
    assert h_n.shape == (2 * RNN_LAYERS, BATCH, HIDDEN_DIM), h_n.shape
    assert c_n.shape == (2 * RNN_LAYERS, BATCH, HIDDEN_DIM), c_n.shape
    assert bool(jnp.all(jnp.isfinite(output)))
    # Consistency: top-layer final fwd state == output at last step (fwd half),
    # top-layer final bwd state == output at first step (bwd half).
    top = 2 * (RNN_LAYERS - 1)
    assert bool(jnp.allclose(output[:, -1, :HIDDEN_DIM], h_n[top], atol=1e-5))
    assert bool(jnp.allclose(output[:, 0, HIDDEN_DIM:], h_n[top + 1], atol=1e-5))
    print("KERNEL_OK")
</pallas_src>

<mosaic_0001>
module attributes {stable_mosaic.version = 11 : i64} {
  func.func @_bilstm_chunk_kernel(%arg0: i32, %arg1: memref<128x16xbf16, #tpu.memory_space<vmem>>, %arg2: memref<128x16xbf16, #tpu.memory_space<vmem>>, %arg3: memref<2x16x128xbf16, #tpu.memory_space<vmem>>, %arg4: memref<2x32x128xbf16, #tpu.memory_space<vmem>>, %arg5: memref<2x128xf32, #tpu.memory_space<vmem>>, %arg6: memref<128x32xbf16, #tpu.memory_space<vmem>>, %arg7: memref<128x32xbf16, #tpu.memory_space<vmem>>, %arg8: memref<2x16x32xf32, #tpu.memory_space<vmem>>, %arg9: memref<2x16x32xf32, #tpu.memory_space<vmem>>, %arg10: memref<128x128xf32, #tpu.memory_space<vmem>>, %arg11: memref<128x128xf32, #tpu.memory_space<vmem>>) attributes {dimension_semantics = [#tpu.dimension_semantics<arbitrary>], iteration_bounds = array<i64: 1>, scalar_prefetch = 0 : i64, scratch_operands = 2 : i64, tpu.core_type = #tpu.core_type<tc>, window_params = [{transform_indices = @transform_0, window_bounds = array<i64: 128, 16>}, {transform_indices = @transform_1, window_bounds = array<i64: 128, 16>}, {pipeline_mode = #tpu.pipeline_mode<synchronous>, transform_indices = @transform_2, window_bounds = array<i64: 2, 16, 128>}, {pipeline_mode = #tpu.pipeline_mode<synchronous>, transform_indices = @transform_3, window_bounds = array<i64: 2, 32, 128>}, {pipeline_mode = #tpu.pipeline_mode<synchronous>, transform_indices = @transform_4, window_bounds = array<i64: 2, 128>}, {transform_indices = @transform_5, window_bounds = array<i64: 128, 32>}, {transform_indices = @transform_6, window_bounds = array<i64: 128, 32>}, {pipeline_mode = #tpu.pipeline_mode<synchronous>, transform_indices = @transform_7, window_bounds = array<i64: 2, 16, 32>}, {pipeline_mode = #tpu.pipeline_mode<synchronous>, transform_indices = @transform_8, window_bounds = array<i64: 2, 16, 32>}]} {
    %c0_i32 = arith.constant 0 : i32
    %0 = arith.cmpi eq, %arg0, %c0_i32 : i32
    %1 = arith.extui %0 : i1 to i32
    %c0_i32_0 = arith.constant 0 : i32
    %2 = arith.cmpi ne, %1, %c0_i32_0 : i32
    scf.if %2 {
      %cst_169 = arith.constant 0.000000e+00 : f32
      %539 = vector.broadcast %cst_169 : f32 to vector<2x16x32xf32>
      %c0_170 = arith.constant 0 : index
      %c0_171 = arith.constant 0 : index
      %c0_172 = arith.constant 0 : index
      %540 = vector.load %arg8[%c0_170, %c0_171, %c0_172] : memref<2x16x32xf32, #tpu.memory_space<vmem>>, vector<2x16x32xf32>
      tpu.vector_store %arg8[%c0_170, %c0_171, %c0_172], %539 {strides = array<i32>} : memref<2x16x32xf32, #tpu.memory_space<vmem>>, vector<2x16x32xf32>,
      %cst_173 = arith.constant 0.000000e+00 : f32
      %541 = vector.broadcast %cst_173 : f32 to vector<2x16x32xf32>
      %c0_174 = arith.constant 0 : index
      %c0_175 = arith.constant 0 : index
      %c0_176 = arith.constant 0 : index
      %542 = vector.load %arg9[%c0_174, %c0_175, %c0_176] : memref<2x16x32xf32, #tpu.memory_space<vmem>>, vector<2x16x32xf32>
      tpu.vector_store %arg9[%c0_174, %c0_175, %c0_176], %541 {strides = array<i32>} : memref<2x16x32xf32, #tpu.memory_space<vmem>>, vector<2x16x32xf32>,
    } else {
    }
    %c0 = arith.constant 0 : index
    %c0_1 = arith.constant 0 : index
    %3 = vector.load %arg1[%c0, %c0_1] : memref<128x16xbf16, #tpu.memory_space<vmem>>, vector<128x16xbf16>
    %c0_2 = arith.constant 0 : index
    %c0_3 = arith.constant 0 : index
    %c0_4 = arith.constant 0 : index
    %4 = vector.load %arg3[%c0_2, %c0_3, %c0_4] : memref<2x16x128xbf16, #tpu.memory_space<vmem>>, vector<1x16x128xbf16>
    %5 = vector.shape_cast %4 : vector<1x16x128xbf16> to vector<16x128xbf16>
    %cst = arith.constant dense<0.000000e+00> : vector<128x128xf32>
    %6 = tpu.matmul %3, %5, %cst {dimension_numbers = #tpu.dot_dimension_numbers<[1], [0], [0], [1], [0, 0, 1, 1], [], []>} : vector<128x16xbf16>, vector<16x128xbf16>, vector<128x128xf32> -> vector<128x128xf32>
    %c0_5 = arith.constant 0 : index
    %c0_6 = arith.constant 0 : index
    %7 = vector.load %arg5[%c0_5, %c0_6] : memref<2x128xf32, #tpu.memory_space<vmem>>, vector<1x128xf32>
    %8 = vector.broadcast %7 : vector<1x128xf32> to vector<128x128xf32>
    %9 = arith.addf %6, %8 : vector<128x128xf32>
    %c0_7 = arith.constant 0 : index
    %c0_8 = arith.constant 0 : index
    %10 = vector.load %arg10[%c0_7, %c0_8] : memref<128x128xf32, #tpu.memory_space<vmem>>, vector<128x128xf32>
    tpu.vector_store %arg10[%c0_7, %c0_8], %9 {strides = array<i32>} : memref<128x128xf32, #tpu.memory_space<vmem>>, vector<128x128xf32>,
    %c0_9 = arith.constant 0 : index
    %c0_10 = arith.constant 0 : index
    %11 = vector.load %arg2[%c0_9, %c0_10] : memref<128x16xbf16, #tpu.memory_space<vmem>>, vector<128x16xbf16>
    %c1 = arith.constant 1 : index
    %c0_11 = arith.constant 0 : index
    %c0_12 = arith.constant 0 : index
    %12 = vector.load %arg3[%c1, %c0_11, %c0_12] : memref<2x16x128xbf16, #tpu.memory_space<vmem>>, vector<1x16x128xbf16>
    %13 = vector.shape_cast %12 : vector<1x16x128xbf16> to vector<16x128xbf16>
    %cst_13 = arith.constant dense<0.000000e+00> : vector<128x128xf32>
    %14 = tpu.matmul %11, %13, %cst_13 {dimension_numbers = #tpu.dot_dimension_numbers<[1], [0], [0], [1], [0, 0, 1, 1], [], []>} : vector<128x16xbf16>, vector<16x128xbf16>, vector<128x128xf32> -> vector<128x128xf32>
    %c1_14 = arith.constant 1 : index
    %c0_15 = arith.constant 0 : index
    %15 = vector.load %arg5[%c1_14, %c0_15] : memref<2x128xf32, #tpu.memory_space<vmem>>, vector<1x128xf32>
    %16 = vector.broadcast %15 : vector<1x128xf32> to vector<128x128xf32>
    %17 = arith.addf %14, %16 : vector<128x128xf32>
    %c0_16 = arith.constant 0 : index
    %c0_17 = arith.constant 0 : index
    %18 = vector.load %arg11[%c0_16, %c0_17] : memref<128x128xf32, #tpu.memory_space<vmem>>, vector<128x128xf32>
    tpu.vector_store %arg11[%c0_16, %c0_17], %17 {strides = array<i32>} : memref<128x128xf32, #tpu.memory_space<vmem>>, vector<128x128xf32>,
    %c0_18 = arith.constant 0 : index
    %c0_19 = arith.constant 0 : index
    %c0_20 = arith.constant 0 : index
    %19 = vector.load %arg4[%c0_18, %c0_19, %c0_20] : memref<2x32x128xbf16, #tpu.memory_space<vmem>>, vector<1x32x128xbf16>
    %20 = vector.shape_cast %19 : vector<1x32x128xbf16> to vector<32x128xbf16>
    %c1_21 = arith.constant 1 : index
    %c0_22 = arith.constant 0 : index
    %c0_23 = arith.constant 0 : index
    %21 = vector.load %arg4[%c1_21, %c0_22, %c0_23] : memref<2x32x128xbf16, #tpu.memory_space<vmem>>, vector<1x32x128xbf16>
    %22 = vector.shape_cast %21 : vector<1x32x128xbf16> to vector<32x128xbf16>
    %c0_24 = arith.constant 0 : index
    %c0_25 = arith.constant 0 : index
    %c0_26 = arith.constant 0 : index
    %23 = vector.load %arg8[%c0_24, %c0_25, %c0_26] : memref<2x16x32xf32, #tpu.memory_space<vmem>>, vector<1x16x32xf32>
    %24 = vector.shape_cast %23 : vector<1x16x32xf32> to vector<16x32xf32>
    %c0_27 = arith.constant 0 : index
    %c0_28 = arith.constant 0 : index
    %c0_29 = arith.constant 0 : index
    %25 = vector.load %arg9[%c0_27, %c0_28, %c0_29] : memref<2x16x32xf32, #tpu.memory_space<vmem>>, vector<1x16x32xf32>
    %26 = vector.shape_cast %25 : vector<1x16x32xf32> to vector<16x32xf32>
    %c1_30 = arith.constant 1 : index
    %c0_31 = arith.constant 0 : index
    %c0_32 = arith.constant 0 : index
    %27 = vector.load %arg8[%c1_30, %c0_31, %c0_32] : memref<2x16x32xf32, #tpu.memory_space<vmem>>, vector<1x16x32xf32>
    %28 = vector.shape_cast %27 : vector<1x16x32xf32> to vector<16x32xf32>
    %c1_33 = arith.constant 1 : index
    %c0_34 = arith.constant 0 : index
    %c0_35 = arith.constant 0 : index
    %29 = vector.load %arg9[%c1_33, %c0_34, %c0_35] : memref<2x16x32xf32, #tpu.memory_space<vmem>>, vector<1x16x32xf32>
    %30 = vector.shape_cast %29 : vector<1x16x32xf32> to vector<16x32xf32>
    %c0_36 = arith.constant 0 : index
    %c0_37 = arith.constant 0 : index
    %31 = vector.load %arg10[%c0_36, %c0_37] : memref<128x128xf32, #tpu.memory_space<vmem>>, vector<16x128xf32>
    %32 = arith.truncf %24 : vector<16x32xf32> to vector<16x32xbf16>
    %cst_38 = arith.constant dense<0.000000e+00> : vector<16x128xf32>
    %33 = tpu.matmul %32, %20, %cst_38 {dimension_numbers = #tpu.dot_dimension_numbers<[1], [0], [0], [1], [0, 0, 1, 1], [], []>} : vector<16x32xbf16>, vector<32x128xbf16>, vector<16x128xf32> -> vector<16x128xf32>
    %34 = arith.addf %31, %33 : vector<16x128xf32>
    %35 = vector.extract_strided_slice %34 {offsets = [0, 0], sizes = [16, 32], strides = [1, 1]} : vector<16x128xf32> to vector<16x32xf32>
    %36 = arith.negf %35 : vector<16x32xf32>
    %37 = math.exp %36 : vector<16x32xf32>
    %cst_39 = arith.constant 1.000000e+00 : f32
    %38 = vector.broadcast %cst_39 : f32 to vector<16x32xf32>
    %39 = arith.addf %38, %37 : vector<16x32xf32>
    %40 = arith.divf %38, %39 : vector<16x32xf32>
    %41 = vector.extract_strided_slice %34 {offsets = [0, 32], sizes = [16, 32], strides = [1, 1]} : vector<16x128xf32> to vector<16x32xf32>
    %42 = arith.negf %41 : vector<16x32xf32>
    %43 = math.exp %42 : vector<16x32xf32>
    %cst_40 = arith.constant 1.000000e+00 : f32
    %44 = vector.broadcast %cst_40 : f32 to vector<16x32xf32>
    %45 = arith.addf %44, %43 : vector<16x32xf32>
    %46 = arith.divf %44, %45 : vector<16x32xf32>
    %47 = vector.extract_strided_slice %34 {offsets = [0, 64], sizes = [16, 32], strides = [1, 1]} : vector<16x128xf32> to vector<16x32xf32>
    %48 = math.tanh %47 : vector<16x32xf32>
    %49 = vector.extract_strided_slice %34 {offsets = [0, 96], sizes = [16, 32], strides = [1, 1]} : vector<16x128xf32> to vector<16x32xf32>
    %50 = arith.negf %49 : vector<16x32xf32>
    %51 = math.exp %50 : vector<16x32xf32>
    %cst_41 = arith.constant 1.000000e+00 : f32
    %52 = vector.broadcast %cst_41 : f32 to vector<16x32xf32>
    %53 = arith.addf %52, %51 : vector<16x32xf32>
    %54 = arith.divf %52, %53 : vector<16x32xf32>
    %55 = arith.mulf %46, %26 : vector<16x32xf32>
    %56 = arith.mulf %40, %48 : vector<16x32xf32>
    %57 = arith.addf %55, %56 : vector<16x32xf32>
    %58 = math.tanh %57 : vector<16x32xf32>
    %59 = arith.mulf %54, %58 : vector<16x32xf32>
    %c112 = arith.constant 112 : index
    %c0_42 = arith.constant 0 : index
    %60 = vector.load %arg11[%c112, %c0_42] : memref<128x128xf32, #tpu.memory_space<vmem>>, vector<16x128xf32>
    %61 = arith.truncf %28 : vector<16x32xf32> to vector<16x32xbf16>
    %cst_43 = arith.constant dense<0.000000e+00> : vector<16x128xf32>
    %62 = tpu.matmul %61, %22, %cst_43 {dimension_numbers = #tpu.dot_dimension_numbers<[1], [0], [0], [1], [0, 0, 1, 1], [], []>} : vector<16x32xbf16>, vector<32x128xbf16>, vector<16x128xf32> -> vector<16x128xf32>
    %63 = arith.addf %60, %62 : vector<16x128xf32>
    %64 = vector.extract_strided_slice %63 {offsets = [0, 0], sizes = [16, 32], strides = [1, 1]} : vector<16x128xf32> to vector<16x32xf32>
    %65 = arith.negf %64 : vector<16x32xf32>
    %66 = math.exp %65 : vector<16x32xf32>
    %cst_44 = arith.constant 1.000000e+00 : f32
    %67 = vector.broadcast %cst_44 : f32 to vector<16x32xf32>
    %68 = arith.addf %67, %66 : vector<16x32xf32>
    %69 = arith.divf %67, %68 : vector<16x32xf32>
    %70 = vector.extract_strided_slice %63 {offsets = [0, 32], sizes = [16, 32], strides = [1, 1]} : vector<16x128xf32> to vector<16x32xf32>
    %71 = arith.negf %70 : vector<16x32xf32>
    %72 = math.exp %71 : vector<16x32xf32>
    %cst_45 = arith.constant 1.000000e+00 : f32
    %73 = vector.broadcast %cst_45 : f32 to vector<16x32xf32>
    %74 = arith.addf %73, %72 : vector<16x32xf32>
    %75 = arith.divf %73, %74 : vector<16x32xf32>
    %76 = vector.extract_strided_slice %63 {offsets = [0, 64], sizes = [16, 32], strides = [1, 1]} : vector<16x128xf32> to vector<16x32xf32>
    %77 = math.tanh %76 : vector<16x32xf32>
    %78 = vector.extract_strided_slice %63 {offsets = [0, 96], sizes = [16, 32], strides = [1, 1]} : vector<16x128xf32> to vector<16x32xf32>
    %79 = arith.negf %78 : vector<16x32xf32>
    %80 = math.exp %79 : vector<16x32xf32>
    %cst_46 = arith.constant 1.000000e+00 : f32
    %81 = vector.broadcast %cst_46 : f32 to vector<16x32xf32>
    %82 = arith.addf %81, %80 : vector<16x32xf32>
    %83 = arith.divf %81, %82 : vector<16x32xf32>
    %84 = arith.mulf %75, %30 : vector<16x32xf32>
    %85 = arith.mulf %69, %77 : vector<16x32xf32>
    %86 = arith.addf %84, %85 : vector<16x32xf32>
    %87 = math.tanh %86 : vector<16x32xf32>
    %88 = arith.mulf %83, %87 : vector<16x32xf32>
    %89 = arith.truncf %59 : vector<16x32xf32> to vector<16x32xbf16>
    %c0_47 = arith.constant 0 : index
    %c0_48 = arith.constant 0 : index
    %90 = vector.load %arg6[%c0_47, %c0_48] : memref<128x32xbf16, #tpu.memory_space<vmem>>, vector<16x32xbf16>
    tpu.vector_store %arg6[%c0_47, %c0_48], %89 {strides = array<i32>} : memref<128x32xbf16, #tpu.memory_space<vmem>>, vector<16x32xbf16>,
    %91 = arith.truncf %88 : vector<16x32xf32> to vector<16x32xbf16>
    %c112_49 = arith.constant 112 : index
    %c0_50 = arith.constant 0 : index
    %92 = vector.load %arg7[%c112_49, %c0_50] : memref<128x32xbf16, #tpu.memory_space<vmem>>, vector<16x32xbf16>
    tpu.vector_store %arg7[%c112_49, %c0_50], %91 {strides = array<i32>} : memref<128x32xbf16, #tpu.memory_space<vmem>>, vector<16x32xbf16>,
    %c16 = arith.constant 16 : index
    %c0_51 = arith.constant 0 : index
    %93 = vector.load %arg10[%c16, %c0_51] : memref<128x128xf32, #tpu.memory_space<vmem>>, vector<16x128xf32>
    %94 = arith.truncf %59 : vector<16x32xf32> to vector<16x32xbf16>
    %cst_52 = arith.constant dense<0.000000e+00> : vector<16x128xf32>
    %95 = tpu.matmul %94, %20, %cst_52 {dimension_numbers = #tpu.dot_dimension_numbers<[1], [0], [0], [1], [0, 0, 1, 1], [], []>} : vector<16x32xbf16>, vector<32x128xbf16>, vector<16x128xf32> -> vector<16x128xf32>
    %96 = arith.addf %93, %95 : vector<16x128xf32>
    %97 = vector.extract_strided_slice %96 {offsets = [0, 0], sizes = [16, 32], strides = [1, 1]} : vector<16x128xf32> to vector<16x32xf32>
    %98 = arith.negf %97 : vector<16x32xf32>
    %99 = math.exp %98 : vector<16x32xf32>
    %cst_53 = arith.constant 1.000000e+00 : f32
    %100 = vector.broadcast %cst_53 : f32 to vector<16x32xf32>
    %101 = arith.addf %100, %99 : vector<16x32xf32>
    %102 = arith.divf %100, %101 : vector<16x32xf32>
    %103 = vector.extract_strided_slice %96 {offsets = [0, 32], sizes = [16, 32], strides = [1, 1]} : vector<16x128xf32> to vector<16x32xf32>
    %104 = arith.negf %103 : vector<16x32xf32>
    %105 = math.exp %104 : vector<16x32xf32>
    %cst_54 = arith.constant 1.000000e+00 : f32
    %106 = vector.broadcast %cst_54 : f32 to vector<16x32xf32>
    %107 = arith.addf %106, %105 : vector<16x32xf32>
    %108 = arith.divf %106, %107 : vector<16x32xf32>
    %109 = vector.extract_strided_slice %96 {offsets = [0, 64], sizes = [16, 32], strides = [1, 1]} : vector<16x128xf32> to vector<16x32xf32>
    %110 = math.tanh %109 : vector<16x32xf32>
    %111 = vector.extract_strided_slice %96 {offsets = [0, 96], sizes = [16, 32], strides = [1, 1]} : vector<16x128xf32> to vector<16x32xf32>
    %112 = arith.negf %111 : vector<16x32xf32>
    %113 = math.exp %112 : vector<16x32xf32>
    %cst_55 = arith.constant 1.000000e+00 : f32
    %114 = vector.broadcast %cst_55 : f32 to vector<16x32xf32>
    %115 = arith.addf %114, %113 : vector<16x32xf32>
    %116 = arith.divf %114, %115 : vector<16x32xf32>
    %117 = arith.mulf %108, %57 : vector<16x32xf32>
    %118 = arith.mulf %102, %110 : vector<16x32xf32>
    %119 = arith.addf %117, %118 : vector<16x32xf32>
    %120 = math.tanh %119 : vector<16x32xf32>
    %121 = arith.mulf %116, %120 : vector<16x32xf32>
    %c96 = arith.constant 96 : index
    %c0_56 = arith.constant 0 : index
    %122 = vector.load %arg11[%c96, %c0_56] : memref<128x128xf32, #tpu.memory_space<vmem>>, vector<16x128xf32>
    %123 = arith.truncf %88 : vector<16x32xf32> to vector<16x32xbf16>
    %cst_57 = arith.constant dense<0.000000e+00> : vector<16x128xf32>
    %124 = tpu.matmul %123, %22, %cst_57 {dimension_numbers = #tpu.dot_dimension_numbers<[1], [0], [0], [1], [0, 0, 1, 1], [], []>} : vector<16x32xbf16>, vector<32x128xbf16>, vector<16x128xf32> -> vector<16x128xf32>
    %125 = arith.addf %122, %124 : vector<16x128xf32>
    %126 = vector.extract_strided_slice %125 {offsets = [0, 0], sizes = [16, 32], strides = [1, 1]} : vector<16x128xf32> to vector<16x32xf32>
    %127 = arith.negf %126 : vector<16x32xf32>
    %128 = math.exp %127 : vector<16x32xf32>
    %cst_58 = arith.constant 1.000000e+00 : f32
    %129 = vector.broadcast %cst_58 : f32 to vector<16x32xf32>
    %130 = arith.addf %129, %128 : vector<16x32xf32>
    %131 = arith.divf %129, %130 : vector<16x32xf32>
    %132 = vector.extract_strided_slice %125 {offsets = [0, 32], sizes = [16, 32], strides = [1, 1]} : vector<16x128xf32> to vector<16x32xf32>
    %133 = arith.negf %132 : vector<16x32xf32>
    %134 = math.exp %133 : vector<16x32xf32>
    %cst_59 = arith.constant 1.000000e+00 : f32
    %135 = vector.broadcast %cst_59 : f32 to vector<16x32xf32>
    %136 = arith.addf %135, %134 : vector<16x32xf32>
    %137 = arith.divf %135, %136 : vector<16x32xf32>
    %138 = vector.extract_strided_slice %125 {offsets = [0, 64], sizes = [16, 32], strides = [1, 1]} : vector<16x128xf32> to vector<16x32xf32>
    %139 = math.tanh %138 : vector<16x32xf32>
    %140 = vector.extract_strided_slice %125 {offsets = [0, 96], sizes = [16, 32], strides = [1, 1]} : vector<16x128xf32> to vector<16x32xf32>
    %141 = arith.negf %140 : vector<16x32xf32>
    %142 = math.exp %141 : vector<16x32xf32>
    %cst_60 = arith.constant 1.000000e+00 : f32
    %143 = vector.broadcast %cst_60 : f32 to vector<16x32xf32>
    %144 = arith.addf %143, %142 : vector<16x32xf32>
    %145 = arith.divf %143, %144 : vector<16x32xf32>
    %146 = arith.mulf %137, %86 : vector<16x32xf32>
    %147 = arith.mulf %131, %139 : vector<16x32xf32>
    %148 = arith.addf %146, %147 : vector<16x32xf32>
    %149 = math.tanh %148 : vector<16x32xf32>
    %150 = arith.mulf %145, %149 : vector<16x32xf32>
    %151 = arith.truncf %121 : vector<16x32xf32> to vector<16x32xbf16>
    %c16_61 = arith.constant 16 : index
    %c0_62 = arith.constant 0 : index
    %152 = vector.load %arg6[%c16_61, %c0_62] : memref<128x32xbf16, #tpu.memory_space<vmem>>, vector<16x32xbf16>
    tpu.vector_store %arg6[%c16_61, %c0_62], %151 {strides = array<i32>} : memref<128x32xbf16, #tpu.memory_space<vmem>>, vector<16x32xbf16>,
    %153 = arith.truncf %150 : vector<16x32xf32> to vector<16x32xbf16>
    %c96_63 = arith.constant 96 : index
    %c0_64 = arith.constant 0 : index
    %154 = vector.load %arg7[%c96_63, %c0_64] : memref<128x32xbf16, #tpu.memory_space<vmem>>, vector<16x32xbf16>
    tpu.vector_store %arg7[%c96_63, %c0_64], %153 {strides = array<i32>} : memref<128x32xbf16, #tpu.memory_space<vmem>>, vector<16x32xbf16>,
    %c32 = arith.constant 32 : index
    %c0_65 = arith.constant 0 : index
    %155 = vector.load %arg10[%c32, %c0_65] : memref<128x128xf32, #tpu.memory_space<vmem>>, vector<16x128xf32>
    %156 = arith.truncf %121 : vector<16x32xf32> to vector<16x32xbf16>
    %cst_66 = arith.constant dense<0.000000e+00> : vector<16x128xf32>
    %157 = tpu.matmul %156, %20, %cst_66 {dimension_numbers = #tpu.dot_dimension_numbers<[1], [0], [0], [1], [0, 0, 1, 1], [], []>} : vector<16x32xbf16>, vector<32x128xbf16>, vector<16x128xf32> -> vector<16x128xf32>
    %158 = arith.addf %155, %157 : vector<16x128xf32>
    %159 = vector.extract_strided_slice %158 {offsets = [0, 0], sizes = [16, 32], strides = [1, 1]} : vector<16x128xf32> to vector<16x32xf32>
    %160 = arith.negf %159 : vector<16x32xf32>
    %161 = math.exp %160 : vector<16x32xf32>
    %cst_67 = arith.constant 1.000000e+00 : f32
    %162 = vector.broadcast %cst_67 : f32 to vector<16x32xf32>
    %163 = arith.addf %162, %161 : vector<16x32xf32>
    %164 = arith.divf %162, %163 : vector<16x32xf32>
    %165 = vector.extract_strided_slice %158 {offsets = [0, 32], sizes = [16, 32], strides = [1, 1]} : vector<16x128xf32> to vector<16x32xf32>
    %166 = arith.negf %165 : vector<16x32xf32>
    %167 = math.exp %166 : vector<16x32xf32>
    %cst_68 = arith.constant 1.000000e+00 : f32
    %168 = vector.broadcast %cst_68 : f32 to vector<16x32xf32>
    %169 = arith.addf %168, %167 : vector<16x32xf32>
    %170 = arith.divf %168, %169 : vector<16x32xf32>
    %171 = vector.extract_strided_slice %158 {offsets = [0, 64], sizes = [16, 32], strides = [1, 1]} : vector<16x128xf32> to vector<16x32xf32>
    %172 = math.tanh %171 : vector<16x32xf32>
    %173 = vector.extract_strided_slice %158 {offsets = [0, 96], sizes = [16, 32], strides = [1, 1]} : vector<16x128xf32> to vector<16x32xf32>
    %174 = arith.negf %173 : vector<16x32xf32>
    %175 = math.exp %174 : vector<16x32xf32>
    %cst_69 = arith.constant 1.000000e+00 : f32
    %176 = vector.broadcast %cst_69 : f32 to vector<16x32xf32>
    %177 = arith.addf %176, %175 : vector<16x32xf32>
    %178 = arith.divf %176, %177 : vector<16x32xf32>
    %179 = arith.mulf %170, %119 : vector<16x32xf32>
    %180 = arith.mulf %164, %172 : vector<16x32xf32>
    %181 = arith.addf %179, %180 : vector<16x32xf32>
    %182 = math.tanh %181 : vector<16x32xf32>
    %183 = arith.mulf %178, %182 : vector<16x32xf32>
    %c80 = arith.constant 80 : index
    %c0_70 = arith.constant 0 : index
    %184 = vector.load %arg11[%c80, %c0_70] : memref<128x128xf32, #tpu.memory_space<vmem>>, vector<16x128xf32>
    %185 = arith.truncf %150 : vector<16x32xf32> to vector<16x32xbf16>
    %cst_71 = arith.constant dense<0.000000e+00> : vector<16x128xf32>
    %186 = tpu.matmul %185, %22, %cst_71 {dimension_numbers = #tpu.dot_dimension_numbers<[1], [0], [0], [1], [0, 0, 1, 1], [], []>} : vector<16x32xbf16>, vector<32x128xbf16>, vector<16x128xf32> -> vector<16x128xf32>
    %187 = arith.addf %184, %186 : vector<16x128xf32>
    %188 = vector.extract_strided_slice %187 {offsets = [0, 0], sizes = [16, 32], strides = [1, 1]} : vector<16x128xf32> to vector<16x32xf32>
    %189 = arith.negf %188 : vector<16x32xf32>
    %190 = math.exp %189 : vector<16x32xf32>
    %cst_72 = arith.constant 1.000000e+00 : f32
    %191 = vector.broadcast %cst_72 : f32 to vector<16x32xf32>
    %192 = arith.addf %191, %190 : vector<16x32xf32>
    %193 = arith.divf %191, %192 : vector<16x32xf32>
    %194 = vector.extract_strided_slice %187 {offsets = [0, 32], sizes = [16, 32], strides = [1, 1]} : vector<16x128xf32> to vector<16x32xf32>
    %195 = arith.negf %194 : vector<16x32xf32>
    %196 = math.exp %195 : vector<16x32xf32>
    %cst_73 = arith.constant 1.000000e+00 : f32
    %197 = vector.broadcast %cst_73 : f32 to vector<16x32xf32>
    %198 = arith.addf %197, %196 : vector<16x32xf32>
    %199 = arith.divf %197, %198 : vector<16x32xf32>
    %200 = vector.extract_strided_slice %187 {offsets = [0, 64], sizes = [16, 32], strides = [1, 1]} : vector<16x128xf32> to vector<16x32xf32>
    %201 = math.tanh %200 : vector<16x32xf32>
    %202 = vector.extract_strided_slice %187 {offsets = [0, 96], sizes = [16, 32], strides = [1, 1]} : vector<16x128xf32> to vector<16x32xf32>
    %203 = arith.negf %202 : vector<16x32xf32>
    %204 = math.exp %203 : vector<16x32xf32>
    %cst_74 = arith.constant 1.000000e+00 : f32
    %205 = vector.broadcast %cst_74 : f32 to vector<16x32xf32>
    %206 = arith.addf %205, %204 : vector<16x32xf32>
    %207 = arith.divf %205, %206 : vector<16x32xf32>
    %208 = arith.mulf %199, %148 : vector<16x32xf32>
    %209 = arith.mulf %193, %201 : vector<16x32xf32>
    %210 = arith.addf %208, %209 : vector<16x32xf32>
    %211 = math.tanh %210 : vector<16x32xf32>
    %212 = arith.mulf %207, %211 : vector<16x32xf32>
    %213 = arith.truncf %183 : vector<16x32xf32> to vector<16x32xbf16>
    %c32_75 = arith.constant 32 : index
    %c0_76 = arith.constant 0 : index
    %214 = vector.load %arg6[%c32_75, %c0_76] : memref<128x32xbf16, #tpu.memory_space<vmem>>, vector<16x32xbf16>
    tpu.vector_store %arg6[%c32_75, %c0_76], %213 {strides = array<i32>} : memref<128x32xbf16, #tpu.memory_space<vmem>>, vector<16x32xbf16>,
    %215 = arith.truncf %212 : vector<16x32xf32> to vector<16x32xbf16>
    %c80_77 = arith.constant 80 : index
    %c0_78 = arith.constant 0 : index
    %216 = vector.load %arg7[%c80_77, %c0_78] : memref<128x32xbf16, #tpu.memory_space<vmem>>, vector<16x32xbf16>
    tpu.vector_store %arg7[%c80_77, %c0_78], %215 {strides = array<i32>} : memref<128x32xbf16, #tpu.memory_space<vmem>>, vector<16x32xbf16>,
    %c48 = arith.constant 48 : index
    %c0_79 = arith.constant 0 : index
    %217 = vector.load %arg10[%c48, %c0_79] : memref<128x128xf32, #tpu.memory_space<vmem>>, vector<16x128xf32>
    %218 = arith.truncf %183 : vector<16x32xf32> to vector<16x32xbf16>
    %cst_80 = arith.constant dense<0.000000e+00> : vector<16x128xf32>
    %219 = tpu.matmul %218, %20, %cst_80 {dimension_numbers = #tpu.dot_dimension_numbers<[1], [0], [0], [1], [0, 0, 1, 1], [], []>} : vector<16x32xbf16>, vector<32x128xbf16>, vector<16x128xf32> -> vector<16x128xf32>
    %220 = arith.addf %217, %219 : vector<16x128xf32>
    %221 = vector.extract_strided_slice %220 {offsets = [0, 0], sizes = [16, 32], strides = [1, 1]} : vector<16x128xf32> to vector<16x32xf32>
    %222 = arith.negf %221 : vector<16x32xf32>
    %223 = math.exp %222 : vector<16x32xf32>
    %cst_81 = arith.constant 1.000000e+00 : f32
    %224 = vector.broadcast %cst_81 : f32 to vector<16x32xf32>
    %225 = arith.addf %224, %223 : vector<16x32xf32>
    %226 = arith.divf %224, %225 : vector<16x32xf32>
    %227 = vector.extract_strided_slice %220 {offsets = [0, 32], sizes = [16, 32], strides = [1, 1]} : vector<16x128xf32> to vector<16x32xf32>
    %228 = arith.negf %227 : vector<16x32xf32>
    %229 = math.exp %228 : vector<16x32xf32>
    %cst_82 = arith.constant 1.000000e+00 : f32
    %230 = vector.broadcast %cst_82 : f32 to vector<16x32xf32>
    %231 = arith.addf %230, %229 : vector<16x32xf32>
    %232 = arith.divf %230, %231 : vector<16x32xf32>
    %233 = vector.extract_strided_slice %220 {offsets = [0, 64], sizes = [16, 32], strides = [1, 1]} : vector<16x128xf32> to vector<16x32xf32>
    %234 = math.tanh %233 : vector<16x32xf32>
    %235 = vector.extract_strided_slice %220 {offsets = [0, 96], sizes = [16, 32], strides = [1, 1]} : vector<16x128xf32> to vector<16x32xf32>
    %236 = arith.negf %235 : vector<16x32xf32>
    %237 = math.exp %236 : vector<16x32xf32>
    %cst_83 = arith.constant 1.000000e+00 : f32
    %238 = vector.broadcast %cst_83 : f32 to vector<16x32xf32>
    %239 = arith.addf %238, %237 : vector<16x32xf32>
    %240 = arith.divf %238, %239 : vector<16x32xf32>
    %241 = arith.mulf %232, %181 : vector<16x32xf32>
    %242 = arith.mulf %226, %234 : vector<16x32xf32>
    %243 = arith.addf %241, %242 : vector<16x32xf32>
    %244 = math.tanh %243 : vector<16x32xf32>
    %245 = arith.mulf %240, %244 : vector<16x32xf32>
    %c64 = arith.constant 64 : index
    %c0_84 = arith.constant 0 : index
    %246 = vector.load %arg11[%c64, %c0_84] : memref<128x128xf32, #tpu.memory_space<vmem>>, vector<16x128xf32>
    %247 = arith.truncf %212 : vector<16x32xf32> to vector<16x32xbf16>
    %cst_85 = arith.constant dense<0.000000e+00> : vector<16x128xf32>
    %248 = tpu.matmul %247, %22, %cst_85 {dimension_numbers = #tpu.dot_dimension_numbers<[1], [0], [0], [1], [0, 0, 1, 1], [], []>} : vector<16x32xbf16>, vector<32x128xbf16>, vector<16x128xf32> -> vector<16x128xf32>
    %249 = arith.addf %246, %248 : vector<16x128xf32>
    %250 = vector.extract_strided_slice %249 {offsets = [0, 0], sizes = [16, 32], strides = [1, 1]} : vector<16x128xf32> to vector<16x32xf32>
    %251 = arith.negf %250 : vector<16x32xf32>
    %252 = math.exp %251 : vector<16x32xf32>
    %cst_86 = arith.constant 1.000000e+00 : f32
    %253 = vector.broadcast %cst_86 : f32 to vector<16x32xf32>
    %254 = arith.addf %253, %252 : vector<16x32xf32>
    %255 = arith.divf %253, %254 : vector<16x32xf32>
    %256 = vector.extract_strided_slice %249 {offsets = [0, 32], sizes = [16, 32], strides = [1, 1]} : vector<16x128xf32> to vector<16x32xf32>
    %257 = arith.negf %256 : vector<16x32xf32>
    %258 = math.exp %257 : vector<16x32xf32>
    %cst_87 = arith.constant 1.000000e+00 : f32
    %259 = vector.broadcast %cst_87 : f32 to vector<16x32xf32>
    %260 = arith.addf %259, %258 : vector<16x32xf32>
    %261 = arith.divf %259, %260 : vector<16x32xf32>
    %262 = vector.extract_strided_slice %249 {offsets = [0, 64], sizes = [16, 32], strides = [1, 1]} : vector<16x128xf32> to vector<16x32xf32>
    %263 = math.tanh %262 : vector<16x32xf32>
    %264 = vector.extract_strided_slice %249 {offsets = [0, 96], sizes = [16, 32], strides = [1, 1]} : vector<16x128xf32> to vector<16x32xf32>
    %265 = arith.negf %264 : vector<16x32xf32>
    %266 = math.exp %265 : vector<16x32xf32>
    %cst_88 = arith.constant 1.000000e+00 : f32
    %267 = vector.broadcast %cst_88 : f32 to vector<16x32xf32>
    %268 = arith.addf %267, %266 : vector<16x32xf32>
    %269 = arith.divf %267, %268 : vector<16x32xf32>
    %270 = arith.mulf %261, %210 : vector<16x32xf32>
    %271 = arith.mulf %255, %263 : vector<16x32xf32>
    %272 = arith.addf %270, %271 : vector<16x32xf32>
    %273 = math.tanh %272 : vector<16x32xf32>
    %274 = arith.mulf %269, %273 : vector<16x32xf32>
    %275 = arith.truncf %245 : vector<16x32xf32> to vector<16x32xbf16>
    %c48_89 = arith.constant 48 : index
    %c0_90 = arith.constant 0 : index
    %276 = vector.load %arg6[%c48_89, %c0_90] : memref<128x32xbf16, #tpu.memory_space<vmem>>, vector<16x32xbf16>
    tpu.vector_store %arg6[%c48_89, %c0_90], %275 {strides = array<i32>} : memref<128x32xbf16, #tpu.memory_space<vmem>>, vector<16x32xbf16>,
    %277 = arith.truncf %274 : vector<16x32xf32> to vector<16x32xbf16>
    %c64_91 = arith.constant 64 : index
    %c0_92 = arith.constant 0 : index
    %278 = vector.load %arg7[%c64_91, %c0_92] : memref<128x32xbf16, #tpu.memory_space<vmem>>, vector<16x32xbf16>
    tpu.vector_store %arg7[%c64_91, %c0_92], %277 {strides = array<i32>} : memref<128x32xbf16, #tpu.memory_space<vmem>>, vector<16x32xbf16>,
    %c64_93 = arith.constant 64 : index
    %c0_94 = arith.constant 0 : index
    %279 = vector.load %arg10[%c64_93, %c0_94] : memref<128x128xf32, #tpu.memory_space<vmem>>, vector<16x128xf32>
    %280 = arith.truncf %245 : vector<16x32xf32> to vector<16x32xbf16>
    %cst_95 = arith.constant dense<0.000000e+00> : vector<16x128xf32>
    %281 = tpu.matmul %280, %20, %cst_95 {dimension_numbers = #tpu.dot_dimension_numbers<[1], [0], [0], [1], [0, 0, 1, 1], [], []>} : vector<16x32xbf16>, vector<32x128xbf16>, vector<16x128xf32> -> vector<16x128xf32>
    %282 = arith.addf %279, %281 : vector<16x128xf32>
    %283 = vector.extract_strided_slice %282 {offsets = [0, 0], sizes = [16, 32], strides = [1, 1]} : vector<16x128xf32> to vector<16x32xf32>
    %284 = arith.negf %283 : vector<16x32xf32>
    %285 = math.exp %284 : vector<16x32xf32>
    %cst_96 = arith.constant 1.000000e+00 : f32
    %286 = vector.broadcast %cst_96 : f32 to vector<16x32xf32>
    %287 = arith.addf %286, %285 : vector<16x32xf32>
    %288 = arith.divf %286, %287 : vector<16x32xf32>
    %289 = vector.extract_strided_slice %282 {offsets = [0, 32], sizes = [16, 32], strides = [1, 1]} : vector<16x128xf32> to vector<16x32xf32>
    %290 = arith.negf %289 : vector<16x32xf32>
    %291 = math.exp %290 : vector<16x32xf32>
    %cst_97 = arith.constant 1.000000e+00 : f32
    %292 = vector.broadcast %cst_97 : f32 to vector<16x32xf32>
    %293 = arith.addf %292, %291 : vector<16x32xf32>
    %294 = arith.divf %292, %293 : vector<16x32xf32>
    %295 = vector.extract_strided_slice %282 {offsets = [0, 64], sizes = [16, 32], strides = [1, 1]} : vector<16x128xf32> to vector<16x32xf32>
    %296 = math.tanh %295 : vector<16x32xf32>
    %297 = vector.extract_strided_slice %282 {offsets = [0, 96], sizes = [16, 32], strides = [1, 1]} : vector<16x128xf32> to vector<16x32xf32>
    %298 = arith.negf %297 : vector<16x32xf32>
    %299 = math.exp %298 : vector<16x32xf32>
    %cst_98 = arith.constant 1.000000e+00 : f32
    %300 = vector.broadcast %cst_98 : f32 to vector<16x32xf32>
    %301 = arith.addf %300, %299 : vector<16x32xf32>
    %302 = arith.divf %300, %301 : vector<16x32xf32>
    %303 = arith.mulf %294, %243 : vector<16x32xf32>
    %304 = arith.mulf %288, %296 : vector<16x32xf32>
    %305 = arith.addf %303, %304 : vector<16x32xf32>
    %306 = math.tanh %305 : vector<16x32xf32>
    %307 = arith.mulf %302, %306 : vector<16x32xf32>
    %c48_99 = arith.constant 48 : index
    %c0_100 = arith.constant 0 : index
    %308 = vector.load %arg11[%c48_99, %c0_100] : memref<128x128xf32, #tpu.memory_space<vmem>>, vector<16x128xf32>
    %309 = arith.truncf %274 : vector<16x32xf32> to vector<16x32xbf16>
    %cst_101 = arith.constant dense<0.000000e+00> : vector<16x128xf32>
    %310 = tpu.matmul %309, %22, %cst_101 {dimension_numbers = #tpu.dot_dimension_numbers<[1], [0], [0], [1], [0, 0, 1, 1], [], []>} : vector<16x32xbf16>, vector<32x128xbf16>, vector<16x128xf32> -> vector<16x128xf32>
    %311 = arith.addf %308, %310 : vector<16x128xf32>
    %312 = vector.extract_strided_slice %311 {offsets = [0, 0], sizes = [16, 32], strides = [1, 1]} : vector<16x128xf32> to vector<16x32xf32>
    %313 = arith.negf %312 : vector<16x32xf32>
    %314 = math.exp %313 : vector<16x32xf32>
    %cst_102 = arith.constant 1.000000e+00 : f32
    %315 = vector.broadcast %cst_102 : f32 to vector<16x32xf32>
    %316 = arith.addf %315, %314 : vector<16x32xf32>
    %317 = arith.divf %315, %316 : vector<16x32xf32>
    %318 = vector.extract_strided_slice %311 {offsets = [0, 32], sizes = [16, 32], strides = [1, 1]} : vector<16x128xf32> to vector<16x32xf32>
    %319 = arith.negf %318 : vector<16x32xf32>
    %320 = math.exp %319 : vector<16x32xf32>
    %cst_103 = arith.constant 1.000000e+00 : f32
    %321 = vector.broadcast %cst_103 : f32 to vector<16x32xf32>
    %322 = arith.addf %321, %320 : vector<16x32xf32>
    %323 = arith.divf %321, %322 : vector<16x32xf32>
    %324 = vector.extract_strided_slice %311 {offsets = [0, 64], sizes = [16, 32], strides = [1, 1]} : vector<16x128xf32> to vector<16x32xf32>
    %325 = math.tanh %324 : vector<16x32xf32>
    %326 = vector.extract_strided_slice %311 {offsets = [0, 96], sizes = [16, 32], strides = [1, 1]} : vector<16x128xf32> to vector<16x32xf32>
    %327 = arith.negf %326 : vector<16x32xf32>
    %328 = math.exp %327 : vector<16x32xf32>
    %cst_104 = arith.constant 1.000000e+00 : f32
    %329 = vector.broadcast %cst_104 : f32 to vector<16x32xf32>
    %330 = arith.addf %329, %328 : vector<16x32xf32>
    %331 = arith.divf %329, %330 : vector<16x32xf32>
    %332 = arith.mulf %323, %272 : vector<16x32xf32>
    %333 = arith.mulf %317, %325 : vector<16x32xf32>
    %334 = arith.addf %332, %333 : vector<16x32xf32>
    %335 = math.tanh %334 : vector<16x32xf32>
    %336 = arith.mulf %331, %335 : vector<16x32xf32>
    %337 = arith.truncf %307 : vector<16x32xf32> to vector<16x32xbf16>
    %c64_105 = arith.constant 64 : index
    %c0_106 = arith.constant 0 : index
    %338 = vector.load %arg6[%c64_105, %c0_106] : memref<128x32xbf16, #tpu.memory_space<vmem>>, vector<16x32xbf16>
    tpu.vector_store %arg6[%c64_105, %c0_106], %337 {strides = array<i32>} : memref<128x32xbf16, #tpu.memory_space<vmem>>, vector<16x32xbf16>,
    %339 = arith.truncf %336 : vector<16x32xf32> to vector<16x32xbf16>
    %c48_107 = arith.constant 48 : index
    %c0_108 = arith.constant 0 : index
    %340 = vector.load %arg7[%c48_107, %c0_108] : memref<128x32xbf16, #tpu.memory_space<vmem>>, vector<16x32xbf16>
    tpu.vector_store %arg7[%c48_107, %c0_108], %339 {strides = array<i32>} : memref<128x32xbf16, #tpu.memory_space<vmem>>, vector<16x32xbf16>,
    %c80_109 = arith.constant 80 : index
    %c0_110 = arith.constant 0 : index
    %341 = vector.load %arg10[%c80_109, %c0_110] : memref<128x128xf32, #tpu.memory_space<vmem>>, vector<16x128xf32>
    %342 = arith.truncf %307 : vector<16x32xf32> to vector<16x32xbf16>
    %cst_111 = arith.constant dense<0.000000e+00> : vector<16x128xf32>
    %343 = tpu.matmul %342, %20, %cst_111 {dimension_numbers = #tpu.dot_dimension_numbers<[1], [0], [0], [1], [0, 0, 1, 1], [], []>} : vector<16x32xbf16>, vector<32x128xbf16>, vector<16x128xf32> -> vector<16x128xf32>
    %344 = arith.addf %341, %343 : vector<16x128xf32>
    %345 = vector.extract_strided_slice %344 {offsets = [0, 0], sizes = [16, 32], strides = [1, 1]} : vector<16x128xf32> to vector<16x32xf32>
    %346 = arith.negf %345 : vector<16x32xf32>
    %347 = math.exp %346 : vector<16x32xf32>
    %cst_112 = arith.constant 1.000000e+00 : f32
    %348 = vector.broadcast %cst_112 : f32 to vector<16x32xf32>
    %349 = arith.addf %348, %347 : vector<16x32xf32>
    %350 = arith.divf %348, %349 : vector<16x32xf32>
    %351 = vector.extract_strided_slice %344 {offsets = [0, 32], sizes = [16, 32], strides = [1, 1]} : vector<16x128xf32> to vector<16x32xf32>
    %352 = arith.negf %351 : vector<16x32xf32>
    %353 = math.exp %352 : vector<16x32xf32>
    %cst_113 = arith.constant 1.000000e+00 : f32
    %354 = vector.broadcast %cst_113 : f32 to vector<16x32xf32>
    %355 = arith.addf %354, %353 : vector<16x32xf32>
    %356 = arith.divf %354, %355 : vector<16x32xf32>
    %357 = vector.extract_strided_slice %344 {offsets = [0, 64], sizes = [16, 32], strides = [1, 1]} : vector<16x128xf32> to vector<16x32xf32>
    %358 = math.tanh %357 : vector<16x32xf32>
    %359 = vector.extract_strided_slice %344 {offsets = [0, 96], sizes = [16, 32], strides = [1, 1]} : vector<16x128xf32> to vector<16x32xf32>
    %360 = arith.negf %359 : vector<16x32xf32>
    %361 = math.exp %360 : vector<16x32xf32>
    %cst_114 = arith.constant 1.000000e+00 : f32
    %362 = vector.broadcast %cst_114 : f32 to vector<16x32xf32>
    %363 = arith.addf %362, %361 : vector<16x32xf32>
    %364 = arith.divf %362, %363 : vector<16x32xf32>
    %365 = arith.mulf %356, %305 : vector<16x32xf32>
    %366 = arith.mulf %350, %358 : vector<16x32xf32>
    %367 = arith.addf %365, %366 : vector<16x32xf32>
    %368 = math.tanh %367 : vector<16x32xf32>
    %369 = arith.mulf %364, %368 : vector<16x32xf32>
    %c32_115 = arith.constant 32 : index
    %c0_116 = arith.constant 0 : index
    %370 = vector.load %arg11[%c32_115, %c0_116] : memref<128x128xf32, #tpu.memory_space<vmem>>, vector<16x128xf32>
    %371 = arith.truncf %336 : vector<16x32xf32> to vector<16x32xbf16>
    %cst_117 = arith.constant dense<0.000000e+00> : vector<16x128xf32>
    %372 = tpu.matmul %371, %22, %cst_117 {dimension_numbers = #tpu.dot_dimension_numbers<[1], [0], [0], [1], [0, 0, 1, 1], [], []>} : vector<16x32xbf16>, vector<32x128xbf16>, vector<16x128xf32> -> vector<16x128xf32>
    %373 = arith.addf %370, %372 : vector<16x128xf32>
    %374 = vector.extract_strided_slice %373 {offsets = [0, 0], sizes = [16, 32], strides = [1, 1]} : vector<16x128xf32> to vector<16x32xf32>
    %375 = arith.negf %374 : vector<16x32xf32>
    %376 = math.exp %375 : vector<16x32xf32>
    %cst_118 = arith.constant 1.000000e+00 : f32
    %377 = vector.broadcast %cst_118 : f32 to vector<16x32xf32>
    %378 = arith.addf %377, %376 : vector<16x32xf32>
    %379 = arith.divf %377, %378 : vector<16x32xf32>
    %380 = vector.extract_strided_slice %373 {offsets = [0, 32], sizes = [16, 32], strides = [1, 1]} : vector<16x128xf32> to vector<16x32xf32>
    %381 = arith.negf %380 : vector<16x32xf32>
    %382 = math.exp %381 : vector<16x32xf32>
    %cst_119 = arith.constant 1.000000e+00 : f32
    %383 = vector.broadcast %cst_119 : f32 to vector<16x32xf32>
    %384 = arith.addf %383, %382 : vector<16x32xf32>
    %385 = arith.divf %383, %384 : vector<16x32xf32>
    %386 = vector.extract_strided_slice %373 {offsets = [0, 64], sizes = [16, 32], strides = [1, 1]} : vector<16x128xf32> to vector<16x32xf32>
    %387 = math.tanh %386 : vector<16x32xf32>
    %388 = vector.extract_strided_slice %373 {offsets = [0, 96], sizes = [16, 32], strides = [1, 1]} : vector<16x128xf32> to vector<16x32xf32>
    %389 = arith.negf %388 : vector<16x32xf32>
    %390 = math.exp %389 : vector<16x32xf32>
    %cst_120 = arith.constant 1.000000e+00 : f32
    %391 = vector.broadcast %cst_120 : f32 to vector<16x32xf32>
    %392 = arith.addf %391, %390 : vector<16x32xf32>
    %393 = arith.divf %391, %392 : vector<16x32xf32>
    %394 = arith.mulf %385, %334 : vector<16x32xf32>
    %395 = arith.mulf %379, %387 : vector<16x32xf32>
    %396 = arith.addf %394, %395 : vector<16x32xf32>
    %397 = math.tanh %396 : vector<16x32xf32>
    %398 = arith.mulf %393, %397 : vector<16x32xf32>
    %399 = arith.truncf %369 : vector<16x32xf32> to vector<16x32xbf16>
    %c80_121 = arith.constant 80 : index
    %c0_122 = arith.constant 0 : index
    %400 = vector.load %arg6[%c80_121, %c0_122] : memref<128x32xbf16, #tpu.memory_space<vmem>>, vector<16x32xbf16>
    tpu.vector_store %arg6[%c80_121, %c0_122], %399 {strides = array<i32>} : memref<128x32xbf16, #tpu.memory_space<vmem>>, vector<16x32xbf16>,
    %401 = arith.truncf %398 : vector<16x32xf32> to vector<16x32xbf16>
    %c32_123 = arith.constant 32 : index
    %c0_124 = arith.constant 0 : index
    %402 = vector.load %arg7[%c32_123, %c0_124] : memref<128x32xbf16, #tpu.memory_space<vmem>>, vector<16x32xbf16>
    tpu.vector_store %arg7[%c32_123, %c0_124], %401 {strides = array<i32>} : memref<128x32xbf16, #tpu.memory_space<vmem>>, vector<16x32xbf16>,
    %c96_125 = arith.constant 96 : index
    %c0_126 = arith.constant 0 : index
    %403 = vector.load %arg10[%c96_125, %c0_126] : memref<128x128xf32, #tpu.memory_space<vmem>>, vector<16x128xf32>
    %404 = arith.truncf %369 : vector<16x32xf32> to vector<16x32xbf16>
    %cst_127 = arith.constant dense<0.000000e+00> : vector<16x128xf32>
    %405 = tpu.matmul %404, %20, %cst_127 {dimension_numbers = #tpu.dot_dimension_numbers<[1], [0], [0], [1], [0, 0, 1, 1], [], []>} : vector<16x32xbf16>, vector<32x128xbf16>, vector<16x128xf32> -> vector<16x128xf32>
    %406 = arith.addf %403, %405 : vector<16x128xf32>
    %407 = vector.extract_strided_slice %406 {offsets = [0, 0], sizes = [16, 32], strides = [1, 1]} : vector<16x128xf32> to vector<16x32xf32>
    %408 = arith.negf %407 : vector<16x32xf32>
    %409 = math.exp %408 : vector<16x32xf32>
    %cst_128 = arith.constant 1.000000e+00 : f32
    %410 = vector.broadcast %cst_128 : f32 to vector<16x32xf32>
    %411 = arith.addf %410, %409 : vector<16x32xf32>
    %412 = arith.divf %410, %411 : vector<16x32xf32>
    %413 = vector.extract_strided_slice %406 {offsets = [0, 32], sizes = [16, 32], strides = [1, 1]} : vector<16x128xf32> to vector<16x32xf32>
    %414 = arith.negf %413 : vector<16x32xf32>
    %415 = math.exp %414 : vector<16x32xf32>
    %cst_129 = arith.constant 1.000000e+00 : f32
    %416 = vector.broadcast %cst_129 : f32 to vector<16x32xf32>
    %417 = arith.addf %416, %415 : vector<16x32xf32>
    %418 = arith.divf %416, %417 : vector<16x32xf32>
    %419 = vector.extract_strided_slice %406 {offsets = [0, 64], sizes = [16, 32], strides = [1, 1]} : vector<16x128xf32> to vector<16x32xf32>
    %420 = math.tanh %419 : vector<16x32xf32>
    %421 = vector.extract_strided_slice %406 {offsets = [0, 96], sizes = [16, 32], strides = [1, 1]} : vector<16x128xf32> to vector<16x32xf32>
    %422 = arith.negf %421 : vector<16x32xf32>
    %423 = math.exp %422 : vector<16x32xf32>
    %cst_130 = arith.constant 1.000000e+00 : f32
    %424 = vector.broadcast %cst_130 : f32 to vector<16x32xf32>
    %425 = arith.addf %424, %423 : vector<16x32xf32>
    %426 = arith.divf %424, %425 : vector<16x32xf32>
    %427 = arith.mulf %418, %367 : vector<16x32xf32>
    %428 = arith.mulf %412, %420 : vector<16x32xf32>
    %429 = arith.addf %427, %428 : vector<16x32xf32>
    %430 = math.tanh %429 : vector<16x32xf32>
    %431 = arith.mulf %426, %430 : vector<16x32xf32>
    %c16_131 = arith.constant 16 : index
    %c0_132 = arith.constant 0 : index
    %432 = vector.load %arg11[%c16_131, %c0_132] : memref<128x128xf32, #tpu.memory_space<vmem>>, vector<16x128xf32>
    %433 = arith.truncf %398 : vector<16x32xf32> to vector<16x32xbf16>
    %cst_133 = arith.constant dense<0.000000e+00> : vector<16x128xf32>
    %434 = tpu.matmul %433, %22, %cst_133 {dimension_numbers = #tpu.dot_dimension_numbers<[1], [0], [0], [1], [0, 0, 1, 1], [], []>} : vector<16x32xbf16>, vector<32x128xbf16>, vector<16x128xf32> -> vector<16x128xf32>
    %435 = arith.addf %432, %434 : vector<16x128xf32>
    %436 = vector.extract_strided_slice %435 {offsets = [0, 0], sizes = [16, 32], strides = [1, 1]} : vector<16x128xf32> to vector<16x32xf32>
    %437 = arith.negf %436 : vector<16x32xf32>
    %438 = math.exp %437 : vector<16x32xf32>
    %cst_134 = arith.constant 1.000000e+00 : f32
    %439 = vector.broadcast %cst_134 : f32 to vector<16x32xf32>
    %440 = arith.addf %439, %438 : vector<16x32xf32>
    %441 = arith.divf %439, %440 : vector<16x32xf32>
    %442 = vector.extract_strided_slice %435 {offsets = [0, 32], sizes = [16, 32], strides = [1, 1]} : vector<16x128xf32> to vector<16x32xf32>
    %443 = arith.negf %442 : vector<16x32xf32>
    %444 = math.exp %443 : vector<16x32xf32>
    %cst_135 = arith.constant 1.000000e+00 : f32
    %445 = vector.broadcast %cst_135 : f32 to vector<16x32xf32>
    %446 = arith.addf %445, %444 : vector<16x32xf32>
    %447 = arith.divf %445, %446 : vector<16x32xf32>
    %448 = vector.extract_strided_slice %435 {offsets = [0, 64], sizes = [16, 32], strides = [1, 1]} : vector<16x128xf32> to vector<16x32xf32>
    %449 = math.tanh %448 : vector<16x32xf32>
    %450 = vector.extract_strided_slice %435 {offsets = [0, 96], sizes = [16, 32], strides = [1, 1]} : vector<16x128xf32> to vector<16x32xf32>
    %451 = arith.negf %450 : vector<16x32xf32>
    %452 = math.exp %451 : vector<16x32xf32>
    %cst_136 = arith.constant 1.000000e+00 : f32
    %453 = vector.broadcast %cst_136 : f32 to vector<16x32xf32>
    %454 = arith.addf %453, %452 : vector<16x32xf32>
    %455 = arith.divf %453, %454 : vector<16x32xf32>
    %456 = arith.mulf %447, %396 : vector<16x32xf32>
    %457 = arith.mulf %441, %449 : vector<16x32xf32>
    %458 = arith.addf %456, %457 : vector<16x32xf32>
    %459 = math.tanh %458 : vector<16x32xf32>
    %460 = arith.mulf %455, %459 : vector<16x32xf32>
    %461 = arith.truncf %431 : vector<16x32xf32> to vector<16x32xbf16>
    %c96_137 = arith.constant 96 : index
    %c0_138 = arith.constant 0 : index
    %462 = vector.load %arg6[%c96_137, %c0_138] : memref<128x32xbf16, #tpu.memory_space<vmem>>, vector<16x32xbf16>
    tpu.vector_store %arg6[%c96_137, %c0_138], %461 {strides = array<i32>} : memref<128x32xbf16, #tpu.memory_space<vmem>>, vector<16x32xbf16>,
    %463 = arith.truncf %460 : vector<16x32xf32> to vector<16x32xbf16>
    %c16_139 = arith.constant 16 : index
    %c0_140 = arith.constant 0 : index
    %464 = vector.load %arg7[%c16_139, %c0_140] : memref<128x32xbf16, #tpu.memory_space<vmem>>, vector<16x32xbf16>
    tpu.vector_store %arg7[%c16_139, %c0_140], %463 {strides = array<i32>} : memref<128x32xbf16, #tpu.memory_space<vmem>>, vector<16x32xbf16>,
    %c112_141 = arith.constant 112 : index
    %c0_142 = arith.constant 0 : index
    %465 = vector.load %arg10[%c112_141, %c0_142] : memref<128x128xf32, #tpu.memory_space<vmem>>, vector<16x128xf32>
    %466 = arith.truncf %431 : vector<16x32xf32> to vector<16x32xbf16>
    %cst_143 = arith.constant dense<0.000000e+00> : vector<16x128xf32>
    %467 = tpu.matmul %466, %20, %cst_143 {dimension_numbers = #tpu.dot_dimension_numbers<[1], [0], [0], [1], [0, 0, 1, 1], [], []>} : vector<16x32xbf16>, vector<32x128xbf16>, vector<16x128xf32> -> vector<16x128xf32>
    %468 = arith.addf %465, %467 : vector<16x128xf32>
    %469 = vector.extract_strided_slice %468 {offsets = [0, 0], sizes = [16, 32], strides = [1, 1]} : vector<16x128xf32> to vector<16x32xf32>
    %470 = arith.negf %469 : vector<16x32xf32>
    %471 = math.exp %470 : vector<16x32xf32>
    %cst_144 = arith.constant 1.000000e+00 : f32
    %472 = vector.broadcast %cst_144 : f32 to vector<16x32xf32>
    %473 = arith.addf %472, %471 : vector<16x32xf32>
    %474 = arith.divf %472, %473 : vector<16x32xf32>
    %475 = vector.extract_strided_slice %468 {offsets = [0, 32], sizes = [16, 32], strides = [1, 1]} : vector<16x128xf32> to vector<16x32xf32>
    %476 = arith.negf %475 : vector<16x32xf32>
    %477 = math.exp %476 : vector<16x32xf32>
    %cst_145 = arith.constant 1.000000e+00 : f32
    %478 = vector.broadcast %cst_145 : f32 to vector<16x32xf32>
    %479 = arith.addf %478, %477 : vector<16x32xf32>
    %480 = arith.divf %478, %479 : vector<16x32xf32>
    %481 = vector.extract_strided_slice %468 {offsets = [0, 64], sizes = [16, 32], strides = [1, 1]} : vector<16x128xf32> to vector<16x32xf32>
    %482 = math.tanh %481 : vector<16x32xf32>
    %483 = vector.extract_strided_slice %468 {offsets = [0, 96], sizes = [16, 32], strides = [1, 1]} : vector<16x128xf32> to vector<16x32xf32>
    %484 = arith.negf %483 : vector<16x32xf32>
    %485 = math.exp %484 : vector<16x32xf32>
    %cst_146 = arith.constant 1.000000e+00 : f32
    %486 = vector.broadcast %cst_146 : f32 to vector<16x32xf32>
    %487 = arith.addf %486, %485 : vector<16x32xf32>
    %488 = arith.divf %486, %487 : vector<16x32xf32>
    %489 = arith.mulf %480, %429 : vector<16x32xf32>
    %490 = arith.mulf %474, %482 : vector<16x32xf32>
    %491 = arith.addf %489, %490 : vector<16x32xf32>
    %492 = math.tanh %491 : vector<16x32xf32>
    %493 = arith.mulf %488, %492 : vector<16x32xf32>
    %c0_147 = arith.constant 0 : index
    %c0_148 = arith.constant 0 : index
    %494 = vector.load %arg11[%c0_147, %c0_148] : memref<128x128xf32, #tpu.memory_space<vmem>>, vector<16x128xf32>
    %495 = arith.truncf %460 : vector<16x32xf32> to vector<16x32xbf16>
    %cst_149 = arith.constant dense<0.000000e+00> : vector<16x128xf32>
    %496 = tpu.matmul %495, %22, %cst_149 {dimension_numbers = #tpu.dot_dimension_numbers<[1], [0], [0], [1], [0, 0, 1, 1], [], []>} : vector<16x32xbf16>, vector<32x128xbf16>, vector<16x128xf32> -> vector<16x128xf32>
    %497 = arith.addf %494, %496 : vector<16x128xf32>
    %498 = vector.extract_strided_slice %497 {offsets = [0, 0], sizes = [16, 32], strides = [1, 1]} : vector<16x128xf32> to vector<16x32xf32>
    %499 = arith.negf %498 : vector<16x32xf32>
    %500 = math.exp %499 : vector<16x32xf32>
    %cst_150 = arith.constant 1.000000e+00 : f32
    %501 = vector.broadcast %cst_150 : f32 to vector<16x32xf32>
    %502 = arith.addf %501, %500 : vector<16x32xf32>
    %503 = arith.divf %501, %502 : vector<16x32xf32>
    %504 = vector.extract_strided_slice %497 {offsets = [0, 32], sizes = [16, 32], strides = [1, 1]} : vector<16x128xf32> to vector<16x32xf32>
    %505 = arith.negf %504 : vector<16x32xf32>
    %506 = math.exp %505 : vector<16x32xf32>
    %cst_151 = arith.constant 1.000000e+00 : f32
    %507 = vector.broadcast %cst_151 : f32 to vector<16x32xf32>
    %508 = arith.addf %507, %506 : vector<16x32xf32>
    %509 = arith.divf %507, %508 : vector<16x32xf32>
    %510 = vector.extract_strided_slice %497 {offsets = [0, 64], sizes = [16, 32], strides = [1, 1]} : vector<16x128xf32> to vector<16x32xf32>
    %511 = math.tanh %510 : vector<16x32xf32>
    %512 = vector.extract_strided_slice %497 {offsets = [0, 96], sizes = [16, 32], strides = [1, 1]} : vector<16x128xf32> to vector<16x32xf32>
    %513 = arith.negf %512 : vector<16x32xf32>
    %514 = math.exp %513 : vector<16x32xf32>
    %cst_152 = arith.constant 1.000000e+00 : f32
    %515 = vector.broadcast %cst_152 : f32 to vector<16x32xf32>
    %516 = arith.addf %515, %514 : vector<16x32xf32>
    %517 = arith.divf %515, %516 : vector<16x32xf32>
    %518 = arith.mulf %509, %458 : vector<16x32xf32>
    %519 = arith.mulf %503, %511 : vector<16x32xf32>
    %520 = arith.addf %518, %519 : vector<16x32xf32>
    %521 = math.tanh %520 : vector<16x32xf32>
    %522 = arith.mulf %517, %521 : vector<16x32xf32>
    %523 = arith.truncf %493 : vector<16x32xf32> to vector<16x32xbf16>
    %c112_153 = arith.constant 112 : index
    %c0_154 = arith.constant 0 : index
    %524 = vector.load %arg6[%c112_153, %c0_154] : memref<128x32xbf16, #tpu.memory_space<vmem>>, vector<16x32xbf16>
    tpu.vector_store %arg6[%c112_153, %c0_154], %523 {strides = array<i32>} : memref<128x32xbf16, #tpu.memory_space<vmem>>, vector<16x32xbf16>,
    %525 = arith.truncf %522 : vector<16x32xf32> to vector<16x32xbf16>
    %c0_155 = arith.constant 0 : index
    %c0_156 = arith.constant 0 : index
    %526 = vector.load %arg7[%c0_155, %c0_156] : memref<128x32xbf16, #tpu.memory_space<vmem>>, vector<16x32xbf16>
    tpu.vector_store %arg7[%c0_155, %c0_156], %525 {strides = array<i32>} : memref<128x32xbf16, #tpu.memory_space<vmem>>, vector<16x32xbf16>,
    %c0_157 = arith.constant 0 : index
    %c0_158 = arith.constant 0 : index
    %c0_159 = arith.constant 0 : index
    %527 = vector.load %arg8[%c0_157, %c0_158, %c0_159] : memref<2x16x32xf32, #tpu.memory_space<vmem>>, vector<1x16x32xf32>
    %528 = vector.shape_cast %527 : vector<1x16x32xf32> to vector<16x32xf32>
    %529 = vector.shape_cast %493 : vector<16x32xf32> to vector<1x16x32xf32>
    tpu.vector_store %arg8[%c0_157, %c0_158, %c0_159], %529 {strides = array<i32>} : memref<2x16x32xf32, #tpu.memory_space<vmem>>, vector<1x16x32xf32>,
    %c1_160 = arith.constant 1 : index
    %c0_161 = arith.constant 0 : index
    %c0_162 = arith.constant 0 : index
    %530 = vector.load %arg8[%c1_160, %c0_161, %c0_162] : memref<2x16x32xf32, #tpu.memory_space<vmem>>, vector<1x16x32xf32>
    %531 = vector.shape_cast %530 : vector<1x16x32xf32> to vector<16x32xf32>
    %532 = vector.shape_cast %522 : vector<16x32xf32> to vector<1x16x32xf32>
    tpu.vector_store %arg8[%c1_160, %c0_161, %c0_162], %532 {strides = array<i32>} : memref<2x16x32xf32, #tpu.memory_space<vmem>>, vector<1x16x32xf32>,
    %c0_163 = arith.constant 0 : index
    %c0_164 = arith.constant 0 : index
    %c0_165 = arith.constant 0 : index
    %533 = vector.load %arg9[%c0_163, %c0_164, %c0_165] : memref<2x16x32xf32, #tpu.memory_space<vmem>>, vector<1x16x32xf32>
    %534 = vector.shape_cast %533 : vector<1x16x32xf32> to vector<16x32xf32>
    %535 = vector.shape_cast %491 : vector<16x32xf32> to vector<1x16x32xf32>
    tpu.vector_store %arg9[%c0_163, %c0_164, %c0_165], %535 {strides = array<i32>} : memref<2x16x32xf32, #tpu.memory_space<vmem>>, vector<1x16x32xf32>,
    %c1_166 = arith.constant 1 : index
    %c0_167 = arith.constant 0 : index
    %c0_168 = arith.constant 0 : index
    %536 = vector.load %arg9[%c1_166, %c0_167, %c0_168] : memref<2x16x32xf32, #tpu.memory_space<vmem>>, vector<1x16x32xf32>
    %537 = vector.shape_cast %536 : vector<1x16x32xf32> to vector<16x32xf32>
    %538 = vector.shape_cast %520 : vector<16x32xf32> to vector<1x16x32xf32>
    tpu.vector_store %arg9[%c1_166, %c0_167, %c0_168], %538 {strides = array<i32>} : memref<2x16x32xf32, #tpu.memory_space<vmem>>, vector<1x16x32xf32>,
    return
  }
  func.func @transform_0(%arg0: i32) -> (i32, i32) {
    %c0_i32 = arith.constant 0 : i32
    %c0_i32_0 = arith.constant 0 : i32
    return %arg0, %c0_i32 : i32, i32
  }
  func.func @transform_1(%arg0: i32) -> (i32, i32) {
    %c0_i32 = arith.constant 0 : i32
    %0 = arith.subi %c0_i32, %arg0 : i32
    %c0_i32_0 = arith.constant 0 : i32
    %c0_i32_1 = arith.constant 0 : i32
    return %0, %c0_i32_0 : i32, i32
  }
  func.func @transform_2(%arg0: i32) -> (i32, i32, i32) {
    %c0_i32 = arith.constant 0 : i32
    %c0_i32_0 = arith.constant 0 : i32
    %c0_i32_1 = arith.constant 0 : i32
    %c0_i32_2 = arith.constant 0 : i32
    return %c0_i32, %c0_i32_0, %c0_i32_1 : i32, i32, i32
  }
  func.func @transform_3(%arg0: i32) -> (i32, i32, i32) {
    %c0_i32 = arith.constant 0 : i32
    %c0_i32_0 = arith.constant 0 : i32
    %c0_i32_1 = arith.constant 0 : i32
    %c0_i32_2 = arith.constant 0 : i32
    return %c0_i32, %c0_i32_0, %c0_i32_1 : i32, i32, i32
  }
  func.func @transform_4(%arg0: i32) -> (i32, i32) {
    %c0_i32 = arith.constant 0 : i32
    %c0_i32_0 = arith.constant 0 : i32
    %c0_i32_1 = arith.constant 0 : i32
    return %c0_i32, %c0_i32_0 : i32, i32
  }
  func.func @transform_5(%arg0: i32) -> (i32, i32) {
    %c0_i32 = arith.constant 0 : i32
    %c0_i32_0 = arith.constant 0 : i32
    return %arg0, %c0_i32 : i32, i32
  }
  func.func @transform_6(%arg0: i32) -> (i32, i32) {
    %c0_i32 = arith.constant 0 : i32
    %0 = arith.subi %c0_i32, %arg0 : i32
    %c0_i32_0 = arith.constant 0 : i32
    %c0_i32_1 = arith.constant 0 : i32
    return %0, %c0_i32_0 : i32, i32
  }
  func.func @transform_7(%arg0: i32) -> (i32, i32, i32) {
    %c0_i32 = arith.constant 0 : i32
    %c0_i32_0 = arith.constant 0 : i32
    %c0_i32_1 = arith.constant 0 : i32
    %c0_i32_2 = arith.constant 0 : i32
    return %c0_i32, %c0_i32_0, %c0_i32_1 : i32, i32, i32
  }
  func.func @transform_8(%arg0: i32) -> (i32, i32, i32) {
    %c0_i32 = arith.constant 0 : i32
    %c0_i32_0 = arith.constant 0 : i32
    %c0_i32_1 = arith.constant 0 : i32
    %c0_i32_2 = arith.constant 0 : i32
    return %c0_i32, %c0_i32_0, %c0_i32_1 : i32, i32, i32
  }
}

</mosaic_0001>

<llo_original>
// kernel: tpu_custom_call.1
$region0: #{tpu_custom_call.1}
  #allocation0 [shape = 'u32[]', space=smem, size = 0x4, offset = 0x4, fixed_abs, tag = 'smem constant byte address 0x4 - core index']
  #allocation1 [shape = 'u32[144,128]{1,0:T(1,128)}', space=vmem, size = 0x12000, scoped, tag = 'internal scratch']
  #allocation2 [shape = 'f32[128,128]{1,0:T(8,128)}', space=vmem, size = 0x10000, scoped, tag = 'scratch operand']
  #allocation3 [shape = 'f32[128,128]{1,0:T(8,128)}', space=vmem, size = 0x10000, scoped, tag = 'scratch operand']
  %s0 = inlined_call_operand.vmem [shape: bf16[128,16], index: 0, kind: input, shape index: {}]
  %s1 = inlined_call_operand.vmem [shape: bf16[128,16], index: 1, kind: input, shape index: {}]
  %s2 = inlined_call_operand.vmem [shape: bf16[2,16,128], index: 2, kind: input, shape index: {}]
  %s3 = inlined_call_operand.vmem [shape: bf16[2,32,128], index: 3, kind: input, shape index: {}]
  %s4 = inlined_call_operand.vmem [shape: f32[2,128], index: 4, kind: input, shape index: {}]
  %s5 = inlined_call_operand.vmem [shape: bf16[128,32], index: 5, kind: output, shape index: {0}]
  %s6 = inlined_call_operand.vmem [shape: bf16[128,32], index: 6, kind: output, shape index: {1}]
  %s7 = inlined_call_operand.hbm [shape: f32[2,16,32], index: 7, kind: output, shape index: {2}]
  %s8 = inlined_call_operand.hbm [shape: f32[2,16,32], index: 8, kind: output, shape index: {3}]
  %9 = xla_tuple %s5, %s6, %s7, %s8
  %s10 = sld [smem:[#allocation0]]
  $region58: #{tpu_custom_call.1} parent=0
    _
  %s12 = ssub.s32 1, %s10
  %s13 = scalar_select 0, %s12, %s10
  $region1: #{tpu_custom_call.1} parent=0
    #allocation4 [shape = 'u8[16384]{0}', space=vmem, size = 0x4000, scoped, tag = 'output window, operand 2, single buffered']
    #allocation5 [shape = 's32[1]{0}', space=sflag, size = 0x4, scoped, tag = 'scoped memory for tpu_custom_call.1']
    #allocation6 [shape = 'u8[16384]{0}', space=vmem, size = 0x4000, scoped, tag = 'output window, operand 3, single buffered']
    #allocation7 [shape = 's32[1]{0}', space=sflag, size = 0x4, scoped, tag = 'scoped memory for tpu_custom_call.1']
    %14 = vsyncpa [#allocation5], 0
    %15 = vsyncpa [#allocation7], 0
    // Predicated region
    $region2: #{tpu_custom_call.1} parent=1 // pred_check
      _
    $region3: #{tpu_custom_call.1} parent=1 // pred_check_branch
      %17 = sbr.rel (0) target = $region5
    $region4: #{tpu_custom_call.1} parent=1 // pred_region
      _
    $region5: #{tpu_custom_call.1} parent=1 // pred_fallthru
      _
    // Predicated region
    $region6: #{tpu_custom_call.1} parent=1 // pred_check
      _
    $region7: #{tpu_custom_call.1} parent=1 // pred_check_branch
      %19 = sbr.rel (0) target = $region9
    $region8: #{tpu_custom_call.1} parent=1 // pred_region
      %s20 = ssub.s32 0, 0
      %s21 = smul.u32 16, %s20
      %p22 = scmp.lt.s32.totalorder %s21, 15
      %s23 = scalar_select %p22, %s21, 15
      %s24 = smul.addr %s23, 4
      %s25 = scalar_lea.vmem %s1, %s24
      %s26 = ssub.s32 0, 0
      %s27 = smul.u32 16, %s26
    $region9: #{tpu_custom_call.1} parent=1 // pred_fallthru
      _
    // Predicated region
    $region10: #{tpu_custom_call.1} parent=1 // pred_check
      _
    $region11: #{tpu_custom_call.1} parent=1 // pred_check_branch
      %29 = sbr.rel (0) target = $region13
    $region12: #{tpu_custom_call.1} parent=1 // pred_region
      _
    $region13: #{tpu_custom_call.1} parent=1 // pred_fallthru
      _
    // Predicated region
    $region14: #{tpu_custom_call.1} parent=1 // pred_check
      _
    $region15: #{tpu_custom_call.1} parent=1 // pred_check_branch
      %31 = sbr.rel (0) target = $region17
    $region16: #{tpu_custom_call.1} parent=1 // pred_region
      _
    $region17: #{tpu_custom_call.1} parent=1 // pred_fallthru
      _
    // Predicated region
    $region18: #{tpu_custom_call.1} parent=1 // pred_check
      _
    $region19: #{tpu_custom_call.1} parent=1 // pred_check_branch
      %33 = sbr.rel (0) target = $region21
    $region20: #{tpu_custom_call.1} parent=1 // pred_region
      _
    $region21: #{tpu_custom_call.1} parent=1 // pred_fallthru
      _
    %s34 = ssub.s32 0, 0
    %s35 = smul.u32 16, %s34
    %p36 = scmp.lt.s32.totalorder %s35, 15
    %s37 = scalar_select %p36, %s35, 15
    %s38 = smul.addr %s37, 4
    %s39 = scalar_lea.vmem %s1, %s38
    %s40 = ssub.s32 0, 0
    %s41 = smul.u32 16, %s40
    %p42 = scmp.lt.s32.totalorder %s41, 15
    %s43 = scalar_select %p42, %s41, 15
    %s44 = smul.addr %s43, 4
    %s45 = scalar_lea.vmem %s6, %s44
    %s46 = ssub.s32 0, 0
    %s47 = smul.u32 16, %s46
    %p48 = scmp.lt.s32.totalorder %s47, 15
    %s49 = scalar_select %p48, %s47, 15
    %s50 = smul.addr %s49, 4
    %s51 = scalar_lea.vmem %s1, %s50
    %s52 = ssub.s32 0, 0
    %s53 = smul.u32 16, %s52
    %s54 = ssub.s32 0, 0
    %s55 = smul.u32 16, %s54
    %p56 = scmp.lt.s32.totalorder %s55, 15
    %s57 = scalar_select %p56, %s55, 15
    %s58 = smul.addr %s57, 4
    %s59 = scalar_lea.vmem %s6, %s58
    %s60 = ssub.s32 0, 0
    %s61 = smul.u32 16, %s60
    %p63 = scmp.eq.s32.totalorder 0, 0
    // Predicated region
    $region22: #{tpu_custom_call.1} parent=1 // pred_check
      %p64 = pneg %p63
    $region23: #{tpu_custom_call.1} parent=1 // pred_check_branch
      %66 = sbr.rel (%p64) target = $region25
    $region24: #{tpu_custom_call.1} parent=1 // pred_region
      %vm67 = vcmask 261120
      %68 = vst.msk [vmem:[#allocation4] sm:$0xff] %vm67, 0.0
      %69 = vst.msk [vmem:[#allocation4 + $0x8] sm:$0xff] %vm67, 0.0
      %70 = vst.msk [vmem:[#allocation4 + $0x10] sm:$0xff] %vm67, 0.0
      %71 = vst.msk [vmem:[#allocation4 + $0x18] sm:$0xff] %vm67, 0.0
      %72 = vst.msk [vmem:[#allocation6] sm:$0xff] %vm67, 0.0
      %73 = vst.msk [vmem:[#allocation6 + $0x8] sm:$0xff] %vm67, 0.0
      %74 = vst.msk [vmem:[#allocation6 + $0x10] sm:$0xff] %vm67, 0.0
      %75 = vst.msk [vmem:[#allocation6 + $0x18] sm:$0xff] %vm67, 0.0
    $region25: #{tpu_custom_call.1} parent=1 // pred_fallthru
      _
    %v76 = vld [vmem:[%s0] sm:$0xf]
    %v77 = vld [vmem:[%s0 + $0x4] sm:$0xf]
    %v78 = vld [vmem:[%s0 + $0x8] sm:$0xf]
    %v79 = vld [vmem:[%s0 + $0xc] sm:$0xf]
    %v80 = vld [vmem:[%s0 + $0x10] sm:$0xf]
    %v81 = vld [vmem:[%s0 + $0x14] sm:$0xf]
    %v82 = vld [vmem:[%s0 + $0x18] sm:$0xf]
    %v83 = vld [vmem:[%s0 + $0x1c] sm:$0xf]
    %v84 = vld [vmem:[%s0 + $0x20] sm:$0xf]
    %v85 = vld [vmem:[%s0 + $0x24] sm:$0xf]
    %v86 = vld [vmem:[%s0 + $0x28] sm:$0xf]
    %v87 = vld [vmem:[%s0 + $0x2c] sm:$0xf]
    %v88 = vld [vmem:[%s0 + $0x30] sm:$0xf]
    %v89 = vld [vmem:[%s0 + $0x34] sm:$0xf]
    %v90 = vld [vmem:[%s0 + $0x38] sm:$0xf]
    %v91 = vld [vmem:[%s0 + $0x3c] sm:$0xf]
    %v92 = vld [vmem:[%s2] sm:$0xf]
    %v93 = vld [vmem:[%s2 + $0x4] sm:$0xf]
    %v94 = vld [vmem:[%s4] sm:$0x1]
    %v95 = vlaneseq
    %v96 = vshrl.u32 %v95, 7
    %v97 = vsub.s32 0, %v96
    %v98 = vrot.slane %v94, %v97
    %v115 = vunpack.c.l.b16 %v76
    %v116 = vunpack.c.l.b16 %v77
    %v117 = vunpack.c.l.b16 %v78
    %v118 = vunpack.c.l.b16 %v79
    %v119 = vunpack.c.l.b16 %v80
    %v120 = vunpack.c.l.b16 %v81
    %v121 = vunpack.c.l.b16 %v82
    %v122 = vunpack.c.l.b16 %v83
    %v123 = vunpack.c.l.b16 %v84
    %v124 = vunpack.c.l.b16 %v85
    %v125 = vunpack.c.l.b16 %v86
    %v126 = vunpack.c.l.b16 %v87
    %v127 = vunpack.c.l.b16 %v88
    %v128 = vunpack.c.l.b16 %v89
    %v129 = vunpack.c.l.b16 %v90
    %v130 = vunpack.c.l.b16 %v91
    %v131 = vpack.c.b16 %v116, %v115
    %v132 = vpack.c.b16 %v118, %v117
    %v133 = vpack.c.b16 %v120, %v119
    %v134 = vpack.c.b16 %v122, %v121
    %v135 = vpack.c.b16 %v124, %v123
    %v136 = vpack.c.b16 %v126, %v125
    %v137 = vpack.c.b16 %v128, %v127
    %v138 = vpack.c.b16 %v130, %v129
    %v141 = vunpack.c.l.b16 %v92
    %v142 = vunpack.c.l.b16 %v93
    %v143 = vpack.c.b16 %v142, %v141
    %vm145 = vcmask 130048
    %v147 = vsel %vm145, %v131, 0
    %v150 = vsel %vm145, %v132, 0
    %v153 = vsel %vm145, %v133, 0
    %v156 = vsel %vm145, %v134, 0
    %v159 = vsel %vm145, %v135, 0
    %v162 = vsel %vm145, %v136, 0
    %v165 = vsel %vm145, %v137, 0
    %v168 = vsel %vm145, %v138, 0
    %170 = vmatprep.subr.bf16.mxu0 0
    %171 = vmatpush1.bf16.msra.mxu0 0
    %172 = vmatprep.subr.bf16.mxu0 0
    %173 = vmatpush1.bf16.msra.mxu0 0
    %174 = vmatprep.subr.bf16.mxu0 0
    %175 = vmatpush1.bf16.msra.mxu0 0
    %176 = vmatprep.subr.bf16.mxu0 0
    %177 = vmatpush1.bf16.msra.mxu0 0
    %178 = vmatprep.subr.bf16.mxu0 0
    %179 = vmatpush1.bf16.msra.mxu0 0
    %180 = vmatprep.subr.bf16.mxu0 0
    %181 = vmatpush1.bf16.msra.mxu0 0
    %182 = vmatprep.subr.bf16.mxu0 0
    %183 = vmatpush1.bf16.msra.mxu0 0
    %184 = vmatprep.subr.bf16.mxu0 0
    %185 = vmatpush1.bf16.msra.mxu0 %v143
    %186 = vmatprep.subr.bf16.mxu0 0
    %187 = vmatpush2.bf16.msra.mxu0 0
    %188 = vmatprep.subr.bf16.mxu0 0
    %189 = vmatpush2.bf16.msra.mxu0 0
    %190 = vmatprep.subr.bf16.mxu0 0
    %191 = vmatpush2.bf16.msra.mxu0 0
    %192 = vmatprep.subr.bf16.mxu0 0
    %193 = vmatpush2.bf16.msra.mxu0 0
    %194 = vmatprep.subr.bf16.mxu0 0
    %195 = vmatpush2.bf16.msra.mxu0 0
    %196 = vmatprep.subr.bf16.mxu0 0
    %197 = vmatpush2.bf16.msra.mxu0 0
    %198 = vmatprep.subr.bf16.mxu0 0
    %199 = vmatpush2.bf16.msra.mxu0 0
    %200 = vmatprep.subr.bf16.mxu0 0
    %201 = vmatpush2.bf16.msra.mxu0 0
    %202 = vmatprep.mubr.bf16.mxu0 0
    %203 = vmatmul.mubr.bf16.gmra.mxu0 %v147
    %v204 = vpop.f32.mrf.mxu0
    %v205 = vadd.f32 %v98, %v204
    %v206 = vpop.f32.mrf.mxu0
    %v207 = vpop.f32.mrf.mxu0
    %v208 = vadd.f32 %v98, %v207
    %v209 = vpop.f32.mrf.mxu0
    %210 = vmatprep.mubr.bf16.mxu0 0
    %211 = vmatmul.mubr.bf16.gmra.mxu0 %v150
    %v212 = vpop.f32.mrf.mxu0
    %v213 = vadd.f32 %v98, %v212
    %v214 = vpop.f32.mrf.mxu0
    %v215 = vpop.f32.mrf.mxu0
    %v216 = vadd.f32 %v98, %v215
    %v217 = vpop.f32.mrf.mxu0
    %218 = vmatprep.mubr.bf16.mxu0 0
    %219 = vmatmul.mubr.bf16.gmra.mxu0 %v153
    %v220 = vpop.f32.mrf.mxu0
    %v221 = vadd.f32 %v98, %v220
    %v222 = vpop.f32.mrf.mxu0
    %v223 = vpop.f32.mrf.mxu0
    %v224 = vadd.f32 %v98, %v223
    %v225 = vpop.f32.mrf.mxu0
    %226 = vmatprep.mubr.bf16.mxu0 0
    %227 = vmatmul.mubr.bf16.gmra.mxu0 %v156
    %v228 = vpop.f32.mrf.mxu0
    %v229 = vadd.f32 %v98, %v228
    %v230 = vpop.f32.mrf.mxu0
    %v231 = vpop.f32.mrf.mxu0
    %v232 = vadd.f32 %v98, %v231
    %v233 = vpop.f32.mrf.mxu0
    %234 = vmatprep.mubr.bf16.mxu0 0
    %235 = vmatmul.mubr.bf16.gmra.mxu0 %v159
    %v236 = vpop.f32.mrf.mxu0
    %v237 = vadd.f32 %v98, %v236
    %v238 = vpop.f32.mrf.mxu0
    %v239 = vpop.f32.mrf.mxu0
    %v240 = vadd.f32 %v98, %v239
    %v241 = vpop.f32.mrf.mxu0
    %242 = vmatprep.mubr.bf16.mxu0 0
    %243 = vmatmul.mubr.bf16.gmra.mxu0 %v162
    %v244 = vpop.f32.mrf.mxu0
    %v245 = vadd.f32 %v98, %v244
    %v246 = vpop.f32.mrf.mxu0
    %v247 = vpop.f32.mrf.mxu0
    %v248 = vadd.f32 %v98, %v247
    %v249 = vpop.f32.mrf.mxu0
    %250 = vmatprep.mubr.bf16.mxu0 0
    %251 = vmatmul.mubr.bf16.gmra.mxu0 %v165
    %v252 = vpop.f32.mrf.mxu0
    %v253 = vadd.f32 %v98, %v252
    %v254 = vpop.f32.mrf.mxu0
    %v255 = vpop.f32.mrf.mxu0
    %v256 = vadd.f32 %v98, %v255
    %v257 = vpop.f32.mrf.mxu0
    %258 = vmatprep.mubr.bf16.mxu0 0
    %259 = vmatmul.mubr.bf16.gmra.mxu0 %v168
    %v260 = vpop.f32.mrf.mxu0
    %v261 = vadd.f32 %v98, %v260
    %v262 = vpop.f32.mrf.mxu0
    %v263 = vpop.f32.mrf.mxu0
    %v264 = vadd.f32 %v98, %v263
    %v265 = vpop.f32.mrf.mxu0
    %266 = vdwg.mxu0
    %267 = vst [vmem:[#allocation2] sm:$0xff] %v205
    %268 = vst [vmem:[#allocation2 + $0x8] sm:$0xff] %v208
    %269 = vst [vmem:[#allocation2 + $0x10] sm:$0xff] %v213
    %270 = vst [vmem:[#allocation2 + $0x18] sm:$0xff] %v216
    %271 = vst [vmem:[#allocation2 + $0x20] sm:$0xff] %v221
    %272 = vst [vmem:[#allocation2 + $0x28] sm:$0xff] %v224
    %273 = vst [vmem:[#allocation2 + $0x30] sm:$0xff] %v229
    %274 = vst [vmem:[#allocation2 + $0x38] sm:$0xff] %v232
    %275 = vst [vmem:[#allocation2 + $0x40] sm:$0xff] %v237
    %276 = vst [vmem:[#allocation2 + $0x48] sm:$0xff] %v240
    %277 = vst [vmem:[#allocation2 + $0x50] sm:$0xff] %v245
    %278 = vst [vmem:[#allocation2 + $0x58] sm:$0xff] %v248
    %279 = vst [vmem:[#allocation2 + $0x60] sm:$0xff] %v253
    %280 = vst [vmem:[#allocation2 + $0x68] sm:$0xff] %v256
    %281 = vst [vmem:[#allocation2 + $0x70] sm:$0xff] %v261
    %282 = vst [vmem:[#allocation2 + $0x78] sm:$0xff] %v264
    %v283 = vld [vmem:[%s51] sm:$0xf]
    %v284 = vld [vmem:[%s51 + $0x4] sm:$0xf]
    %v285 = vld [vmem:[%s51 + $0x8] sm:$0xf]
    %v286 = vld [vmem:[%s51 + $0xc] sm:$0xf]
    %v287 = vld [vmem:[%s51 + $0x10] sm:$0xf]
    %v288 = vld [vmem:[%s51 + $0x14] sm:$0xf]
    %v289 = vld [vmem:[%s51 + $0x18] sm:$0xf]
    %v290 = vld [vmem:[%s51 + $0x1c] sm:$0xf]
    %v291 = vld [vmem:[%s51 + $0x20] sm:$0xf]
    %v292 = vld [vmem:[%s51 + $0x24] sm:$0xf]
    %v293 = vld [vmem:[%s51 + $0x28] sm:$0xf]
    %v294 = vld [vmem:[%s51 + $0x2c] sm:$0xf]
    %v295 = vld [vmem:[%s51 + $0x30] sm:$0xf]
    %v296 = vld [vmem:[%s51 + $0x34] sm:$0xf]
    %v297 = vld [vmem:[%s51 + $0x38] sm:$0xf]
    %v298 = vld [vmem:[%s51 + $0x3c] sm:$0xf]
    %s299 = scalar_lea.vmem %s2, 8
    %v300 = vld [vmem:[%s299] sm:$0xf]
    %v301 = vld [vmem:[%s299 + $0x4] sm:$0xf]
    %v302 = vld [vmem:[%s4 + $0x1] sm:$0x1]
    %v303 = vlaneseq
    %v304 = vshrl.u32 %v303, 7
    %v305 = vsub.s32 0, %v304
    %v306 = vrot.slane %v302, %v305
    %v323 = vunpack.c.l.b16 %v283
    %v324 = vunpack.c.l.b16 %v284
    %v325 = vunpack.c.l.b16 %v285
    %v326 = vunpack.c.l.b16 %v286
    %v327 = vunpack.c.l.b16 %v287
    %v328 = vunpack.c.l.b16 %v288
    %v329 = vunpack.c.l.b16 %v289
    %v330 = vunpack.c.l.b16 %v290
    %v331 = vunpack.c.l.b16 %v291
    %v332 = vunpack.c.l.b16 %v292
    %v333 = vunpack.c.l.b16 %v293
    %v334 = vunpack.c.l.b16 %v294
    %v335 = vunpack.c.l.b16 %v295
    %v336 = vunpack.c.l.b16 %v296
    %v337 = vunpack.c.l.b16 %v297
    %v338 = vunpack.c.l.b16 %v298
    %v339 = vpack.c.b16 %v324, %v323
    %v340 = vpack.c.b16 %v326, %v325
    %v341 = vpack.c.b16 %v328, %v327
    %v342 = vpack.c.b16 %v330, %v329
    %v343 = vpack.c.b16 %v332, %v331
    %v344 = vpack.c.b16 %v334, %v333
    %v345 = vpack.c.b16 %v336, %v335
    %v346 = vpack.c.b16 %v338, %v337
    %v349 = vunpack.c.l.b16 %v300
    %v350 = vunpack.c.l.b16 %v301
    %v351 = vpack.c.b16 %v350, %v349
    %v354 = vsel %vm145, %v339, 0
    %v357 = vsel %vm145, %v340, 0
    %v360 = vsel %vm145, %v341, 0
    %v363 = vsel %vm145, %v342, 0
    %v366 = vsel %vm145, %v343, 0
    %v369 = vsel %vm145, %v344, 0
    %v372 = vsel %vm145, %v345, 0
    %v375 = vsel %vm145, %v346, 0
    %377 = vmatprep.subr.bf16.mxu0 0
    %378 = vmatpush1.bf16.msra.mxu0 0
    %379 = vmatprep.subr.bf16.mxu0 0
    %380 = vmatpush1.bf16.msra.mxu0 0
    %381 = vmatprep.subr.bf16.mxu0 0
    %382 = vmatpush1.bf16.msra.mxu0 0
    %383 = vmatprep.subr.bf16.mxu0 0
    %384 = vmatpush1.bf16.msra.mxu0 0
    %385 = vmatprep.subr.bf16.mxu0 0
    %386 = vmatpush1.bf16.msra.mxu0 0
    %387 = vmatprep.subr.bf16.mxu0 0
    %388 = vmatpush1.bf16.msra.mxu0 0
    %389 = vmatprep.subr.bf16.mxu0 0
    %390 = vmatpush1.bf16.msra.mxu0 0
    %391 = vmatprep.subr.bf16.mxu0 0
    %392 = vmatpush1.bf16.msra.mxu0 %v351
    %393 = vmatprep.subr.bf16.mxu0 0
    %394 = vmatpush2.bf16.msra.mxu0 0
    %395 = vmatprep.subr.bf16.mxu0 0
    %396 = vmatpush2.bf16.msra.mxu0 0
    %397 = vmatprep.subr.bf16.mxu0 0
    %398 = vmatpush2.bf16.msra.mxu0 0
    %399 = vmatprep.subr.bf16.mxu0 0
    %400 = vmatpush2.bf16.msra.mxu0 0
    %401 = vmatprep.subr.bf16.mxu0 0
    %402 = vmatpush2.bf16.msra.mxu0 0
    %403 = vmatprep.subr.bf16.mxu0 0
    %404 = vmatpush2.bf16.msra.mxu0 0
    %405 = vmatprep.subr.bf16.mxu0 0
    %406 = vmatpush2.bf16.msra.mxu0 0
    %407 = vmatprep.subr.bf16.mxu0 0
    %408 = vmatpush2.bf16.msra.mxu0 0
    %409 = vmatprep.mubr.bf16.mxu0 0
    %410 = vmatmul.mubr.bf16.gmra.mxu0 %v354
    %v411 = vpop.f32.mrf.mxu0
    %v412 = vadd.f32 %v306, %v411
    %v413 = vpop.f32.mrf.mxu0
    %v414 = vpop.f32.mrf.mxu0
    %v415 = vadd.f32 %v306, %v414
    %v416 = vpop.f32.mrf.mxu0
    %417 = vmatprep.mubr.bf16.mxu0 0
    %418 = vmatmul.mubr.bf16.gmra.mxu0 %v357
    %v419 = vpop.f32.mrf.mxu0
    %v420 = vadd.f32 %v306, %v419
    %v421 = vpop.f32.mrf.mxu0
    %v422 = vpop.f32.mrf.mxu0
    %v423 = vadd.f32 %v306, %v422
    %v424 = vpop.f32.mrf.mxu0
    %425 = vmatprep.mubr.bf16.mxu0 0
    %426 = vmatmul.mubr.bf16.gmra.mxu0 %v360
    %v427 = vpop.f32.mrf.mxu0
    %v428 = vadd.f32 %v306, %v427
    %v429 = vpop.f32.mrf.mxu0
    %v430 = vpop.f32.mrf.mxu0
    %v431 = vadd.f32 %v306, %v430
    %v432 = vpop.f32.mrf.mxu0
    %433 = vmatprep.mubr.bf16.mxu0 0
    %434 = vmatmul.mubr.bf16.gmra.mxu0 %v363
    %v435 = vpop.f32.mrf.mxu0
    %v436 = vadd.f32 %v306, %v435
    %v437 = vpop.f32.mrf.mxu0
    %v438 = vpop.f32.mrf.mxu0
    %v439 = vadd.f32 %v306, %v438
    %v440 = vpop.f32.mrf.mxu0
    %441 = vmatprep.mubr.bf16.mxu0 0
    %442 = vmatmul.mubr.bf16.gmra.mxu0 %v366
    %v443 = vpop.f32.mrf.mxu0
    %v444 = vadd.f32 %v306, %v443
    %v445 = vpop.f32.mrf.mxu0
    %v446 = vpop.f32.mrf.mxu0
    %v447 = vadd.f32 %v306, %v446
    %v448 = vpop.f32.mrf.mxu0
    %449 = vmatprep.mubr.bf16.mxu0 0
    %450 = vmatmul.mubr.bf16.gmra.mxu0 %v369
    %v451 = vpop.f32.mrf.mxu0
    %v452 = vadd.f32 %v306, %v451
    %v453 = vpop.f32.mrf.mxu0
    %v454 = vpop.f32.mrf.mxu0
    %v455 = vadd.f32 %v306, %v454
    %v456 = vpop.f32.mrf.mxu0
    %457 = vmatprep.mubr.bf16.mxu0 0
    %458 = vmatmul.mubr.bf16.gmra.mxu0 %v372
    %v459 = vpop.f32.mrf.mxu0
    %v460 = vadd.f32 %v306, %v459
    %v461 = vpop.f32.mrf.mxu0
    %v462 = vpop.f32.mrf.mxu0
    %v463 = vadd.f32 %v306, %v462
    %v464 = vpop.f32.mrf.mxu0
    %465 = vmatprep.mubr.bf16.mxu0 0
    %466 = vmatmul.mubr.bf16.gmra.mxu0 %v375
    %v467 = vpop.f32.mrf.mxu0
    %v468 = vadd.f32 %v306, %v467
    %v469 = vpop.f32.mrf.mxu0
    %v470 = vpop.f32.mrf.mxu0
    %v471 = vadd.f32 %v306, %v470
    %v472 = vpop.f32.mrf.mxu0
    %473 = vdwg.mxu0
    %474 = vst [vmem:[#allocation3] sm:$0xff] %v412
    %475 = vst [vmem:[#allocation3 + $0x8] sm:$0xff] %v415
    %476 = vst [vmem:[#allocation3 + $0x10] sm:$0xff] %v420
    %477 = vst [vmem:[#allocation3 + $0x18] sm:$0xff] %v423
    %478 = vst [vmem:[#allocation3 + $0x20] sm:$0xff] %v428
    %479 = vst [vmem:[#allocation3 + $0x28] sm:$0xff] %v431
    %480 = vst [vmem:[#allocation3 + $0x30] sm:$0xff] %v436
    %481 = vst [vmem:[#allocation3 + $0x38] sm:$0xff] %v439
    %482 = vst [vmem:[#allocation3 + $0x40] sm:$0xff] %v444
    %483 = vst [vmem:[#allocation3 + $0x48] sm:$0xff] %v447
    %484 = vst [vmem:[#allocation3 + $0x50] sm:$0xff] %v452
    %485 = vst [vmem:[#allocation3 + $0x58] sm:$0xff] %v455
    %486 = vst [vmem:[#allocation3 + $0x60] sm:$0xff] %v460
    %487 = vst [vmem:[#allocation3 + $0x68] sm:$0xff] %v463
    %488 = vst [vmem:[#allocation3 + $0x70] sm:$0xff] %v468
    %489 = vst [vmem:[#allocation3 + $0x78] sm:$0xff] %v471
    %v490 = vld [vmem:[%s3] sm:$0xf]
    %v491 = vld [vmem:[%s3 + $0x4] sm:$0xf]
    %v492 = vld [vmem:[%s3 + $0x8] sm:$0xf]
    %v493 = vld [vmem:[%s3 + $0xc] sm:$0xf]
    %s494 = scalar_lea.vmem %s3, 16
    %v495 = vld [vmem:[%s494] sm:$0xf]
    %v496 = vld [vmem:[%s494 + $0x4] sm:$0xf]
    %v497 = vld [vmem:[%s494 + $0x8] sm:$0xf]
    %v498 = vld [vmem:[%s494 + $0xc] sm:$0xf]
    %v499 = vld [vmem:[#allocation4] sm:$0xff]
    %v500 = vld [vmem:[#allocation4 + $0x8] sm:$0xff]
    %v501 = vld [vmem:[#allocation6] sm:$0xff]
    %v502 = vld [vmem:[#allocation6 + $0x8] sm:$0xff]
    %s503 = scalar_lea.vmem [#allocation4], 16
    %v504 = vld [vmem:[%s503] sm:$0xff]
    %v505 = vld [vmem:[%s503 + $0x8] sm:$0xff]
    %s506 = scalar_lea.vmem [#allocation6], 16
    %v507 = vld [vmem:[%s506] sm:$0xff]
    %v508 = vld [vmem:[%s506 + $0x8] sm:$0xff]
    %v509 = vld [vmem:[#allocation2] sm:$0xff]
    %v510 = vld [vmem:[#allocation2 + $0x8] sm:$0xff]
    %v511 = vpack.c.bf16 %v500, %v499
    %v516 = vunpack.c.l.b16 %v490
    %v517 = vunpack.c.l.b16 %v491
    %v518 = vunpack.c.l.b16 %v492
    %v519 = vunpack.c.l.b16 %v493
    %v520 = vpack.c.b16 %v517, %v516
    %v521 = vpack.c.b16 %v519, %v518
    %vm524 = vcmask 261120
    %v526 = vsel %vm524, %v511, 0
    %528 = vmatprep.subr.bf16.mxu0 0
    %529 = vmatpush1.bf16.msra.mxu0 0
    %530 = vmatprep.subr.bf16.mxu0 0
    %531 = vmatpush1.bf16.msra.mxu0 0
    %532 = vmatprep.subr.bf16.mxu0 0
    %533 = vmatpush1.bf16.msra.mxu0 0
    %534 = vmatprep.subr.bf16.mxu0 0
    %535 = vmatpush1.bf16.msra.mxu0 0
    %536 = vmatprep.subr.bf16.mxu0 0
    %537 = vmatpush1.bf16.msra.mxu0 0
    %538 = vmatprep.subr.bf16.mxu0 0
    %539 = vmatpush1.bf16.msra.mxu0 0
    %540 = vmatprep.subr.bf16.mxu0 0
    %541 = vmatpush1.bf16.msra.mxu0 %v521
    %542 = vmatprep.subr.bf16.mxu0 0
    %543 = vmatpush1.bf16.msra.mxu0 %v520
    %544 = vmatprep.subr.bf16.mxu0 0
    %545 = vmatpush2.bf16.msra.mxu0 0
    %546 = vmatprep.subr.bf16.mxu0 0
    %547 = vmatpush2.bf16.msra.mxu0 0
    %548 = vmatprep.subr.bf16.mxu0 0
    %549 = vmatpush2.bf16.msra.mxu0 0
    %550 = vmatprep.subr.bf16.mxu0 0
    %551 = vmatpush2.bf16.msra.mxu0 0
    %552 = vmatprep.subr.bf16.mxu0 0
    %553 = vmatpush2.bf16.msra.mxu0 0
    %554 = vmatprep.subr.bf16.mxu0 0
    %555 = vmatpush2.bf16.msra.mxu0 0
    %556 = vmatprep.subr.bf16.mxu0 0
    %557 = vmatpush2.bf16.msra.mxu0 0
    %558 = vmatprep.subr.bf16.mxu0 0
    %559 = vmatpush2.bf16.msra.mxu0 0
    %560 = vmatprep.mubr.bf16.mxu0 0
    %561 = vmatmul.mubr.bf16.gmra.mxu0 %v526
    %v562 = vpop.f32.mrf.mxu0
    %v563 = vadd.f32 0.0, %v562
    %v564 = vpop.f32.mrf.mxu0
    %v565 = vpop.f32.mrf.mxu0
    %v566 = vadd.f32 0.0, %v565
    %v567 = vpop.f32.mrf.mxu0
    %568 = vdwg.mxu0
    %v569 = vadd.f32 %v509, %v563
    %v570 = vadd.f32 %v510, %v566
    %v571 = vxor.u32 %v569, 2147483648
    %v572 = vxor.u32 %v570, 2147483648
    %v573 = vmul.f32 %v571, 1.442695
    %v574 = vpow.pop %v573
    %v575 = vmul.f32 %v572, 1.442695
    %v576 = vpow.pop %v575
    %v577 = vadd.f32 %v574, 1.0
    %v578 = vadd.f32 %v576, 1.0
    %v579 = vrcp.pop %v577
    %v580 = vmul.f32 1.0, %v579
    %v581 = vrcp.pop %v578
    %v582 = vmul.f32 1.0, %v581
    %v583 = vtanh.pop %v569
    %v584 = vtanh.pop %v570
    %587 = vrot.lane.b32.xlu0 %v501, 32
    %v588 = vpop.permute.xlu0 %587
    %589 = vrot.lane.b32.xlu0 %v502, 32
    %v590 = vpop.permute.xlu0 %589
    %v593 = vmul.f32 %v580, %v588
    %v594 = vmul.f32 %v582, %v590
    %597 = vrot.lane.b32.xlu0 %v583, 64
    %v598 = vpop.permute.xlu0 %597
    %599 = vrot.lane.b32.xlu0 %v584, 64
    %v600 = vpop.permute.xlu0 %599
    %v603 = vmul.f32 %v580, %v598
    %v604 = vmul.f32 %v582, %v600
    %607 = vrot.lane.b32.xlu0 %v603, 32
    %v608 = vpop.permute.xlu0 %607
    %609 = vrot.lane.b32.xlu0 %v604, 32
    %v610 = vpop.permute.xlu0 %609
    %v613 = vadd.f32 %v593, %v608
    %v614 = vadd.f32 %v594, %v610
    %v615 = vtanh.pop %v613
    %v616 = vtanh.pop %v614
    %619 = vrot.lane.b32.xlu0 %v615, 64
    %v620 = vpop.permute.xlu0 %619
    %621 = vrot.lane.b32.xlu0 %v616, 64
    %v622 = vpop.permute.xlu0 %621
    %v625 = vmul.f32 %v580, %v620
    %v626 = vmul.f32 %v582, %v622
    %v627 = vld [vmem:[#allocation3 + $0x70] sm:$0xff]
    %v628 = vld [vmem:[#allocation3 + $0x78] sm:$0xff]
    %v629 = vpack.c.bf16 %v505, %v504
    %v634 = vunpack.c.l.b16 %v495
    %v635 = vunpack.c.l.b16 %v496
    %v636 = vunpack.c.l.b16 %v497
    %v637 = vunpack.c.l.b16 %v498
    %v638 = vpack.c.b16 %v635, %v634
    %v639 = vpack.c.b16 %v637, %v636
    %v643 = vsel %vm524, %v629, 0
    %645 = vmatprep.subr.bf16.mxu0 0
    %646 = vmatpush1.bf16.msra.mxu0 0
    %647 = vmatprep.subr.bf16.mxu0 0
    %648 = vmatpush1.bf16.msra.mxu0 0
    %649 = vmatprep.subr.bf16.mxu0 0
    %650 = vmatpush1.bf16.msra.mxu0 0
    %651 = vmatprep.subr.bf16.mxu0 0
    %652 = vmatpush1.bf16.msra.mxu0 0
    %653 = vmatprep.subr.bf16.mxu0 0
    %654 = vmatpush1.bf16.msra.mxu0 0
    %655 = vmatprep.subr.bf16.mxu0 0
    %656 = vmatpush1.bf16.msra.mxu0 0
    %657 = vmatprep.subr.bf16.mxu0 0
    %658 = vmatpush1.bf16.msra.mxu0 %v639
    %659 = vmatprep.subr.bf16.mxu0 0
    %660 = vmatpush1.bf16.msra.mxu0 %v638
    %661 = vmatprep.subr.bf16.mxu0 0
    %662 = vmatpush2.bf16.msra.mxu0 0
    %663 = vmatprep.subr.bf16.mxu0 0
    %664 = vmatpush2.bf16.msra.mxu0 0
    %665 = vmatprep.subr.bf16.mxu0 0
    %666 = vmatpush2.bf16.msra.mxu0 0
    %667 = vmatprep.subr.bf16.mxu0 0
    %668 = vmatpush2.bf16.msra.mxu0 0
    %669 = vmatprep.subr.bf16.mxu0 0
    %670 = vmatpush2.bf16.msra.mxu0 0
    %671 = vmatprep.subr.bf16.mxu0 0
    %672 = vmatpush2.bf16.msra.mxu0 0
    %673 = vmatprep.subr.bf16.mxu0 0
    %674 = vmatpush2.bf16.msra.mxu0 0
    %675 = vmatprep.subr.bf16.mxu0 0
    %676 = vmatpush2.bf16.msra.mxu0 0
    %677 = vmatprep.mubr.bf16.mxu0 0
    %678 = vmatmul.mubr.bf16.gmra.mxu0 %v643
    %v679 = vpop.f32.mrf.mxu0
    %v680 = vadd.f32 0.0, %v679
    %v681 = vpop.f32.mrf.mxu0
    %v682 = vpop.f32.mrf.mxu0
    %v683 = vadd.f32 0.0, %v682
    %v684 = vpop.f32.mrf.mxu0
    %685 = vdwg.mxu0
    %v686 = vadd.f32 %v627, %v680
    %v687 = vadd.f32 %v628, %v683
    %v688 = vxor.u32 %v686, 2147483648
    %v689 = vxor.u32 %v687, 2147483648
    %v690 = vmul.f32 %v688, 1.442695
    %v691 = vpow.pop %v690
    %v692 = vmul.f32 %v689, 1.442695
    %v693 = vpow.pop %v692
    %v694 = vadd.f32 %v691, 1.0
    %v695 = vadd.f32 %v693, 1.0
    %v696 = vrcp.pop %v694
    %v697 = vmul.f32 1.0, %v696
    %v698 = vrcp.pop %v695
    %v699 = vmul.f32 1.0, %v698
    %v700 = vtanh.pop %v686
    %v701 = vtanh.pop %v687
    %704 = vrot.lane.b32.xlu0 %v507, 32
    %v705 = vpop.permute.xlu0 %704
    %706 = vrot.lane.b32.xlu0 %v508, 32
    %v707 = vpop.permute.xlu0 %706
    %v710 = vmul.f32 %v697, %v705
    %v711 = vmul.f32 %v699, %v707
    %714 = vrot.lane.b32.xlu0 %v700, 64
    %v715 = vpop.permute.xlu0 %714
    %716 = vrot.lane.b32.xlu0 %v701, 64
    %v717 = vpop.permute.xlu0 %716
    %v720 = vmul.f32 %v697, %v715
    %v721 = vmul.f32 %v699, %v717
    %724 = vrot.lane.b32.xlu0 %v720, 32
    %v725 = vpop.permute.xlu0 %724
    %726 = vrot.lane.b32.xlu0 %v721, 32
    %v727 = vpop.permute.xlu0 %726
    %v730 = vadd.f32 %v710, %v725
    %v731 = vadd.f32 %v711, %v727
    %v732 = vtanh.pop %v730
    %v733 = vtanh.pop %v731
    %736 = vrot.lane.b32.xlu0 %v732, 64
    %v737 = vpop.permute.xlu0 %736
    %738 = vrot.lane.b32.xlu0 %v733, 64
    %v739 = vpop.permute.xlu0 %738
    %v742 = vmul.f32 %v697, %v737
    %v743 = vmul.f32 %v699, %v739
    %v744 = vpack.c.bf16 %v626, %v625
    %v746 = vunpack.c.l.b16 %v744
    %v747 = vunpack.c.h.b16 %v744
    %v748 = vpack.c.b16 %v746, %v746
    %v749 = vpack.c.b16 %v747, %v747
    %750 = vrot.lane.b32.xlu0 %v748, 32
    %v751 = vpop.permute.xlu0 %750
    %752 = vrot.lane.b32.xlu0 %v749, 32
    %v753 = vpop.permute.xlu0 %752
    %vm756 = vcmask 257024
    %757 = vst.msk [vmem:[%s5] sm:$0xf] %vm756, %v751
    %758 = vst.msk [vmem:[%s5 + $0x4] sm:$0xf] %vm756, %v753
    %v759 = vpack.c.bf16 %v743, %v742
    %v761 = vunpack.c.l.b16 %v759
    %v762 = vunpack.c.h.b16 %v759
    %v763 = vpack.c.b16 %v761, %v761
    %v764 = vpack.c.b16 %v762, %v762
    %765 = vrot.lane.b32.xlu0 %v763, 32
    %v766 = vpop.permute.xlu0 %765
    %767 = vrot.lane.b32.xlu0 %v764, 32
    %v768 = vpop.permute.xlu0 %767
    %771 = vst.msk [vmem:[%s59 + $0x38] sm:$0xf] %vm756, %v766
    %772 = vst.msk [vmem:[%s59 + $0x3c] sm:$0xf] %vm756, %v768
    %v773 = vld [vmem:[#allocation2 + $0x10] sm:$0xff]
    %v774 = vld [vmem:[#allocation2 + $0x18] sm:$0xff]
    %775 = vrot.lane.b32.xlu0 %v744, 32
    %v776 = vpop.permute.xlu0 %775
    %v778 = vsel %vm524, %v776, 0
    %780 = vmatprep.subr.bf16.mxu0 0
    %781 = vmatpush1.bf16.msra.mxu0 0
    %782 = vmatprep.subr.bf16.mxu0 0
    %783 = vmatpush1.bf16.msra.mxu0 0
    %784 = vmatprep.subr.bf16.mxu0 0
    %785 = vmatpush1.bf16.msra.mxu0 0
    %786 = vmatprep.subr.bf16.mxu0 0
    %787 = vmatpush1.bf16.msra.mxu0 0
    %788 = vmatprep.subr.bf16.mxu0 0
    %789 = vmatpush1.bf16.msra.mxu0 0
    %790 = vmatprep.subr.bf16.mxu0 0
    %791 = vmatpush1.bf16.msra.mxu0 0
    %792 = vmatprep.subr.bf16.mxu0 0
    %793 = vmatpush1.bf16.msra.mxu0 %v521
    %794 = vmatprep.subr.bf16.mxu0 0
    %795 = vmatpush1.bf16.msra.mxu0 %v520
    %796 = vmatprep.subr.bf16.mxu0 0
    %797 = vmatpush2.bf16.msra.mxu0 0
    %798 = vmatprep.subr.bf16.mxu0 0
    %799 = vmatpush2.bf16.msra.mxu0 0
    %800 = vmatprep.subr.bf16.mxu0 0
    %801 = vmatpush2.bf16.msra.mxu0 0
    %802 = vmatprep.subr.bf16.mxu0 0
    %803 = vmatpush2.bf16.msra.mxu0 0
    %804 = vmatprep.subr.bf16.mxu0 0
    %805 = vmatpush2.bf16.msra.mxu0 0
    %806 = vmatprep.subr.bf16.mxu0 0
    %807 = vmatpush2.bf16.msra.mxu0 0
    %808 = vmatprep.subr.bf16.mxu0 0
    %809 = vmatpush2.bf16.msra.mxu0 0
    %810 = vmatprep.subr.bf16.mxu0 0
    %811 = vmatpush2.bf16.msra.mxu0 0
    %812 = vmatprep.mubr.bf16.mxu0 0
    %813 = vmatmul.mubr.bf16.gmra.mxu0 %v778
    %v814 = vpop.f32.mrf.mxu0
    %v815 = vadd.f32 0.0, %v814
    %v816 = vpop.f32.mrf.mxu0
    %v817 = vpop.f32.mrf.mxu0
    %v818 = vadd.f32 0.0, %v817
    %v819 = vpop.f32.mrf.mxu0
    %820 = vdwg.mxu0
    %v821 = vadd.f32 %v773, %v815
    %v822 = vadd.f32 %v774, %v818
    %v823 = vxor.u32 %v821, 2147483648
    %v824 = vxor.u32 %v822, 2147483648
    %v825 = vmul.f32 %v823, 1.442695
    %v826 = vpow.pop %v825
    %v827 = vmul.f32 %v824, 1.442695
    %v828 = vpow.pop %v827
    %v829 = vadd.f32 %v826, 1.0
    %v830 = vadd.f32 %v828, 1.0
    %v831 = vrcp.pop %v829
    %v832 = vmul.f32 1.0, %v831
    %v833 = vrcp.pop %v830
    %v834 = vmul.f32 1.0, %v833
    %v835 = vtanh.pop %v821
    %v836 = vtanh.pop %v822
    %v837 = vmul.f32 %v832, %v613
    %v838 = vmul.f32 %v834, %v614
    %841 = vrot.lane.b32.xlu0 %v835, 64
    %v842 = vpop.permute.xlu0 %841
    %843 = vrot.lane.b32.xlu0 %v836, 64
    %v844 = vpop.permute.xlu0 %843
    %v847 = vmul.f32 %v832, %v842
    %v848 = vmul.f32 %v834, %v844
    %851 = vrot.lane.b32.xlu0 %v847, 32
    %v852 = vpop.permute.xlu0 %851
    %853 = vrot.lane.b32.xlu0 %v848, 32
    %v854 = vpop.permute.xlu0 %853
    %v857 = vadd.f32 %v837, %v852
    %v858 = vadd.f32 %v838, %v854
    %v859 = vtanh.pop %v857
    %v860 = vtanh.pop %v858
    %863 = vrot.lane.b32.xlu0 %v859, 64
    %v864 = vpop.permute.xlu0 %863
    %865 = vrot.lane.b32.xlu0 %v860, 64
    %v866 = vpop.permute.xlu0 %865
    %v869 = vmul.f32 %v832, %v864
    %v870 = vmul.f32 %v834, %v866
    %v871 = vld [vmem:[#allocation3 + $0x60] sm:$0xff]
    %v872 = vld [vmem:[#allocation3 + $0x68] sm:$0xff]
    %873 = vrot.lane.b32.xlu0 %v759, 32
    %v874 = vpop.permute.xlu0 %873
    %v876 = vsel %vm524, %v874, 0
    %878 = vmatprep.subr.bf16.mxu0 0
    %879 = vmatpush1.bf16.msra.mxu0 0
    %880 = vmatprep.subr.bf16.mxu0 0
    %881 = vmatpush1.bf16.msra.mxu0 0
    %882 = vmatprep.subr.bf16.mxu0 0
    %883 = vmatpush1.bf16.msra.mxu0 0
    %884 = vmatprep.subr.bf16.mxu0 0
    %885 = vmatpush1.bf16.msra.mxu0 0
    %886 = vmatprep.subr.bf16.mxu0 0
    %887 = vmatpush1.bf16.msra.mxu0 0
    %888 = vmatprep.subr.bf16.mxu0 0
    %889 = vmatpush1.bf16.msra.mxu0 0
    %890 = vmatprep.subr.bf16.mxu0 0
    %891 = vmatpush1.bf16.msra.mxu0 %v639
    %892 = vmatprep.subr.bf16.mxu0 0
    %893 = vmatpush1.bf16.msra.mxu0 %v638
    %894 = vmatprep.subr.bf16.mxu0 0
    %895 = vmatpush2.bf16.msra.mxu0 0
    %896 = vmatprep.subr.bf16.mxu0 0
    %897 = vmatpush2.bf16.msra.mxu0 0
    %898 = vmatprep.subr.bf16.mxu0 0
    %899 = vmatpush2.bf16.msra.mxu0 0
    %900 = vmatprep.subr.bf16.mxu0 0
    %901 = vmatpush2.bf16.msra.mxu0 0
    %902 = vmatprep.subr.bf16.mxu0 0
    %903 = vmatpush2.bf16.msra.mxu0 0
    %904 = vmatprep.subr.bf16.mxu0 0
    %905 = vmatpush2.bf16.msra.mxu0 0
    %906 = vmatprep.subr.bf16.mxu0 0
    %907 = vmatpush2.bf16.msra.mxu0 0
    %908 = vmatprep.subr.bf16.mxu0 0
    %909 = vmatpush2.bf16.msra.mxu0 0
    %910 = vmatprep.mubr.bf16.mxu0 0
    %911 = vmatmul.mubr.bf16.gmra.mxu0 %v876
    %v912 = vpop.f32.mrf.mxu0
    %v913 = vadd.f32 0.0, %v912
    %v914 = vpop.f32.mrf.mxu0
    %v915 = vpop.f32.mrf.mxu0
    %v916 = vadd.f32 0.0, %v915
    %v917 = vpop.f32.mrf.mxu0
    %918 = vdwg.mxu0
    %v919 = vadd.f32 %v871, %v913
    %v920 = vadd.f32 %v872, %v916
    %v921 = vxor.u32 %v919, 2147483648
    %v922 = vxor.u32 %v920, 2147483648
    %v923 = vmul.f32 %v921, 1.442695
    %v924 = vpow.pop %v923
    %v925 = vmul.f32 %v922, 1.442695
    %v926 = vpow.pop %v925
    %v927 = vadd.f32 %v924, 1.0
    %v928 = vadd.f32 %v926, 1.0
    %v929 = vrcp.pop %v927
    %v930 = vmul.f32 1.0, %v929
    %v931 = vrcp.pop %v928
    %v932 = vmul.f32 1.0, %v931
    %v933 = vtanh.pop %v919
    %v934 = vtanh.pop %v920
    %v935 = vmul.f32 %v930, %v730
    %v936 = vmul.f32 %v932, %v731
    %939 = vrot.lane.b32.xlu0 %v933, 64
    %v940 = vpop.permute.xlu0 %939
    %941 = vrot.lane.b32.xlu0 %v934, 64
    %v942 = vpop.permute.xlu0 %941
    %v945 = vmul.f32 %v930, %v940
    %v946 = vmul.f32 %v932, %v942
    %949 = vrot.lane.b32.xlu0 %v945, 32
    %v950 = vpop.permute.xlu0 %949
    %951 = vrot.lane.b32.xlu0 %v946, 32
    %v952 = vpop.permute.xlu0 %951
    %v955 = vadd.f32 %v935, %v950
    %v956 = vadd.f32 %v936, %v952
    %v957 = vtanh.pop %v955
    %v958 = vtanh.pop %v956
    %961 = vrot.lane.b32.xlu0 %v957, 64
    %v962 = vpop.permute.xlu0 %961
    %963 = vrot.lane.b32.xlu0 %v958, 64
    %v964 = vpop.permute.xlu0 %963
    %v967 = vmul.f32 %v930, %v962
    %v968 = vmul.f32 %v932, %v964
    %v969 = vpack.c.bf16 %v870, %v869
    %v971 = vunpack.c.l.b16 %v969
    %v972 = vunpack.c.h.b16 %v969
    %v973 = vpack.c.b16 %v971, %v971
    %v974 = vpack.c.b16 %v972, %v972
    %975 = vrot.lane.b32.xlu0 %v973, 32
    %v976 = vpop.permute.xlu0 %975
    %977 = vrot.lane.b32.xlu0 %v974, 32
    %v978 = vpop.permute.xlu0 %977
    %981 = vst.msk [vmem:[%s5 + $0x8] sm:$0xf] %vm756, %v976
    %982 = vst.msk [vmem:[%s5 + $0xc] sm:$0xf] %vm756, %v978
    %v983 = vpack.c.bf16 %v968, %v967
    %v985 = vunpack.c.l.b16 %v983
    %v986 = vunpack.c.h.b16 %v983
    %v987 = vpack.c.b16 %v985, %v985
    %v988 = vpack.c.b16 %v986, %v986
    %989 = vrot.lane.b32.xlu0 %v987, 32
    %v990 = vpop.permute.xlu0 %989
    %991 = vrot.lane.b32.xlu0 %v988, 32
    %v992 = vpop.permute.xlu0 %991
    %995 = vst.msk [vmem:[%s59 + $0x30] sm:$0xf] %vm756, %v990
    %996 = vst.msk [vmem:[%s59 + $0x34] sm:$0xf] %vm756, %v992
    %v997 = vld [vmem:[#allocation2 + $0x20] sm:$0xff]
    %v998 = vld [vmem:[#allocation2 + $0x28] sm:$0xff]
    %999 = vrot.lane.b32.xlu0 %v969, 32
    %v1000 = vpop.permute.xlu0 %999
    %v1002 = vsel %vm524, %v1000, 0
    %1004 = vmatprep.subr.bf16.mxu0 0
    %1005 = vmatpush1.bf16.msra.mxu0 0
    %1006 = vmatprep.subr.bf16.mxu0 0
    %1007 = vmatpush1.bf16.msra.mxu0 0
    %1008 = vmatprep.subr.bf16.mxu0 0
    %1009 = vmatpush1.bf16.msra.mxu0 0
    %1010 = vmatprep.subr.bf16.mxu0 0
    %1011 = vmatpush1.bf16.msra.mxu0 0
    %1012 = vmatprep.subr.bf16.mxu0 0
    %1013 = vmatpush1.bf16.msra.mxu0 0
    %1014 = vmatprep.subr.bf16.mxu0 0
    %1015 = vmatpush1.bf16.msra.mxu0 0
    %1016 = vmatprep.subr.bf16.mxu0 0
    %1017 = vmatpush1.bf16.msra.mxu0 %v521
    %1018 = vmatprep.subr.bf16.mxu0 0
    %1019 = vmatpush1.bf16.msra.mxu0 %v520
    %1020 = vmatprep.subr.bf16.mxu0 0
    %1021 = vmatpush2.bf16.msra.mxu0 0
    %1022 = vmatprep.subr.bf16.mxu0 0
    %1023 = vmatpush2.bf16.msra.mxu0 0
    %1024 = vmatprep.subr.bf16.mxu0 0
    %1025 = vmatpush2.bf16.msra.mxu0 0
    %1026 = vmatprep.subr.bf16.mxu0 0
    %1027 = vmatpush2.bf16.msra.mxu0 0
    %1028 = vmatprep.subr.bf16.mxu0 0
    %1029 = vmatpush2.bf16.msra.mxu0 0
    %1030 = vmatprep.subr.bf16.mxu0 0
    %1031 = vmatpush2.bf16.msra.mxu0 0
    %1032 = vmatprep.subr.bf16.mxu0 0
    %1033 = vmatpush2.bf16.msra.mxu0 0
    %1034 = vmatprep.subr.bf16.mxu0 0
    %1035 = vmatpush2.bf16.msra.mxu0 0
    %1036 = vmatprep.mubr.bf16.mxu0 0
    %1037 = vmatmul.mubr.bf16.gmra.mxu0 %v1002
    %v1038 = vpop.f32.mrf.mxu0
    %v1039 = vadd.f32 0.0, %v1038
    %v1040 = vpop.f32.mrf.mxu0
    %v1041 = vpop.f32.mrf.mxu0
    %v1042 = vadd.f32 0.0, %v1041
    %v1043 = vpop.f32.mrf.mxu0
    %1044 = vdwg.mxu0
    %v1045 = vadd.f32 %v997, %v1039
    %v1046 = vadd.f32 %v998, %v1042
    %v1047 = vxor.u32 %v1045, 2147483648
    %v1048 = vxor.u32 %v1046, 2147483648
    %v1049 = vmul.f32 %v1047, 1.442695
    %v1050 = vpow.pop %v1049
    %v1051 = vmul.f32 %v1048, 1.442695
    %v1052 = vpow.pop %v1051
    %v1053 = vadd.f32 %v1050, 1.0
    %v1054 = vadd.f32 %v1052, 1.0
    %v1055 = vrcp.pop %v1053
    %v1056 = vmul.f32 1.0, %v1055
    %v1057 = vrcp.pop %v1054
    %v1058 = vmul.f32 1.0, %v1057
    %v1059 = vtanh.pop %v1045
    %v1060 = vtanh.pop %v1046
    %v1061 = vmul.f32 %v1056, %v857
    %v1062 = vmul.f32 %v1058, %v858
    %1065 = vrot.lane.b32.xlu0 %v1059, 64
    %v1066 = vpop.permute.xlu0 %1065
    %1067 = vrot.lane.b32.xlu0 %v1060, 64
    %v1068 = vpop.permute.xlu0 %1067
    %v1071 = vmul.f32 %v1056, %v1066
    %v1072 = vmul.f32 %v1058, %v1068
    %1075 = vrot.lane.b32.xlu0 %v1071, 32
    %v1076 = vpop.permute.xlu0 %1075
    %1077 = vrot.lane.b32.xlu0 %v1072, 32
    %v1078 = vpop.permute.xlu0 %1077
    %v1081 = vadd.f32 %v1061, %v1076
    %v1082 = vadd.f32 %v1062, %v1078
    %v1083 = vtanh.pop %v1081
    %v1084 = vtanh.pop %v1082
    %1087 = vrot.lane.b32.xlu0 %v1083, 64
    %v1088 = vpop.permute.xlu0 %1087
    %1089 = vrot.lane.b32.xlu0 %v1084, 64
    %v1090 = vpop.permute.xlu0 %1089
    %v1093 = vmul.f32 %v1056, %v1088
    %v1094 = vmul.f32 %v1058, %v1090
    %v1095 = vld [vmem:[#allocation3 + $0x50] sm:$0xff]
    %v1096 = vld [vmem:[#allocation3 + $0x58] sm:$0xff]
    %1097 = vrot.lane.b32.xlu0 %v983, 32
    %v1098 = vpop.permute.xlu0 %1097
    %v1100 = vsel %vm524, %v1098, 0
    %1102 = vmatprep.subr.bf16.mxu0 0
    %1103 = vmatpush1.bf16.msra.mxu0 0
    %1104 = vmatprep.subr.bf16.mxu0 0
    %1105 = vmatpush1.bf16.msra.mxu0 0
    %1106 = vmatprep.subr.bf16.mxu0 0
    %1107 = vmatpush1.bf16.msra.mxu0 0
    %1108 = vmatprep.subr.bf16.mxu0 0
    %1109 = vmatpush1.bf16.msra.mxu0 0
    %1110 = vmatprep.subr.bf16.mxu0 0
    %1111 = vmatpush1.bf16.msra.mxu0 0
    %1112 = vmatprep.subr.bf16.mxu0 0
    %1113 = vmatpush1.bf16.msra.mxu0 0
    %1114 = vmatprep.subr.bf16.mxu0 0
    %1115 = vmatpush1.bf16.msra.mxu0 %v639
    %1116 = vmatprep.subr.bf16.mxu0 0
    %1117 = vmatpush1.bf16.msra.mxu0 %v638
    %1118 = vmatprep.subr.bf16.mxu0 0
    %1119 = vmatpush2.bf16.msra.mxu0 0
    %1120 = vmatprep.subr.bf16.mxu0 0
    %1121 = vmatpush2.bf16.msra.mxu0 0
    %1122 = vmatprep.subr.bf16.mxu0 0
    %1123 = vmatpush2.bf16.msra.mxu0 0
    %1124 = vmatprep.subr.bf16.mxu0 0
    %1125 = vmatpush2.bf16.msra.mxu0 0
    %1126 = vmatprep.subr.bf16.mxu0 0
    %1127 = vmatpush2.bf16.msra.mxu0 0
    %1128 = vmatprep.subr.bf16.mxu0 0
    %1129 = vmatpush2.bf16.msra.mxu0 0
    %1130 = vmatprep.subr.bf16.mxu0 0
    %1131 = vmatpush2.bf16.msra.mxu0 0
    %1132 = vmatprep.subr.bf16.mxu0 0
    %1133 = vmatpush2.bf16.msra.mxu0 0
    %1134 = vmatprep.mubr.bf16.mxu0 0
    %1135 = vmatmul.mubr.bf16.gmra.mxu0 %v1100
    %v1136 = vpop.f32.mrf.mxu0
    %v1137 = vadd.f32 0.0, %v1136
    %v1138 = vpop.f32.mrf.mxu0
    %v1139 = vpop.f32.mrf.mxu0
    %v1140 = vadd.f32 0.0, %v1139
    %v1141 = vpop.f32.mrf.mxu0
    %1142 = vdwg.mxu0
    %v1143 = vadd.f32 %v1095, %v1137
    %v1144 = vadd.f32 %v1096, %v1140
    %v1145 = vxor.u32 %v1143, 2147483648
    %v1146 = vxor.u32 %v1144, 2147483648
    %v1147 = vmul.f32 %v1145, 1.442695
    %v1148 = vpow.pop %v1147
    %v1149 = vmul.f32 %v1146, 1.442695
    %v1150 = vpow.pop %v1149
    %v1151 = vadd.f32 %v1148, 1.0
    %v1152 = vadd.f32 %v1150, 1.0
    %v1153 = vrcp.pop %v1151
    %v1154 = vmul.f32 1.0, %v1153
    %v1155 = vrcp.pop %v1152
    %v1156 = vmul.f32 1.0, %v1155
    %v1157 = vtanh.pop %v1143
    %v1158 = vtanh.pop %v1144
    %v1159 = vmul.f32 %v1154, %v955
    %v1160 = vmul.f32 %v1156, %v956
    %1163 = vrot.lane.b32.xlu0 %v1157, 64
    %v1164 = vpop.permute.xlu0 %1163
    %1165 = vrot.lane.b32.xlu0 %v1158, 64
    %v1166 = vpop.permute.xlu0 %1165
    %v1169 = vmul.f32 %v1154, %v1164
    %v1170 = vmul.f32 %v1156, %v1166
    %1173 = vrot.lane.b32.xlu0 %v1169, 32
    %v1174 = vpop.permute.xlu0 %1173
    %1175 = vrot.lane.b32.xlu0 %v1170, 32
    %v1176 = vpop.permute.xlu0 %1175
    %v1179 = vadd.f32 %v1159, %v1174
    %v1180 = vadd.f32 %v1160, %v1176
    %v1181 = vtanh.pop %v1179
    %v1182 = vtanh.pop %v1180
    %1185 = vrot.lane.b32.xlu0 %v1181, 64
    %v1186 = vpop.permute.xlu0 %1185
    %1187 = vrot.lane.b32.xlu0 %v1182, 64
    %v1188 = vpop.permute.xlu0 %1187
    %v1191 = vmul.f32 %v1154, %v1186
    %v1192 = vmul.f32 %v1156, %v1188
    %v1193 = vpack.c.bf16 %v1094, %v1093
    %v1195 = vunpack.c.l.b16 %v1193
    %v1196 = vunpack.c.h.b16 %v1193
    %v1197 = vpack.c.b16 %v1195, %v1195
    %v1198 = vpack.c.b16 %v1196, %v1196
    %1199 = vrot.lane.b32.xlu0 %v1197, 32
    %v1200 = vpop.permute.xlu0 %1199
    %1201 = vrot.lane.b32.xlu0 %v1198, 32
    %v1202 = vpop.permute.xlu0 %1201
    %1205 = vst.msk [vmem:[%s5 + $0x10] sm:$0xf] %vm756, %v1200
    %1206 = vst.msk [vmem:[%s5 + $0x14] sm:$0xf] %vm756, %v1202
    %v1207 = vpack.c.bf16 %v1192, %v1191
    %v1209 = vunpack.c.l.b16 %v1207
    %v1210 = vunpack.c.h.b16 %v1207
    %v1211 = vpack.c.b16 %v1209, %v1209
    %v1212 = vpack.c.b16 %v1210, %v1210
    %1213 = vrot.lane.b32.xlu0 %v1211, 32
    %v1214 = vpop.permute.xlu0 %1213
    %1215 = vrot.lane.b32.xlu0 %v1212, 32
    %v1216 = vpop.permute.xlu0 %1215
    %1219 = vst.msk [vmem:[%s59 + $0x28] sm:$0xf] %vm756, %v1214
    %1220 = vst.msk [vmem:[%s59 + $0x2c] sm:$0xf] %vm756, %v1216
    %v1221 = vld [vmem:[#allocation2 + $0x30] sm:$0xff]
    %v1222 = vld [vmem:[#allocation2 + $0x38] sm:$0xff]
    %1223 = vrot.lane.b32.xlu0 %v1193, 32
    %v1224 = vpop.permute.xlu0 %1223
    %v1226 = vsel %vm524, %v1224, 0
    %1228 = vmatprep.subr.bf16.mxu0 0
    %1229 = vmatpush1.bf16.msra.mxu0 0
    %1230 = vmatprep.subr.bf16.mxu0 0
    %1231 = vmatpush1.bf16.msra.mxu0 0
    %1232 = vmatprep.subr.bf16.mxu0 0
    %1233 = vmatpush1.bf16.msra.mxu0 0
    %1234 = vmatprep.subr.bf16.mxu0 0
    %1235 = vmatpush1.bf16.msra.mxu0 0
    %1236 = vmatprep.subr.bf16.mxu0 0
    %1237 = vmatpush1.bf16.msra.mxu0 0
    %1238 = vmatprep.subr.bf16.mxu0 0
    %1239 = vmatpush1.bf16.msra.mxu0 0
    %1240 = vmatprep.subr.bf16.mxu0 0
    %1241 = vmatpush1.bf16.msra.mxu0 %v521
    %1242 = vmatprep.subr.bf16.mxu0 0
    %1243 = vmatpush1.bf16.msra.mxu0 %v520
    %1244 = vmatprep.subr.bf16.mxu0 0
    %1245 = vmatpush2.bf16.msra.mxu0 0
    %1246 = vmatprep.subr.bf16.mxu0 0
    %1247 = vmatpush2.bf16.msra.mxu0 0
    %1248 = vmatprep.subr.bf16.mxu0 0
    %1249 = vmatpush2.bf16.msra.mxu0 0
    %1250 = vmatprep.subr.bf16.mxu0 0
    %1251 = vmatpush2.bf16.msra.mxu0 0
    %1252 = vmatprep.subr.bf16.mxu0 0
    %1253 = vmatpush2.bf16.msra.mxu0 0
    %1254 = vmatprep.subr.bf16.mxu0 0
    %1255 = vmatpush2.bf16.msra.mxu0 0
    %1256 = vmatprep.subr.bf16.mxu0 0
    %1257 = vmatpush2.bf16.msra.mxu0 0
    %1258 = vmatprep.subr.bf16.mxu0 0
    %1259 = vmatpush2.bf16.msra.mxu0 0
    %1260 = vmatprep.mubr.bf16.mxu0 0
    %1261 = vmatmul.mubr.bf16.gmra.mxu0 %v1226
    %v1262 = vpop.f32.mrf.mxu0
    %v1263 = vadd.f32 0.0, %v1262
    %v1264 = vpop.f32.mrf.mxu0
    %v1265 = vpop.f32.mrf.mxu0
    %v1266 = vadd.f32 0.0, %v1265
    %v1267 = vpop.f32.mrf.mxu0
    %1268 = vdwg.mxu0
    %v1269 = vadd.f32 %v1221, %v1263
    %v1270 = vadd.f32 %v1222, %v1266
    %v1271 = vxor.u32 %v1269, 2147483648
    %v1272 = vxor.u32 %v1270, 2147483648
    %v1273 = vmul.f32 %v1271, 1.442695
    %v1274 = vpow.pop %v1273
    %v1275 = vmul.f32 %v1272, 1.442695
    %v1276 = vpow.pop %v1275
    %v1277 = vadd.f32 %v1274, 1.0
    %v1278 = vadd.f32 %v1276, 1.0
    %v1279 = vrcp.pop %v1277
    %v1280 = vmul.f32 1.0, %v1279
    %v1281 = vrcp.pop %v1278
    %v1282 = vmul.f32 1.0, %v1281
    %v1283 = vtanh.pop %v1269
    %v1284 = vtanh.pop %v1270
    %v1285 = vmul.f32 %v1280, %v1081
    %v1286 = vmul.f32 %v1282, %v1082
    %1289 = vrot.lane.b32.xlu0 %v1283, 64
    %v1290 = vpop.permute.xlu0 %1289
    %1291 = vrot.lane.b32.xlu0 %v1284, 64
    %v1292 = vpop.permute.xlu0 %1291
    %v1295 = vmul.f32 %v1280, %v1290
    %v1296 = vmul.f32 %v1282, %v1292
    %1299 = vrot.lane.b32.xlu0 %v1295, 32
    %v1300 = vpop.permute.xlu0 %1299
    %1301 = vrot.lane.b32.xlu0 %v1296, 32
    %v1302 = vpop.permute.xlu0 %1301
    %v1305 = vadd.f32 %v1285, %v1300
    %v1306 = vadd.f32 %v1286, %v1302
    %v1307 = vtanh.pop %v1305
    %v1308 = vtanh.pop %v1306
    %1311 = vrot.lane.b32.xlu0 %v1307, 64
    %v1312 = vpop.permute.xlu0 %1311
    %1313 = vrot.lane.b32.xlu0 %v1308, 64
    %v1314 = vpop.permute.xlu0 %1313
    %v1317 = vmul.f32 %v1280, %v1312
    %v1318 = vmul.f32 %v1282, %v1314
    %v1319 = vld [vmem:[#allocation3 + $0x40] sm:$0xff]
    %v1320 = vld [vmem:[#allocation3 + $0x48] sm:$0xff]
    %1321 = vrot.lane.b32.xlu0 %v1207, 32
    %v1322 = vpop.permute.xlu0 %1321
    %v1324 = vsel %vm524, %v1322, 0
    %1326 = vmatprep.subr.bf16.mxu0 0
    %1327 = vmatpush1.bf16.msra.mxu0 0
    %1328 = vmatprep.subr.bf16.mxu0 0
    %1329 = vmatpush1.bf16.msra.mxu0 0
    %1330 = vmatprep.subr.bf16.mxu0 0
    %1331 = vmatpush1.bf16.msra.mxu0 0
    %1332 = vmatprep.subr.bf16.mxu0 0
    %1333 = vmatpush1.bf16.msra.mxu0 0
    %1334 = vmatprep.subr.bf16.mxu0 0
    %1335 = vmatpush1.bf16.msra.mxu0 0
    %1336 = vmatprep.subr.bf16.mxu0 0
    %1337 = vmatpush1.bf16.msra.mxu0 0
    %1338 = vmatprep.subr.bf16.mxu0 0
    %1339 = vmatpush1.bf16.msra.mxu0 %v639
    %1340 = vmatprep.subr.bf16.mxu0 0
    %1341 = vmatpush1.bf16.msra.mxu0 %v638
    %1342 = vmatprep.subr.bf16.mxu0 0
    %1343 = vmatpush2.bf16.msra.mxu0 0
    %1344 = vmatprep.subr.bf16.mxu0 0
    %1345 = vmatpush2.bf16.msra.mxu0 0
    %1346 = vmatprep.subr.bf16.mxu0 0
    %1347 = vmatpush2.bf16.msra.mxu0 0
    %1348 = vmatprep.subr.bf16.mxu0 0
    %1349 = vmatpush2.bf16.msra.mxu0 0
    %1350 = vmatprep.subr.bf16.mxu0 0
    %1351 = vmatpush2.bf16.msra.mxu0 0
    %1352 = vmatprep.subr.bf16.mxu0 0
    %1353 = vmatpush2.bf16.msra.mxu0 0
    %1354 = vmatprep.subr.bf16.mxu0 0
    %1355 = vmatpush2.bf16.msra.mxu0 0
    %1356 = vmatprep.subr.bf16.mxu0 0
    %1357 = vmatpush2.bf16.msra.mxu0 0
    %1358 = vmatprep.mubr.bf16.mxu0 0
    %1359 = vmatmul.mubr.bf16.gmra.mxu0 %v1324
    %v1360 = vpop.f32.mrf.mxu0
    %v1361 = vadd.f32 0.0, %v1360
    %v1362 = vpop.f32.mrf.mxu0
    %v1363 = vpop.f32.mrf.mxu0
    %v1364 = vadd.f32 0.0, %v1363
    %v1365 = vpop.f32.mrf.mxu0
    %1366 = vdwg.mxu0
    %v1367 = vadd.f32 %v1319, %v1361
    %v1368 = vadd.f32 %v1320, %v1364
    %v1369 = vxor.u32 %v1367, 2147483648
    %v1370 = vxor.u32 %v1368, 2147483648
    %v1371 = vmul.f32 %v1369, 1.442695
    %v1372 = vpow.pop %v1371
    %v1373 = vmul.f32 %v1370, 1.442695
    %v1374 = vpow.pop %v1373
    %v1375 = vadd.f32 %v1372, 1.0
    %v1376 = vadd.f32 %v1374, 1.0
    %v1377 = vrcp.pop %v1375
    %v1378 = vmul.f32 1.0, %v1377
    %v1379 = vrcp.pop %v1376
    %v1380 = vmul.f32 1.0, %v1379
    %v1381 = vtanh.pop %v1367
    %v1382 = vtanh.pop %v1368
    %v1383 = vmul.f32 %v1378, %v1179
    %v1384 = vmul.f32 %v1380, %v1180
    %1387 = vrot.lane.b32.xlu0 %v1381, 64
    %v1388 = vpop.permute.xlu0 %1387
    %1389 = vrot.lane.b32.xlu0 %v1382, 64
    %v1390 = vpop.permute.xlu0 %1389
    %v1393 = vmul.f32 %v1378, %v1388
    %v1394 = vmul.f32 %v1380, %v1390
    %1397 = vrot.lane.b32.xlu0 %v1393, 32
    %v1398 = vpop.permute.xlu0 %1397
    %1399 = vrot.lane.b32.xlu0 %v1394, 32
    %v1400 = vpop.permute.xlu0 %1399
    %v1403 = vadd.f32 %v1383, %v1398
    %v1404 = vadd.f32 %v1384, %v1400
    %v1405 = vtanh.pop %v1403
    %v1406 = vtanh.pop %v1404
    %1409 = vrot.lane.b32.xlu0 %v1405, 64
    %v1410 = vpop.permute.xlu0 %1409
    %1411 = vrot.lane.b32.xlu0 %v1406, 64
    %v1412 = vpop.permute.xlu0 %1411
    %v1415 = vmul.f32 %v1378, %v1410
    %v1416 = vmul.f32 %v1380, %v1412
    %v1417 = vpack.c.bf16 %v1318, %v1317
    %v1419 = vunpack.c.l.b16 %v1417
    %v1420 = vunpack.c.h.b16 %v1417
    %v1421 = vpack.c.b16 %v1419, %v1419
    %v1422 = vpack.c.b16 %v1420, %v1420
    %1423 = vrot.lane.b32.xlu0 %v1421, 32
    %v1424 = vpop.permute.xlu0 %1423
    %1425 = vrot.lane.b32.xlu0 %v1422, 32
    %v1426 = vpop.permute.xlu0 %1425
    %1429 = vst.msk [vmem:[%s5 + $0x18] sm:$0xf] %vm756, %v1424
    %1430 = vst.msk [vmem:[%s5 + $0x1c] sm:$0xf] %vm756, %v1426
    %v1431 = vpack.c.bf16 %v1416, %v1415
    %v1433 = vunpack.c.l.b16 %v1431
    %v1434 = vunpack.c.h.b16 %v1431
    %v1435 = vpack.c.b16 %v1433, %v1433
    %v1436 = vpack.c.b16 %v1434, %v1434
    %1437 = vrot.lane.b32.xlu0 %v1435, 32
    %v1438 = vpop.permute.xlu0 %1437
    %1439 = vrot.lane.b32.xlu0 %v1436, 32
    %v1440 = vpop.permute.xlu0 %1439
    %1443 = vst.msk [vmem:[%s59 + $0x20] sm:$0xf] %vm756, %v1438
    %1444 = vst.msk [vmem:[%s59 + $0x24] sm:$0xf] %vm756, %v1440
    %v1445 = vld [vmem:[#allocation2 + $0x40] sm:$0xff]
    %v1446 = vld [vmem:[#allocation2 + $0x48] sm:$0xff]
    %1447 = vrot.lane.b32.xlu0 %v1417, 32
    %v1448 = vpop.permute.xlu0 %1447
    %v1450 = vsel %vm524, %v1448, 0
    %1452 = vmatprep.subr.bf16.mxu0 0
    %1453 = vmatpush1.bf16.msra.mxu0 0
    %1454 = vmatprep.subr.bf16.mxu0 0
    %1455 = vmatpush1.bf16.msra.mxu0 0
    %1456 = vmatprep.subr.bf16.mxu0 0
    %1457 = vmatpush1.bf16.msra.mxu0 0
    %1458 = vmatprep.subr.bf16.mxu0 0
    %1459 = vmatpush1.bf16.msra.mxu0 0
    %1460 = vmatprep.subr.bf16.mxu0 0
    %1461 = vmatpush1.bf16.msra.mxu0 0
    %1462 = vmatprep.subr.bf16.mxu0 0
    %1463 = vmatpush1.bf16.msra.mxu0 0
    %1464 = vmatprep.subr.bf16.mxu0 0
    %1465 = vmatpush1.bf16.msra.mxu0 %v521
    %1466 = vmatprep.subr.bf16.mxu0 0
    %1467 = vmatpush1.bf16.msra.mxu0 %v520
    %1468 = vmatprep.subr.bf16.mxu0 0
    %1469 = vmatpush2.bf16.msra.mxu0 0
    %1470 = vmatprep.subr.bf16.mxu0 0
    %1471 = vmatpush2.bf16.msra.mxu0 0
    %1472 = vmatprep.subr.bf16.mxu0 0
    %1473 = vmatpush2.bf16.msra.mxu0 0
    %1474 = vmatprep.subr.bf16.mxu0 0
    %1475 = vmatpush2.bf16.msra.mxu0 0
    %1476 = vmatprep.subr.bf16.mxu0 0
    %1477 = vmatpush2.bf16.msra.mxu0 0
    %1478 = vmatprep.subr.bf16.mxu0 0
    %1479 = vmatpush2.bf16.msra.mxu0 0
    %1480 = vmatprep.subr.bf16.mxu0 0
    %1481 = vmatpush2.bf16.msra.mxu0 0
    %1482 = vmatprep.subr.bf16.mxu0 0
    %1483 = vmatpush2.bf16.msra.mxu0 0
    %1484 = vmatprep.mubr.bf16.mxu0 0
    %1485 = vmatmul.mubr.bf16.gmra.mxu0 %v1450
    %v1486 = vpop.f32.mrf.mxu0
    %v1487 = vadd.f32 0.0, %v1486
    %v1488 = vpop.f32.mrf.mxu0
    %v1489 = vpop.f32.mrf.mxu0
    %v1490 = vadd.f32 0.0, %v1489
    %v1491 = vpop.f32.mrf.mxu0
    %1492 = vdwg.mxu0
    %v1493 = vadd.f32 %v1445, %v1487
    %v1494 = vadd.f32 %v1446, %v1490
    %v1495 = vxor.u32 %v1493, 2147483648
    %v1496 = vxor.u32 %v1494, 2147483648
    %v1497 = vmul.f32 %v1495, 1.442695
    %v1498 = vpow.pop %v1497
    %v1499 = vmul.f32 %v1496, 1.442695
    %v1500 = vpow.pop %v1499
    %v1501 = vadd.f32 %v1498, 1.0
    %v1502 = vadd.f32 %v1500, 1.0
    %v1503 = vrcp.pop %v1501
    %v1504 = vmul.f32 1.0, %v1503
    %v1505 = vrcp.pop %v1502
    %v1506 = vmul.f32 1.0, %v1505
    %v1507 = vtanh.pop %v1493
    %v1508 = vtanh.pop %v1494
    %v1509 = vmul.f32 %v1504, %v1305
    %v1510 = vmul.f32 %v1506, %v1306
    %1513 = vrot.lane.b32.xlu0 %v1507, 64
    %v1514 = vpop.permute.xlu0 %1513
    %1515 = vrot.lane.b32.xlu0 %v1508, 64
    %v1516 = vpop.permute.xlu0 %1515
    %v1519 = vmul.f32 %v1504, %v1514
    %v1520 = vmul.f32 %v1506, %v1516
    %1523 = vrot.lane.b32.xlu0 %v1519, 32
    %v1524 = vpop.permute.xlu0 %1523
    %1525 = vrot.lane.b32.xlu0 %v1520, 32
    %v1526 = vpop.permute.xlu0 %1525
    %v1529 = vadd.f32 %v1509, %v1524
    %v1530 = vadd.f32 %v1510, %v1526
    %v1531 = vtanh.pop %v1529
    %v1532 = vtanh.pop %v1530
    %1535 = vrot.lane.b32.xlu0 %v1531, 64
    %v1536 = vpop.permute.xlu0 %1535
    %1537 = vrot.lane.b32.xlu0 %v1532, 64
    %v1538 = vpop.permute.xlu0 %1537
    %v1541 = vmul.f32 %v1504, %v1536
    %v1542 = vmul.f32 %v1506, %v1538
    %v1543 = vld [vmem:[#allocation3 + $0x30] sm:$0xff]
    %v1544 = vld [vmem:[#allocation3 + $0x38] sm:$0xff]
    %1545 = vrot.lane.b32.xlu0 %v1431, 32
    %v1546 = vpop.permute.xlu0 %1545
    %v1548 = vsel %vm524, %v1546, 0
    %1550 = vmatprep.subr.bf16.mxu0 0
    %1551 = vmatpush1.bf16.msra.mxu0 0
    %1552 = vmatprep.subr.bf16.mxu0 0
    %1553 = vmatpush1.bf16.msra.mxu0 0
    %1554 = vmatprep.subr.bf16.mxu0 0
    %1555 = vmatpush1.bf16.msra.mxu0 0
    %1556 = vmatprep.subr.bf16.mxu0 0
    %1557 = vmatpush1.bf16.msra.mxu0 0
    %1558 = vmatprep.subr.bf16.mxu0 0
    %1559 = vmatpush1.bf16.msra.mxu0 0
    %1560 = vmatprep.subr.bf16.mxu0 0
    %1561 = vmatpush1.bf16.msra.mxu0 0
    %1562 = vmatprep.subr.bf16.mxu0 0
    %1563 = vmatpush1.bf16.msra.mxu0 %v639
    %1564 = vmatprep.subr.bf16.mxu0 0
    %1565 = vmatpush1.bf16.msra.mxu0 %v638
    %1566 = vmatprep.subr.bf16.mxu0 0
    %1567 = vmatpush2.bf16.msra.mxu0 0
    %1568 = vmatprep.subr.bf16.mxu0 0
    %1569 = vmatpush2.bf16.msra.mxu0 0
    %1570 = vmatprep.subr.bf16.mxu0 0
    %1571 = vmatpush2.bf16.msra.mxu0 0
    %1572 = vmatprep.subr.bf16.mxu0 0
    %1573 = vmatpush2.bf16.msra.mxu0 0
    %1574 = vmatprep.subr.bf16.mxu0 0
    %1575 = vmatpush2.bf16.msra.mxu0 0
    %1576 = vmatprep.subr.bf16.mxu0 0
    %1577 = vmatpush2.bf16.msra.mxu0 0
    %1578 = vmatprep.subr.bf16.mxu0 0
    %1579 = vmatpush2.bf16.msra.mxu0 0
    %1580 = vmatprep.subr.bf16.mxu0 0
    %1581 = vmatpush2.bf16.msra.mxu0 0
    %1582 = vmatprep.mubr.bf16.mxu0 0
    %1583 = vmatmul.mubr.bf16.gmra.mxu0 %v1548
    %v1584 = vpop.f32.mrf.mxu0
    %v1585 = vadd.f32 0.0, %v1584
    %v1586 = vpop.f32.mrf.mxu0
    %v1587 = vpop.f32.mrf.mxu0
    %v1588 = vadd.f32 0.0, %v1587
    %v1589 = vpop.f32.mrf.mxu0
    %1590 = vdwg.mxu0
    %v1591 = vadd.f32 %v1543, %v1585
    %v1592 = vadd.f32 %v1544, %v1588
    %v1593 = vxor.u32 %v1591, 2147483648
    %v1594 = vxor.u32 %v1592, 2147483648
    %v1595 = vmul.f32 %v1593, 1.442695
    %v1596 = vpow.pop %v1595
    %v1597 = vmul.f32 %v1594, 1.442695
    %v1598 = vpow.pop %v1597
    %v1599 = vadd.f32 %v1596, 1.0
    %v1600 = vadd.f32 %v1598, 1.0
    %v1601 = vrcp.pop %v1599
    %v1602 = vmul.f32 1.0, %v1601
    %v1603 = vrcp.pop %v1600
    %v1604 = vmul.f32 1.0, %v1603
    %v1605 = vtanh.pop %v1591
    %v1606 = vtanh.pop %v1592
    %v1607 = vmul.f32 %v1602, %v1403
    %v1608 = vmul.f32 %v1604, %v1404
    %1611 = vrot.lane.b32.xlu0 %v1605, 64
    %v1612 = vpop.permute.xlu0 %1611
    %1613 = vrot.lane.b32.xlu0 %v1606, 64
    %v1614 = vpop.permute.xlu0 %1613
    %v1617 = vmul.f32 %v1602, %v1612
    %v1618 = vmul.f32 %v1604, %v1614
    %1621 = vrot.lane.b32.xlu0 %v1617, 32
    %v1622 = vpop.permute.xlu0 %1621
    %1623 = vrot.lane.b32.xlu0 %v1618, 32
    %v1624 = vpop.permute.xlu0 %1623
    %v1627 = vadd.f32 %v1607, %v1622
    %v1628 = vadd.f32 %v1608, %v1624
    %v1629 = vtanh.pop %v1627
    %v1630 = vtanh.pop %v1628
    %1633 = vrot.lane.b32.xlu0 %v1629, 64
    %v1634 = vpop.permute.xlu0 %1633
    %1635 = vrot.lane.b32.xlu0 %v1630, 64
    %v1636 = vpop.permute.xlu0 %1635
    %v1639 = vmul.f32 %v1602, %v1634
    %v1640 = vmul.f32 %v1604, %v1636
    %v1641 = vpack.c.bf16 %v1542, %v1541
    %v1643 = vunpack.c.l.b16 %v1641
    %v1644 = vunpack.c.h.b16 %v1641
    %v1645 = vpack.c.b16 %v1643, %v1643
    %v1646 = vpack.c.b16 %v1644, %v1644
    %1647 = vrot.lane.b32.xlu0 %v1645, 32
    %v1648 = vpop.permute.xlu0 %1647
    %1649 = vrot.lane.b32.xlu0 %v1646, 32
    %v1650 = vpop.permute.xlu0 %1649
    %1653 = vst.msk [vmem:[%s5 + $0x20] sm:$0xf] %vm756, %v1648
    %1654 = vst.msk [vmem:[%s5 + $0x24] sm:$0xf] %vm756, %v1650
    %v1655 = vpack.c.bf16 %v1640, %v1639
    %v1657 = vunpack.c.l.b16 %v1655
    %v1658 = vunpack.c.h.b16 %v1655
    %v1659 = vpack.c.b16 %v1657, %v1657
    %v1660 = vpack.c.b16 %v1658, %v1658
    %1661 = vrot.lane.b32.xlu0 %v1659, 32
    %v1662 = vpop.permute.xlu0 %1661
    %1663 = vrot.lane.b32.xlu0 %v1660, 32
    %v1664 = vpop.permute.xlu0 %1663
    %1667 = vst.msk [vmem:[%s59 + $0x18] sm:$0xf] %vm756, %v1662
    %1668 = vst.msk [vmem:[%s59 + $0x1c] sm:$0xf] %vm756, %v1664
    %v1669 = vld [vmem:[#allocation2 + $0x50] sm:$0xff]
    %v1670 = vld [vmem:[#allocation2 + $0x58] sm:$0xff]
    %1671 = vrot.lane.b32.xlu0 %v1641, 32
    %v1672 = vpop.permute.xlu0 %1671
    %v1674 = vsel %vm524, %v1672, 0
    %1676 = vmatprep.subr.bf16.mxu0 0
    %1677 = vmatpush1.bf16.msra.mxu0 0
    %1678 = vmatprep.subr.bf16.mxu0 0
    %1679 = vmatpush1.bf16.msra.mxu0 0
    %1680 = vmatprep.subr.bf16.mxu0 0
    %1681 = vmatpush1.bf16.msra.mxu0 0
    %1682 = vmatprep.subr.bf16.mxu0 0
    %1683 = vmatpush1.bf16.msra.mxu0 0
    %1684 = vmatprep.subr.bf16.mxu0 0
    %1685 = vmatpush1.bf16.msra.mxu0 0
    %1686 = vmatprep.subr.bf16.mxu0 0
    %1687 = vmatpush1.bf16.msra.mxu0 0
    %1688 = vmatprep.subr.bf16.mxu0 0
    %1689 = vmatpush1.bf16.msra.mxu0 %v521
    %1690 = vmatprep.subr.bf16.mxu0 0
    %1691 = vmatpush1.bf16.msra.mxu0 %v520
    %1692 = vmatprep.subr.bf16.mxu0 0
    %1693 = vmatpush2.bf16.msra.mxu0 0
    %1694 = vmatprep.subr.bf16.mxu0 0
    %1695 = vmatpush2.bf16.msra.mxu0 0
    %1696 = vmatprep.subr.bf16.mxu0 0
    %1697 = vmatpush2.bf16.msra.mxu0 0
    %1698 = vmatprep.subr.bf16.mxu0 0
    %1699 = vmatpush2.bf16.msra.mxu0 0
    %1700 = vmatprep.subr.bf16.mxu0 0
    %1701 = vmatpush2.bf16.msra.mxu0 0
    %1702 = vmatprep.subr.bf16.mxu0 0
    %1703 = vmatpush2.bf16.msra.mxu0 0
    %1704 = vmatprep.subr.bf16.mxu0 0
    %1705 = vmatpush2.bf16.msra.mxu0 0
    %1706 = vmatprep.subr.bf16.mxu0 0
    %1707 = vmatpush2.bf16.msra.mxu0 0
    %1708 = vmatprep.mubr.bf16.mxu0 0
    %1709 = vmatmul.mubr.bf16.gmra.mxu0 %v1674
    %v1710 = vpop.f32.mrf.mxu0
    %v1711 = vadd.f32 0.0, %v1710
    %v1712 = vpop.f32.mrf.mxu0
    %v1713 = vpop.f32.mrf.mxu0
    %v1714 = vadd.f32 0.0, %v1713
    %v1715 = vpop.f32.mrf.mxu0
    %1716 = vdwg.mxu0
    %v1717 = vadd.f32 %v1669, %v1711
    %v1718 = vadd.f32 %v1670, %v1714
    %v1719 = vxor.u32 %v1717, 2147483648
    %v1720 = vxor.u32 %v1718, 2147483648
    %v1721 = vmul.f32 %v1719, 1.442695
    %v1722 = vpow.pop %v1721
    %v1723 = vmul.f32 %v1720, 1.442695
    %v1724 = vpow.pop %v1723
    %v1725 = vadd.f32 %v1722, 1.0
    %v1726 = vadd.f32 %v1724, 1.0
    %v1727 = vrcp.pop %v1725
    %v1728 = vmul.f32 1.0, %v1727
    %v1729 = vrcp.pop %v1726
    %v1730 = vmul.f32 1.0, %v1729
    %v1731 = vtanh.pop %v1717
    %v1732 = vtanh.pop %v1718
    %v1733 = vmul.f32 %v1728, %v1529
    %v1734 = vmul.f32 %v1730, %v1530
    %1737 = vrot.lane.b32.xlu0 %v1731, 64
    %v1738 = vpop.permute.xlu0 %1737
    %1739 = vrot.lane.b32.xlu0 %v1732, 64
    %v1740 = vpop.permute.xlu0 %1739
    %v1743 = vmul.f32 %v1728, %v1738
    %v1744 = vmul.f32 %v1730, %v1740
    %1747 = vrot.lane.b32.xlu0 %v1743, 32
    %v1748 = vpop.permute.xlu0 %1747
    %1749 = vrot.lane.b32.xlu0 %v1744, 32
    %v1750 = vpop.permute.xlu0 %1749
    %v1753 = vadd.f32 %v1733, %v1748
    %v1754 = vadd.f32 %v1734, %v1750
    %v1755 = vtanh.pop %v1753
    %v1756 = vtanh.pop %v1754
    %1759 = vrot.lane.b32.xlu0 %v1755, 64
    %v1760 = vpop.permute.xlu0 %1759
    %1761 = vrot.lane.b32.xlu0 %v1756, 64
    %v1762 = vpop.permute.xlu0 %1761
    %v1765 = vmul.f32 %v1728, %v1760
    %v1766 = vmul.f32 %v1730, %v1762
    %v1767 = vld [vmem:[#allocation3 + $0x20] sm:$0xff]
    %v1768 = vld [vmem:[#allocation3 + $0x28] sm:$0xff]
    %1769 = vrot.lane.b32.xlu0 %v1655, 32
    %v1770 = vpop.permute.xlu0 %1769
    %v1772 = vsel %vm524, %v1770, 0
    %1774 = vmatprep.subr.bf16.mxu0 0
    %1775 = vmatpush1.bf16.msra.mxu0 0
    %1776 = vmatprep.subr.bf16.mxu0 0
    %1777 = vmatpush1.bf16.msra.mxu0 0
    %1778 = vmatprep.subr.bf16.mxu0 0
    %1779 = vmatpush1.bf16.msra.mxu0 0
    %1780 = vmatprep.subr.bf16.mxu0 0
    %1781 = vmatpush1.bf16.msra.mxu0 0
    %1782 = vmatprep.subr.bf16.mxu0 0
    %1783 = vmatpush1.bf16.msra.mxu0 0
    %1784 = vmatprep.subr.bf16.mxu0 0
    %1785 = vmatpush1.bf16.msra.mxu0 0
    %1786 = vmatprep.subr.bf16.mxu0 0
    %1787 = vmatpush1.bf16.msra.mxu0 %v639
    %1788 = vmatprep.subr.bf16.mxu0 0
    %1789 = vmatpush1.bf16.msra.mxu0 %v638
    %1790 = vmatprep.subr.bf16.mxu0 0
    %1791 = vmatpush2.bf16.msra.mxu0 0
    %1792 = vmatprep.subr.bf16.mxu0 0
    %1793 = vmatpush2.bf16.msra.mxu0 0
    %1794 = vmatprep.subr.bf16.mxu0 0
    %1795 = vmatpush2.bf16.msra.mxu0 0
    %1796 = vmatprep.subr.bf16.mxu0 0
    %1797 = vmatpush2.bf16.msra.mxu0 0
    %1798 = vmatprep.subr.bf16.mxu0 0
    %1799 = vmatpush2.bf16.msra.mxu0 0
    %1800 = vmatprep.subr.bf16.mxu0 0
    %1801 = vmatpush2.bf16.msra.mxu0 0
    %1802 = vmatprep.subr.bf16.mxu0 0
    %1803 = vmatpush2.bf16.msra.mxu0 0
    %1804 = vmatprep.subr.bf16.mxu0 0
    %1805 = vmatpush2.bf16.msra.mxu0 0
    %1806 = vmatprep.mubr.bf16.mxu0 0
    %1807 = vmatmul.mubr.bf16.gmra.mxu0 %v1772
    %v1808 = vpop.f32.mrf.mxu0
    %v1809 = vadd.f32 0.0, %v1808
    %v1810 = vpop.f32.mrf.mxu0
    %v1811 = vpop.f32.mrf.mxu0
    %v1812 = vadd.f32 0.0, %v1811
    %v1813 = vpop.f32.mrf.mxu0
    %1814 = vdwg.mxu0
    %v1815 = vadd.f32 %v1767, %v1809
    %v1816 = vadd.f32 %v1768, %v1812
    %v1817 = vxor.u32 %v1815, 2147483648
    %v1818 = vxor.u32 %v1816, 2147483648
    %v1819 = vmul.f32 %v1817, 1.442695
    %v1820 = vpow.pop %v1819
    %v1821 = vmul.f32 %v1818, 1.442695
    %v1822 = vpow.pop %v1821
    %v1823 = vadd.f32 %v1820, 1.0
    %v1824 = vadd.f32 %v1822, 1.0
    %v1825 = vrcp.pop %v1823
    %v1826 = vmul.f32 1.0, %v1825
    %v1827 = vrcp.pop %v1824
    %v1828 = vmul.f32 1.0, %v1827
    %v1829 = vtanh.pop %v1815
    %v1830 = vtanh.pop %v1816
    %v1831 = vmul.f32 %v1826, %v1627
    %v1832 = vmul.f32 %v1828, %v1628
    %1835 = vrot.lane.b32.xlu0 %v1829, 64
    %v1836 = vpop.permute.xlu0 %1835
    %1837 = vrot.lane.b32.xlu0 %v1830, 64
    %v1838 = vpop.permute.xlu0 %1837
    %v1841 = vmul.f32 %v1826, %v1836
    %v1842 = vmul.f32 %v1828, %v1838
    %1845 = vrot.lane.b32.xlu0 %v1841, 32
    %v1846 = vpop.permute.xlu0 %1845
    %1847 = vrot.lane.b32.xlu0 %v1842, 32
    %v1848 = vpop.permute.xlu0 %1847
    %v1851 = vadd.f32 %v1831, %v1846
    %v1852 = vadd.f32 %v1832, %v1848
    %v1853 = vtanh.pop %v1851
    %v1854 = vtanh.pop %v1852
    %1857 = vrot.lane.b32.xlu0 %v1853, 64
    %v1858 = vpop.permute.xlu0 %1857
    %1859 = vrot.lane.b32.xlu0 %v1854, 64
    %v1860 = vpop.permute.xlu0 %1859
    %v1863 = vmul.f32 %v1826, %v1858
    %v1864 = vmul.f32 %v1828, %v1860
    %v1865 = vpack.c.bf16 %v1766, %v1765
    %v1867 = vunpack.c.l.b16 %v1865
    %v1868 = vunpack.c.h.b16 %v1865
    %v1869 = vpack.c.b16 %v1867, %v1867
    %v1870 = vpack.c.b16 %v1868, %v1868
    %1871 = vrot.lane.b32.xlu0 %v1869, 32
    %v1872 = vpop.permute.xlu0 %1871
    %1873 = vrot.lane.b32.xlu0 %v1870, 32
    %v1874 = vpop.permute.xlu0 %1873
    %1877 = vst.msk [vmem:[%s5 + $0x28] sm:$0xf] %vm756, %v1872
    %1878 = vst.msk [vmem:[%s5 + $0x2c] sm:$0xf] %vm756, %v1874
    %v1879 = vpack.c.bf16 %v1864, %v1863
    %v1881 = vunpack.c.l.b16 %v1879
    %v1882 = vunpack.c.h.b16 %v1879
    %v1883 = vpack.c.b16 %v1881, %v1881
    %v1884 = vpack.c.b16 %v1882, %v1882
    %1885 = vrot.lane.b32.xlu0 %v1883, 32
    %v1886 = vpop.permute.xlu0 %1885
    %1887 = vrot.lane.b32.xlu0 %v1884, 32
    %v1888 = vpop.permute.xlu0 %1887
    %1891 = vst.msk [vmem:[%s59 + $0x10] sm:$0xf] %vm756, %v1886
    %1892 = vst.msk [vmem:[%s59 + $0x14] sm:$0xf] %vm756, %v1888
    %v1893 = vld [vmem:[#allocation2 + $0x60] sm:$0xff]
    %v1894 = vld [vmem:[#allocation2 + $0x68] sm:$0xff]
    %1895 = vrot.lane.b32.xlu0 %v1865, 32
    %v1896 = vpop.permute.xlu0 %1895
    %v1898 = vsel %vm524, %v1896, 0
    %1900 = vmatprep.subr.bf16.mxu0 0
    %1901 = vmatpush1.bf16.msra.mxu0 0
    %1902 = vmatprep.subr.bf16.mxu0 0
    %1903 = vmatpush1.bf16.msra.mxu0 0
    %1904 = vmatprep.subr.bf16.mxu0 0
    %1905 = vmatpush1.bf16.msra.mxu0 0
    %1906 = vmatprep.subr.bf16.mxu0 0
    %1907 = vmatpush1.bf16.msra.mxu0 0
    %1908 = vmatprep.subr.bf16.mxu0 0
    %1909 = vmatpush1.bf16.msra.mxu0 0
    %1910 = vmatprep.subr.bf16.mxu0 0
    %1911 = vmatpush1.bf16.msra.mxu0 0
    %1912 = vmatprep.subr.bf16.mxu0 0
    %1913 = vmatpush1.bf16.msra.mxu0 %v521
    %1914 = vmatprep.subr.bf16.mxu0 0
    %1915 = vmatpush1.bf16.msra.mxu0 %v520
    %1916 = vmatprep.subr.bf16.mxu0 0
    %1917 = vmatpush2.bf16.msra.mxu0 0
    %1918 = vmatprep.subr.bf16.mxu0 0
    %1919 = vmatpush2.bf16.msra.mxu0 0
    %1920 = vmatprep.subr.bf16.mxu0 0
    %1921 = vmatpush2.bf16.msra.mxu0 0
    %1922 = vmatprep.subr.bf16.mxu0 0
    %1923 = vmatpush2.bf16.msra.mxu0 0
    %1924 = vmatprep.subr.bf16.mxu0 0
    %1925 = vmatpush2.bf16.msra.mxu0 0
    %1926 = vmatprep.subr.bf16.mxu0 0
    %1927 = vmatpush2.bf16.msra.mxu0 0
    %1928 = vmatprep.subr.bf16.mxu0 0
    %1929 = vmatpush2.bf16.msra.mxu0 0
    %1930 = vmatprep.subr.bf16.mxu0 0
    %1931 = vmatpush2.bf16.msra.mxu0 0
    %1932 = vmatprep.mubr.bf16.mxu0 0
    %1933 = vmatmul.mubr.bf16.gmra.mxu0 %v1898
    %v1934 = vpop.f32.mrf.mxu0
    %v1935 = vadd.f32 0.0, %v1934
    %v1936 = vpop.f32.mrf.mxu0
    %v1937 = vpop.f32.mrf.mxu0
    %v1938 = vadd.f32 0.0, %v1937
    %v1939 = vpop.f32.mrf.mxu0
    %1940 = vdwg.mxu0
    %v1941 = vadd.f32 %v1893, %v1935
    %v1942 = vadd.f32 %v1894, %v1938
    %v1943 = vxor.u32 %v1941, 2147483648
    %v1944 = vxor.u32 %v1942, 2147483648
    %v1945 = vmul.f32 %v1943, 1.442695
    %v1946 = vpow.pop %v1945
    %v1947 = vmul.f32 %v1944, 1.442695
    %v1948 = vpow.pop %v1947
    %v1949 = vadd.f32 %v1946, 1.0
    %v1950 = vadd.f32 %v1948, 1.0
    %v1951 = vrcp.pop %v1949
    %v1952 = vmul.f32 1.0, %v1951
    %v1953 = vrcp.pop %v1950
    %v1954 = vmul.f32 1.0, %v1953
    %v1955 = vtanh.pop %v1941
    %v1956 = vtanh.pop %v1942
    %v1957 = vmul.f32 %v1952, %v1753
    %v1958 = vmul.f32 %v1954, %v1754
    %1961 = vrot.lane.b32.xlu0 %v1955, 64
    %v1962 = vpop.permute.xlu0 %1961
    %1963 = vrot.lane.b32.xlu0 %v1956, 64
    %v1964 = vpop.permute.xlu0 %1963
    %v1967 = vmul.f32 %v1952, %v1962
    %v1968 = vmul.f32 %v1954, %v1964
    %1971 = vrot.lane.b32.xlu0 %v1967, 32
    %v1972 = vpop.permute.xlu0 %1971
    %1973 = vrot.lane.b32.xlu0 %v1968, 32
    %v1974 = vpop.permute.xlu0 %1973
    %v1977 = vadd.f32 %v1957, %v1972
    %v1978 = vadd.f32 %v1958, %v1974
    %v1979 = vtanh.pop %v1977
    %v1980 = vtanh.pop %v1978
    %1983 = vrot.lane.b32.xlu0 %v1979, 64
    %v1984 = vpop.permute.xlu0 %1983
    %1985 = vrot.lane.b32.xlu0 %v1980, 64
    %v1986 = vpop.permute.xlu0 %1985
    %v1989 = vmul.f32 %v1952, %v1984
    %v1990 = vmul.f32 %v1954, %v1986
    %v1991 = vld [vmem:[#allocation3 + $0x10] sm:$0xff]
    %v1992 = vld [vmem:[#allocation3 + $0x18] sm:$0xff]
    %1993 = vrot.lane.b32.xlu0 %v1879, 32
    %v1994 = vpop.permute.xlu0 %1993
    %v1996 = vsel %vm524, %v1994, 0
    %1998 = vmatprep.subr.bf16.mxu0 0
    %1999 = vmatpush1.bf16.msra.mxu0 0
    %2000 = vmatprep.subr.bf16.mxu0 0
    %2001 = vmatpush1.bf16.msra.mxu0 0
    %2002 = vmatprep.subr.bf16.mxu0 0
    %2003 = vmatpush1.bf16.msra.mxu0 0
    %2004 = vmatprep.subr.bf16.mxu0 0
    %2005 = vmatpush1.bf16.msra.mxu0 0
    %2006 = vmatprep.subr.bf16.mxu0 0
    %2007 = vmatpush1.bf16.msra.mxu0 0
    %2008 = vmatprep.subr.bf16.mxu0 0
    %2009 = vmatpush1.bf16.msra.mxu0 0
    %2010 = vmatprep.subr.bf16.mxu0 0
    %2011 = vmatpush1.bf16.msra.mxu0 %v639
    %2012 = vmatprep.subr.bf16.mxu0 0
    %2013 = vmatpush1.bf16.msra.mxu0 %v638
    %2014 = vmatprep.subr.bf16.mxu0 0
    %2015 = vmatpush2.bf16.msra.mxu0 0
    %2016 = vmatprep.subr.bf16.mxu0 0
    %2017 = vmatpush2.bf16.msra.mxu0 0
    %2018 = vmatprep.subr.bf16.mxu0 0
    %2019 = vmatpush2.bf16.msra.mxu0 0
    %2020 = vmatprep.subr.bf16.mxu0 0
    %2021 = vmatpush2.bf16.msra.mxu0 0
    %2022 = vmatprep.subr.bf16.mxu0 0
    %2023 = vmatpush2.bf16.msra.mxu0 0
    %2024 = vmatprep.subr.bf16.mxu0 0
    %2025 = vmatpush2.bf16.msra.mxu0 0
    %2026 = vmatprep.subr.bf16.mxu0 0
    %2027 = vmatpush2.bf16.msra.mxu0 0
    %2028 = vmatprep.subr.bf16.mxu0 0
    %2029 = vmatpush2.bf16.msra.mxu0 0
    %2030 = vmatprep.mubr.bf16.mxu0 0
    %2031 = vmatmul.mubr.bf16.gmra.mxu0 %v1996
    %v2032 = vpop.f32.mrf.mxu0
    %v2033 = vadd.f32 0.0, %v2032
    %v2034 = vpop.f32.mrf.mxu0
    %v2035 = vpop.f32.mrf.mxu0
    %v2036 = vadd.f32 0.0, %v2035
    %v2037 = vpop.f32.mrf.mxu0
    %2038 = vdwg.mxu0
    %v2039 = vadd.f32 %v1991, %v2033
    %v2040 = vadd.f32 %v1992, %v2036
    %v2041 = vxor.u32 %v2039, 2147483648
    %v2042 = vxor.u32 %v2040, 2147483648
    %v2043 = vmul.f32 %v2041, 1.442695
    %v2044 = vpow.pop %v2043
    %v2045 = vmul.f32 %v2042, 1.442695
    %v2046 = vpow.pop %v2045
    %v2047 = vadd.f32 %v2044, 1.0
    %v2048 = vadd.f32 %v2046, 1.0
    %v2049 = vrcp.pop %v2047
    %v2050 = vmul.f32 1.0, %v2049
    %v2051 = vrcp.pop %v2048
    %v2052 = vmul.f32 1.0, %v2051
    %v2053 = vtanh.pop %v2039
    %v2054 = vtanh.pop %v2040
    %v2055 = vmul.f32 %v2050, %v1851
    %v2056 = vmul.f32 %v2052, %v1852
    %2059 = vrot.lane.b32.xlu0 %v2053, 64
    %v2060 = vpop.permute.xlu0 %2059
    %2061 = vrot.lane.b32.xlu0 %v2054, 64
    %v2062 = vpop.permute.xlu0 %2061
    %v2065 = vmul.f32 %v2050, %v2060
    %v2066 = vmul.f32 %v2052, %v2062
    %2069 = vrot.lane.b32.xlu0 %v2065, 32
    %v2070 = vpop.permute.xlu0 %2069
    %2071 = vrot.lane.b32.xlu0 %v2066, 32
    %v2072 = vpop.permute.xlu0 %2071
    %v2075 = vadd.f32 %v2055, %v2070
    %v2076 = vadd.f32 %v2056, %v2072
    %v2077 = vtanh.pop %v2075
    %v2078 = vtanh.pop %v2076
    %2081 = vrot.lane.b32.xlu0 %v2077, 64
    %v2082 = vpop.permute.xlu0 %2081
    %2083 = vrot.lane.b32.xlu0 %v2078, 64
    %v2084 = vpop.permute.xlu0 %2083
    %v2087 = vmul.f32 %v2050, %v2082
    %v2088 = vmul.f32 %v2052, %v2084
    %v2089 = vpack.c.bf16 %v1990, %v1989
    %v2091 = vunpack.c.l.b16 %v2089
    %v2092 = vunpack.c.h.b16 %v2089
    %v2093 = vpack.c.b16 %v2091, %v2091
    %v2094 = vpack.c.b16 %v2092, %v2092
    %2095 = vrot.lane.b32.xlu0 %v2093, 32
    %v2096 = vpop.permute.xlu0 %2095
    %2097 = vrot.lane.b32.xlu0 %v2094, 32
    %v2098 = vpop.permute.xlu0 %2097
    %2101 = vst.msk [vmem:[%s5 + $0x30] sm:$0xf] %vm756, %v2096
    %2102 = vst.msk [vmem:[%s5 + $0x34] sm:$0xf] %vm756, %v2098
    %v2103 = vpack.c.bf16 %v2088, %v2087
    %v2105 = vunpack.c.l.b16 %v2103
    %v2106 = vunpack.c.h.b16 %v2103
    %v2107 = vpack.c.b16 %v2105, %v2105
    %v2108 = vpack.c.b16 %v2106, %v2106
    %2109 = vrot.lane.b32.xlu0 %v2107, 32
    %v2110 = vpop.permute.xlu0 %2109
    %2111 = vrot.lane.b32.xlu0 %v2108, 32
    %v2112 = vpop.permute.xlu0 %2111
    %2115 = vst.msk [vmem:[%s59 + $0x8] sm:$0xf] %vm756, %v2110
    %2116 = vst.msk [vmem:[%s59 + $0xc] sm:$0xf] %vm756, %v2112
    %v2117 = vld [vmem:[#allocation2 + $0x70] sm:$0xff]
    %v2118 = vld [vmem:[#allocation2 + $0x78] sm:$0xff]
    %2119 = vrot.lane.b32.xlu0 %v2089, 32
    %v2120 = vpop.permute.xlu0 %2119
    %v2122 = vsel %vm524, %v2120, 0
    %2124 = vmatprep.subr.bf16.mxu0 0
    %2125 = vmatpush1.bf16.msra.mxu0 0
    %2126 = vmatprep.subr.bf16.mxu0 0
    %2127 = vmatpush1.bf16.msra.mxu0 0
    %2128 = vmatprep.subr.bf16.mxu0 0
    %2129 = vmatpush1.bf16.msra.mxu0 0
    %2130 = vmatprep.subr.bf16.mxu0 0
    %2131 = vmatpush1.bf16.msra.mxu0 0
    %2132 = vmatprep.subr.bf16.mxu0 0
    %2133 = vmatpush1.bf16.msra.mxu0 0
    %2134 = vmatprep.subr.bf16.mxu0 0
    %2135 = vmatpush1.bf16.msra.mxu0 0
    %2136 = vmatprep.subr.bf16.mxu0 0
    %2137 = vmatpush1.bf16.msra.mxu0 %v521
    %2138 = vmatprep.subr.bf16.mxu0 0
    %2139 = vmatpush1.bf16.msra.mxu0 %v520
    %2140 = vmatprep.subr.bf16.mxu0 0
    %2141 = vmatpush2.bf16.msra.mxu0 0
    %2142 = vmatprep.subr.bf16.mxu0 0
    %2143 = vmatpush2.bf16.msra.mxu0 0
    %2144 = vmatprep.subr.bf16.mxu0 0
    %2145 = vmatpush2.bf16.msra.mxu0 0
    %2146 = vmatprep.subr.bf16.mxu0 0
    %2147 = vmatpush2.bf16.msra.mxu0 0
    %2148 = vmatprep.subr.bf16.mxu0 0
    %2149 = vmatpush2.bf16.msra.mxu0 0
    %2150 = vmatprep.subr.bf16.mxu0 0
    %2151 = vmatpush2.bf16.msra.mxu0 0
    %2152 = vmatprep.subr.bf16.mxu0 0
    %2153 = vmatpush2.bf16.msra.mxu0 0
    %2154 = vmatprep.subr.bf16.mxu0 0
    %2155 = vmatpush2.bf16.msra.mxu0 0
    %2156 = vmatprep.mubr.bf16.mxu0 0
    %2157 = vmatmul.mubr.bf16.gmra.mxu0 %v2122
    %v2158 = vpop.f32.mrf.mxu0
    %v2159 = vadd.f32 0.0, %v2158
    %v2160 = vpop.f32.mrf.mxu0
    %v2161 = vpop.f32.mrf.mxu0
    %v2162 = vadd.f32 0.0, %v2161
    %v2163 = vpop.f32.mrf.mxu0
    %2164 = vdwg.mxu0
    %v2165 = vadd.f32 %v2117, %v2159
    %v2166 = vadd.f32 %v2118, %v2162
    %v2167 = vxor.u32 %v2165, 2147483648
    %v2168 = vxor.u32 %v2166, 2147483648
    %v2169 = vmul.f32 %v2167, 1.442695
    %v2170 = vpow.pop %v2169
    %v2171 = vmul.f32 %v2168, 1.442695
    %v2172 = vpow.pop %v2171
    %v2173 = vadd.f32 %v2170, 1.0
    %v2174 = vadd.f32 %v2172, 1.0
    %v2175 = vrcp.pop %v2173
    %v2176 = vmul.f32 1.0, %v2175
    %v2177 = vrcp.pop %v2174
    %v2178 = vmul.f32 1.0, %v2177
    %v2179 = vtanh.pop %v2165
    %v2180 = vtanh.pop %v2166
    %v2181 = vmul.f32 %v2176, %v1977
    %v2182 = vmul.f32 %v2178, %v1978
    %2185 = vrot.lane.b32.xlu0 %v2179, 64
    %v2186 = vpop.permute.xlu0 %2185
    %2187 = vrot.lane.b32.xlu0 %v2180, 64
    %v2188 = vpop.permute.xlu0 %2187
    %v2191 = vmul.f32 %v2176, %v2186
    %v2192 = vmul.f32 %v2178, %v2188
    %2195 = vrot.lane.b32.xlu0 %v2191, 32
    %v2196 = vpop.permute.xlu0 %2195
    %2197 = vrot.lane.b32.xlu0 %v2192, 32
    %v2198 = vpop.permute.xlu0 %2197
    %v2201 = vadd.f32 %v2181, %v2196
    %v2202 = vadd.f32 %v2182, %v2198
    %v2203 = vtanh.pop %v2201
    %v2204 = vtanh.pop %v2202
    %2207 = vrot.lane.b32.xlu0 %v2203, 64
    %v2208 = vpop.permute.xlu0 %2207
    %2209 = vrot.lane.b32.xlu0 %v2204, 64
    %v2210 = vpop.permute.xlu0 %2209
    %v2213 = vmul.f32 %v2176, %v2208
    %v2214 = vmul.f32 %v2178, %v2210
    %v2215 = vld [vmem:[#allocation3] sm:$0xff]
    %v2216 = vld [vmem:[#allocation3 + $0x8] sm:$0xff]
    %2217 = vrot.lane.b32.xlu0 %v2103, 32
    %v2218 = vpop.permute.xlu0 %2217
    %v2220 = vsel %vm524, %v2218, 0
    %2222 = vmatprep.subr.bf16.mxu0 0
    %2223 = vmatpush1.bf16.msra.mxu0 0
    %2224 = vmatprep.subr.bf16.mxu0 0
    %2225 = vmatpush1.bf16.msra.mxu0 0
    %2226 = vmatprep.subr.bf16.mxu0 0
    %2227 = vmatpush1.bf16.msra.mxu0 0
    %2228 = vmatprep.subr.bf16.mxu0 0
    %2229 = vmatpush1.bf16.msra.mxu0 0
    %2230 = vmatprep.subr.bf16.mxu0 0
    %2231 = vmatpush1.bf16.msra.mxu0 0
    %2232 = vmatprep.subr.bf16.mxu0 0
    %2233 = vmatpush1.bf16.msra.mxu0 0
    %2234 = vmatprep.subr.bf16.mxu0 0
    %2235 = vmatpush1.bf16.msra.mxu0 %v639
    %2236 = vmatprep.subr.bf16.mxu0 0
    %2237 = vmatpush1.bf16.msra.mxu0 %v638
    %2238 = vmatprep.subr.bf16.mxu0 0
    %2239 = vmatpush2.bf16.msra.mxu0 0
    %2240 = vmatprep.subr.bf16.mxu0 0
    %2241 = vmatpush2.bf16.msra.mxu0 0
    %2242 = vmatprep.subr.bf16.mxu0 0
    %2243 = vmatpush2.bf16.msra.mxu0 0
    %2244 = vmatprep.subr.bf16.mxu0 0
    %2245 = vmatpush2.bf16.msra.mxu0 0
    %2246 = vmatprep.subr.bf16.mxu0 0
    %2247 = vmatpush2.bf16.msra.mxu0 0
    %2248 = vmatprep.subr.bf16.mxu0 0
    %2249 = vmatpush2.bf16.msra.mxu0 0
    %2250 = vmatprep.subr.bf16.mxu0 0
    %2251 = vmatpush2.bf16.msra.mxu0 0
    %2252 = vmatprep.subr.bf16.mxu0 0
    %2253 = vmatpush2.bf16.msra.mxu0 0
    %2254 = vmatprep.mubr.bf16.mxu0 0
    %2255 = vmatmul.mubr.bf16.gmra.mxu0 %v2220
    %v2256 = vpop.f32.mrf.mxu0
    %v2257 = vadd.f32 0.0, %v2256
    %v2258 = vpop.f32.mrf.mxu0
    %v2259 = vpop.f32.mrf.mxu0
    %v2260 = vadd.f32 0.0, %v2259
    %v2261 = vpop.f32.mrf.mxu0
    %2262 = vdwg.mxu0
    %v2263 = vadd.f32 %v2215, %v2257
    %v2264 = vadd.f32 %v2216, %v2260
    %v2265 = vxor.u32 %v2263, 2147483648
    %v2266 = vxor.u32 %v2264, 2147483648
    %v2267 = vmul.f32 %v2265, 1.442695
    %v2268 = vpow.pop %v2267
    %v2269 = vmul.f32 %v2266, 1.442695
    %v2270 = vpow.pop %v2269
    %v2271 = vadd.f32 %v2268, 1.0
    %v2272 = vadd.f32 %v2270, 1.0
    %v2273 = vrcp.pop %v2271
    %v2274 = vmul.f32 1.0, %v2273
    %v2275 = vrcp.pop %v2272
    %v2276 = vmul.f32 1.0, %v2275
    %v2277 = vtanh.pop %v2263
    %v2278 = vtanh.pop %v2264
    %v2279 = vmul.f32 %v2274, %v2075
    %v2280 = vmul.f32 %v2276, %v2076
    %2283 = vrot.lane.b32.xlu0 %v2277, 64
    %v2284 = vpop.permute.xlu0 %2283
    %2285 = vrot.lane.b32.xlu0 %v2278, 64
    %v2286 = vpop.permute.xlu0 %2285
    %v2289 = vmul.f32 %v2274, %v2284
    %v2290 = vmul.f32 %v2276, %v2286
    %2293 = vrot.lane.b32.xlu0 %v2289, 32
    %v2294 = vpop.permute.xlu0 %2293
    %2295 = vrot.lane.b32.xlu0 %v2290, 32
    %v2296 = vpop.permute.xlu0 %2295
    %v2299 = vadd.f32 %v2279, %v2294
    %v2300 = vadd.f32 %v2280, %v2296
    %v2301 = vtanh.pop %v2299
    %v2302 = vtanh.pop %v2300
    %2305 = vrot.lane.b32.xlu0 %v2301, 64
    %v2306 = vpop.permute.xlu0 %2305
    %2307 = vrot.lane.b32.xlu0 %v2302, 64
    %v2308 = vpop.permute.xlu0 %2307
    %v2311 = vmul.f32 %v2274, %v2306
    %v2312 = vmul.f32 %v2276, %v2308
    %v2313 = vpack.c.bf16 %v2214, %v2213
    %v2315 = vunpack.c.l.b16 %v2313
    %v2316 = vunpack.c.h.b16 %v2313
    %v2317 = vpack.c.b16 %v2315, %v2315
    %v2318 = vpack.c.b16 %v2316, %v2316
    %2319 = vrot.lane.b32.xlu0 %v2317, 32
    %v2320 = vpop.permute.xlu0 %2319
    %2321 = vrot.lane.b32.xlu0 %v2318, 32
    %v2322 = vpop.permute.xlu0 %2321
    %2325 = vst.msk [vmem:[%s5 + $0x38] sm:$0xf] %vm756, %v2320
    %2326 = vst.msk [vmem:[%s5 + $0x3c] sm:$0xf] %vm756, %v2322
    %v2327 = vpack.c.bf16 %v2312, %v2311
    %v2329 = vunpack.c.l.b16 %v2327
    %v2330 = vunpack.c.h.b16 %v2327
    %v2331 = vpack.c.b16 %v2329, %v2329
    %v2332 = vpack.c.b16 %v2330, %v2330
    %2333 = vrot.lane.b32.xlu0 %v2331, 32
    %v2334 = vpop.permute.xlu0 %2333
    %2335 = vrot.lane.b32.xlu0 %v2332, 32
    %v2336 = vpop.permute.xlu0 %2335
    %2339 = vst.msk [vmem:[%s59] sm:$0xf] %vm756, %v2334
    %2340 = vst.msk [vmem:[%s59 + $0x4] sm:$0xf] %vm756, %v2336
    %2343 = vrot.lane.b32.xlu0 %v2213, 32
    %v2344 = vpop.permute.xlu0 %2343
    %2345 = vrot.lane.b32.xlu0 %v2214, 32
    %v2346 = vpop.permute.xlu0 %2345
    %2349 = vst.msk [vmem:[#allocation4] sm:$0xff] %vm524, %v2344
    %2350 = vst.msk [vmem:[#allocation4 + $0x8] sm:$0xff] %vm524, %v2346
    %2353 = vrot.lane.b32.xlu0 %v2311, 32
    %v2354 = vpop.permute.xlu0 %2353
    %2355 = vrot.lane.b32.xlu0 %v2312, 32
    %v2356 = vpop.permute.xlu0 %2355
    %2359 = vst.msk [vmem:[%s503] sm:$0xff] %vm524, %v2354
    %2360 = vst.msk [vmem:[%s503 + $0x8] sm:$0xff] %vm524, %v2356
    %2363 = vrot.lane.b32.xlu0 %v2201, 96
    %v2364 = vpop.permute.xlu0 %2363
    %2365 = vrot.lane.b32.xlu0 %v2202, 96
    %v2366 = vpop.permute.xlu0 %2365
    %2369 = vst.msk [vmem:[#allocation6] sm:$0xff] %vm524, %v2364
    %2370 = vst.msk [vmem:[#allocation6 + $0x8] sm:$0xff] %vm524, %v2366
    %2373 = vrot.lane.b32.xlu0 %v2299, 96
    %v2374 = vpop.permute.xlu0 %2373
    %2375 = vrot.lane.b32.xlu0 %v2300, 96
    %v2376 = vpop.permute.xlu0 %2375
    %2379 = vst.msk [vmem:[%s506] sm:$0xff] %vm524, %v2374
    %2380 = vst.msk [vmem:[%s506 + $0x8] sm:$0xff] %vm524, %v2376
    %s2381 = ssub.s32 0, 0
    %s2382 = smul.u32 16, %s2381
    %p2383 = scmp.lt.s32.totalorder %s2382, 15
    %s2384 = scalar_select %p2383, %s2382, 15
    %s2385 = smul.addr %s2384, 4
    %s2386 = scalar_lea.vmem %s6, %s2385
    // Predicated region
    $region26: #{tpu_custom_call.1} parent=1 // pred_check
      _
    $region27: #{tpu_custom_call.1} parent=1 // pred_check_branch
      %2388 = sbr.rel (0) target = $region29
    $region28: #{tpu_custom_call.1} parent=1 // pred_region
      _
    $region29: #{tpu_custom_call.1} parent=1 // pred_fallthru
      _
    // Predicated region
    $region30: #{tpu_custom_call.1} parent=1 // pred_check
      _
    $region31: #{tpu_custom_call.1} parent=1 // pred_check_branch
      %2390 = sbr.rel (0) target = $region33
    $region32: #{tpu_custom_call.1} parent=1 // pred_region
      %s2391 = ssub.s32 0, 0
      %s2392 = smul.u32 16, %s2391
    $region33: #{tpu_custom_call.1} parent=1 // pred_fallthru
      _
    // Predicated region
    $region34: #{tpu_custom_call.1} parent=1 // pred_check
      _
    $region35: #{tpu_custom_call.1} parent=1 // pred_check_branch
      %2394 = sbr.rel (0) target = $region37
    $region36: #{tpu_custom_call.1} parent=1 // pred_region
      %s2396 = ssub.s32 512, 512
      %2397 = vsyncadd [#allocation5], %s2396
      %s2398 = sshll.u32 [#allocation4], 4
      %s2399 = int_to_ptr.vmem [resolvable:$true] %s2398
      %2404 = dma.vmem_to_hbm [thread:$0]  %s2399, 512, %s7, [#allocation5], 128, 128, 8
    $region37: #{tpu_custom_call.1} parent=1 // pred_fallthru
      _
    // Predicated region
    $region38: #{tpu_custom_call.1} parent=1 // pred_check
      _
    $region39: #{tpu_custom_call.1} parent=1 // pred_check_branch
      %2406 = sbr.rel (0) target = $region41
    $region40: #{tpu_custom_call.1} parent=1 // pred_region
      %s2408 = ssub.s32 512, 512
      %2409 = vsyncadd [#allocation7], %s2408
      %s2410 = sshll.u32 [#allocation6], 4
      %s2411 = int_to_ptr.vmem [resolvable:$true] %s2410
      %2416 = dma.vmem_to_hbm [thread:$0]  %s2411, 512, %s8, [#allocation7], 128, 128, 8
    $region41: #{tpu_custom_call.1} parent=1 // pred_fallthru
      _
    // Predicated region
    $region42: #{tpu_custom_call.1} parent=1 // pred_check
      _
    $region43: #{tpu_custom_call.1} parent=1 // pred_check_branch
      %2418 = sbr.rel (0) target = $region45
    $region44: #{tpu_custom_call.1} parent=1 // pred_region
      _
    $region45: #{tpu_custom_call.1} parent=1 // pred_fallthru
      _
    // Predicated region
    $region46: #{tpu_custom_call.1} parent=1 // pred_check
      _
    $region47: #{tpu_custom_call.1} parent=1 // pred_check_branch
      %2420 = sbr.rel (0) target = $region49
    $region48: #{tpu_custom_call.1} parent=1 // pred_region
      %s2421 = ssub.s32 0, 0
      %s2422 = smul.u32 16, %s2421
      %p2423 = scmp.lt.s32.totalorder %s2422, 15
      %s2424 = scalar_select %p2423, %s2422, 15
      %s2425 = smul.addr %s2424, 4
      %s2426 = scalar_lea.vmem %s6, %s2425
    $region49: #{tpu_custom_call.1} parent=1 // pred_fallthru
      _
    // Predicated region
    $region50: #{tpu_custom_call.1} parent=1 // pred_check
      _
    $region51: #{tpu_custom_call.1} parent=1 // pred_check_branch
      %2428 = sbr.rel (0) target = $region53
    $region52: #{tpu_custom_call.1} parent=1 // pred_region
      %2429 = dma.done [#allocation5], 512
    $region53: #{tpu_custom_call.1} parent=1 // pred_fallthru
      _
    // Predicated region
    $region54: #{tpu_custom_call.1} parent=1 // pred_check
      _
    $region55: #{tpu_custom_call.1} parent=1 // pred_check_branch
      %2431 = sbr.rel (0) target = $region57
    $region56: #{tpu_custom_call.1} parent=1 // pred_region
      %2432 = dma.done [#allocation7], 512
    $region57: #{tpu_custom_call.1} parent=1 // pred_fallthru
      _
    %2433 = vsyncpa [#allocation5], 1
    %2434 = vsyncpa [#allocation7], 1

</llo_original>
